<compile_context>
chip_gen: v7x
topology: tpu7x:2x2x1
jax: 0.10.0
libtpu: 0.0.40
codegen_flags: <defaults>
</compile_context>

<pallas_src>
import functools
import math

import jax
import jax.numpy as jnp
from jax import lax
from jax.experimental import pallas as pl
from jax.experimental.pallas import tpu as pltpu


# ----------------------------------------------------------------------------
# Pallas kernel: fused multi-segment conv + bias + optional ReLU + residual
# ----------------------------------------------------------------------------
def _conv_kernel(*refs, seg_cins, kh, kw, th, W, cout, relu, has_res, pad_off):
    """Inputs (in order): one padded (1,Hp,Wp,Cin_s) block per channel segment,
    weights (kh*kw, Cin_total, Cout), bias (1, Cout), optional padded residual
    (1,Hp,Wp,Cout); output block (1, th, W, Cout)."""
    n_seg = len(seg_cins)
    x_refs = refs[:n_seg]
    w_ref = refs[n_seg]            # resident weights, bf16
    b_ref = refs[n_seg + 1]        # f32 bias
    res_ref = refs[n_seg + 2] if has_res else None
    o_ref = refs[-1]

    hstart = pl.program_id(1) * th
    acc = jnp.zeros((th * W, cout), jnp.float32)

    # Fused im2col: accumulate kh*kw taps x n_seg channel segments on the MXU.
    for dy in range(kh):
        for dx in range(kw):
            t = dy * kw + dx
            coff = 0
            for s in range(n_seg):
                cin_s = seg_cins[s]
                win = x_refs[s][0,
                                pl.ds(hstart + dy + pad_off, th),
                                dx + pad_off:dx + pad_off + W, :]
                acc += jnp.dot(win.reshape(th * W, cin_s),
                               w_ref[t, coff:coff + cin_s, :],
                               preferred_element_type=jnp.float32)
                coff += cin_s

    # Epilogue: bias, ReLU, fused residual add, bf16 store.
    acc += b_ref[...]
    if relu:
        acc = jnp.maximum(acc, 0.0)
    if has_res:
        rwin = res_ref[0, pl.ds(hstart + 1, th), 1:1 + W, :]
        acc += rwin.reshape(th * W, cout).astype(jnp.float32)
    o_ref[...] = acc.reshape(1, th, W, cout).astype(o_ref.dtype)


def _pick_th(H, W):
    """Largest divisor of H such that the row-tile has ~<=512 output pixels."""
    limit = max(1, 512 // max(W, 1))
    for t in range(min(H, limit), 0, -1):
        if H % t == 0:
            return t
    return 1


@functools.partial(jax.jit, static_argnames=("relu",))
def _conv_call(xs, w, b, residual, relu):
    """xs: tuple of padded (N,H+2,W+2,Cin_s) bf16 segments (torch.cat order).
    w: (kh,kw,sum Cin_s,Cout) f32.  b: (Cout,) f32.
    residual: optional padded (N,H+2,W+2,Cout) bf16 added in the epilogue.
    Returns unpadded (N,H,W,Cout) bf16."""
    N, Hp, Wp, _ = xs[0].shape
    H, W = Hp - 2, Wp - 2
    kh, kw, cin_tot, cout = w.shape
    seg_cins = tuple(int(x.shape[-1]) for x in xs)
    assert sum(seg_cins) == cin_tot, (seg_cins, cin_tot)
    # Activations are stored with spatial pad=1 regardless of kernel size.
    pad_off = 1 - (kh - 1) // 2
    th = _pick_th(H, W)             # NOTE: W should be a multiple of 8 (true here)
    grid = (N, H // th)

    wk = w.astype(jnp.bfloat16).reshape(kh * kw, cin_tot, cout)
    bk = b.astype(jnp.float32).reshape(1, cout)

    in_specs = [pl.BlockSpec((1, Hp, Wp, c), lambda n, hb: (n, 0, 0, 0))
                for c in seg_cins]
    in_specs.append(pl.BlockSpec((kh * kw, cin_tot, cout), lambda n, hb: (0, 0, 0)))
    in_specs.append(pl.BlockSpec((1, cout), lambda n, hb: (0, 0)))
    operands = list(xs) + [wk, bk]

    has_res = residual is not None
    if has_res:
        in_specs.append(pl.BlockSpec((1, Hp, Wp, cout), lambda n, hb: (n, 0, 0, 0)))
        operands.append(residual)

    kernel = functools.partial(
        _conv_kernel, seg_cins=seg_cins, kh=kh, kw=kw, th=th, W=W, cout=cout,
        relu=relu, has_res=has_res, pad_off=pad_off)

    return pl.pallas_call(
        kernel,
        out_shape=jax.ShapeDtypeStruct((N, H, W, cout), jnp.bfloat16),
        grid=grid,
        in_specs=in_specs,
        out_specs=pl.BlockSpec((1, th, W, cout), lambda n, hb: (n, hb, 0, 0)),
        compiler_params=pltpu.CompilerParams(
            dimension_semantics=("parallel", "parallel")),
    )(*operands)


def conv2d_fused_pallas(xs_padded, w, b, relu=False, residual=None):
    xs = tuple(x.astype(jnp.bfloat16) for x in xs_padded)
    res = None if residual is None else residual.astype(jnp.bfloat16)
    return _conv_call(xs, w, b, res, relu=relu)


# ----------------------------------------------------------------------------
# Matched-precision pure-JAX reference (same bf16-in / f32-accumulate numerics)
# ----------------------------------------------------------------------------
def conv2d_fused_ref(xs_padded, w, b, relu=False, residual=None):
    x = jnp.concatenate([u[:, 1:-1, 1:-1, :] for u in xs_padded], axis=-1)
    out = lax.conv_general_dilated(
        x.astype(jnp.bfloat16), w.astype(jnp.bfloat16),
        window_strides=(1, 1), padding="SAME",
        dimension_numbers=("NHWC", "HWIO", "NHWC"),
        preferred_element_type=jnp.float32)
    out = out + b.astype(jnp.float32).reshape(1, 1, 1, -1)
    if relu:
        out = jnp.maximum(out, 0.0)
    if residual is not None:
        out = out + residual[:, 1:-1, 1:-1, :].astype(jnp.float32)
    return out.astype(jnp.bfloat16)


# ----------------------------------------------------------------------------
# Glue: spatial pad, pixel shuffle
# ----------------------------------------------------------------------------
def _pad(x):
    return jnp.pad(x, ((0, 0), (1, 1), (1, 1), (0, 0)))


def pixel_shuffle(x, r):
    """NHWC pixel shuffle with PyTorch channel semantics."""
    N, H, W, Crr = x.shape
    C = Crr // (r * r)
    x = x.reshape(N, H, W, C, r, r)
    x = jnp.transpose(x, (0, 1, 4, 2, 5, 3))
    return x.reshape(N, H * r, W * r, C)


# ----------------------------------------------------------------------------
# Parameters (deterministic synthetic init; shapes match the PyTorch module)
# ----------------------------------------------------------------------------
RDN_CONFIGS = {"A": (20, 6, 32), "B": (16, 8, 64)}


def _conv_params(key, kh, kw, cin, cout):
    kw_, kb = jax.random.split(key)
    std = 1.0 / math.sqrt(kh * kw * cin)
    w = jax.random.normal(kw_, (kh, kw, cin, cout), jnp.float32) * std
    b = jax.random.normal(kb, (cout,), jnp.float32) * 0.01
    return {"w": w, "b": b}


def init_rdn_params(key, num_in_ch, num_out_ch, upscale, num_feat, config):
    D, C, G = RDN_CONFIGS[config]
    G0 = num_feat
    r = upscale
    n_layers = 2 + D * (C + 1) + 2 + (3 if r == 4 else 2)
    keys = iter(jax.random.split(key, n_layers))
    p = {}
    p["sfe1"] = _conv_params(next(keys), 3, 3, num_in_ch, G0)
    p["sfe2"] = _conv_params(next(keys), 3, 3, G0, G0)
    rdbs = []
    for _ in range(D):
        convs = [_conv_params(next(keys), 3, 3, G0 + c * G, G) for c in range(C)]
        lff = _conv_params(next(keys), 1, 1, G0 + C * G, G0)
        rdbs.append({"convs": convs, "lff": lff})
    p["rdbs"] = rdbs
    p["gff1"] = _conv_params(next(keys), 1, 1, D * G0, G0)
    p["gff2"] = _conv_params(next(keys), 3, 3, G0, G0)
    if r in (2, 3):
        p["up1"] = _conv_params(next(keys), 3, 3, G0, G * r * r)
        p["up2"] = _conv_params(next(keys), 3, 3, G, num_out_ch)
    elif r == 4:
        p["up1"] = _conv_params(next(keys), 3, 3, G0, G * 4)
        p["up2"] = _conv_params(next(keys), 3, 3, G, G * 4)
        p["up3"] = _conv_params(next(keys), 3, 3, G, num_out_ch)
    else:
        raise ValueError("scale must be 2 or 3 or 4.")
    return p


# ----------------------------------------------------------------------------
# RDN forward (mirrors RDN.forward / RDB.forward / RDB_Conv.forward)
# All activations live as zero-padded NHWC bf16; convs consume lists of padded
# channel segments (the never-materialized torch.cat) and fuse residual adds.
# ----------------------------------------------------------------------------
def rdn_forward(params, x_nchw, upscale, config, conv_fn):
    D, C, G = RDN_CONFIGS[config]
    x = jnp.transpose(x_nchw, (0, 2, 3, 1)).astype(jnp.bfloat16)  # NCHW -> NHWC
    xp = _pad(x)

    f1 = conv_fn([xp], params["sfe1"]["w"], params["sfe1"]["b"])
    f1p = _pad(f1)
    x = conv_fn([f1p], params["sfe2"]["w"], params["sfe2"]["b"])
    xin_p = _pad(x)

    rdb_outs_p = []
    for i in range(D):
        blk = params["rdbs"][i]
        segs = [xin_p]                                   # torch.cat accumulator
        for c in range(C):
            out = conv_fn(segs, blk["convs"][c]["w"], blk["convs"][c]["b"],
                          relu=True)
            segs.append(_pad(out))
        # LFF (1x1) over the concatenation, residual add fused in the epilogue.
        xcur = conv_fn(segs, blk["lff"]["w"], blk["lff"]["b"], residual=xin_p)
        xin_p = _pad(xcur)
        rdb_outs_p.append(xin_p)

    # GFF: 1x1 over concat of all RDB outputs, then 3x3 with fused "+ f1".
    g = conv_fn(rdb_outs_p, params["gff1"]["w"], params["gff1"]["b"])
    g = conv_fn([_pad(g)], params["gff2"]["w"], params["gff2"]["b"],
                residual=f1p)
    xp = _pad(g)

    if upscale in (2, 3):
        u = conv_fn([xp], params["up1"]["w"], params["up1"]["b"])
        u = pixel_shuffle(u, upscale)
        out = conv_fn([_pad(u)], params["up2"]["w"], params["up2"]["b"])
    else:  # upscale == 4
        u = conv_fn([xp], params["up1"]["w"], params["up1"]["b"])
        u = pixel_shuffle(u, 2)
        u = conv_fn([_pad(u)], params["up2"]["w"], params["up2"]["b"])
        u = pixel_shuffle(u, 2)
        out = conv_fn([_pad(u)], params["up3"]["w"], params["up3"]["b"])

    return jnp.transpose(out, (0, 3, 1, 2)).astype(jnp.float32)  # NHWC -> NCHW


# ----------------------------------------------------------------------------
if __name__ == "__main__":
    key = jax.random.PRNGKey(0)
    pkey, xkey = jax.random.split(key)

    num_in_ch, num_out_ch, upscale, num_feat, config = 3, 3, 2, 32, "A"
    params = init_rdn_params(pkey, num_in_ch, num_out_ch, upscale, num_feat,
                             config)

    # small deterministic input (PyTorch NCHW convention)
    x = jax.random.normal(xkey, (2, num_in_ch, 16, 16), jnp.float32)

    out = rdn_forward(params, x, upscale, config, conv_fn=conv2d_fused_pallas)
    out = jax.block_until_ready(out)

    # correctness check against a matched-precision pure-JAX reference
    ref = rdn_forward(params, x, upscale, config, conv_fn=conv2d_fused_ref)
    ref = jax.block_until_ready(ref)

    assert out.shape == (2, num_out_ch, 16 * upscale, 16 * upscale), out.shape
    err = float(jnp.max(jnp.abs(out - ref)) / (jnp.max(jnp.abs(ref)) + 1e-6))
    assert err < 2e-2, f"Pallas vs reference mismatch: rel err {err}"

    print("KERNEL_OK")
</pallas_src>

<mosaic_0001>
module attributes {stable_mosaic.version = 11 : i64} {
  func.func @_conv_kernel(%arg0: i32, %arg1: i32, %arg2: memref<1x18x18x3xbf16, #tpu.memory_space<vmem>>, %arg3: memref<9x3x32xbf16, #tpu.memory_space<vmem>>, %arg4: memref<1x32xf32, #tpu.memory_space<vmem>>, %arg5: memref<1x16x16x32xbf16, #tpu.memory_space<vmem>>) attributes {dimension_semantics = [#tpu.dimension_semantics<parallel>, #tpu.dimension_semantics<parallel>], iteration_bounds = array<i64: 2, 1>, scalar_prefetch = 0 : i64, scratch_operands = 0 : i64, tpu.core_type = #tpu.core_type<tc>, window_params = [{transform_indices = @transform_0, window_bounds = array<i64: 1, 18, 18, 3>}, {pipeline_mode = #tpu.pipeline_mode<synchronous>, transform_indices = @transform_1, window_bounds = array<i64: 9, 3, 32>}, {pipeline_mode = #tpu.pipeline_mode<synchronous>, transform_indices = @transform_2, window_bounds = array<i64: 1, 32>}, {transform_indices = @transform_3, window_bounds = array<i64: 1, 16, 16, 32>}]} {
    %c16_i32 = arith.constant 16 : i32
    %0 = arith.muli %arg1, %c16_i32 : i32
    %cst = arith.constant 0.000000e+00 : f32
    %1 = vector.broadcast %cst : f32 to vector<256x32xf32>
    %c0_i32 = arith.constant 0 : i32
    %2 = arith.addi %0, %c0_i32 : i32
    %c0_i32_0 = arith.constant 0 : i32
    %3 = arith.addi %2, %c0_i32_0 : i32
    %c0 = arith.constant 0 : index
    %4 = arith.index_cast %3 : i32 to index
    %c0_1 = arith.constant 0 : index
    %c0_2 = arith.constant 0 : index
    %5 = vector.load %arg2[%c0, %4, %c0_1, %c0_2] : memref<1x18x18x3xbf16, #tpu.memory_space<vmem>>, vector<1x16x16x3xbf16>
    %6 = vector.shape_cast %5 : vector<1x16x16x3xbf16> to vector<16x16x3xbf16>
    %7 = vector.shape_cast %6 : vector<16x16x3xbf16> to vector<256x3xbf16>
    %c0_3 = arith.constant 0 : index
    %c0_4 = arith.constant 0 : index
    %c0_5 = arith.constant 0 : index
    %8 = vector.load %arg3[%c0_3, %c0_4, %c0_5] : memref<9x3x32xbf16, #tpu.memory_space<vmem>>, vector<1x3x32xbf16>
    %9 = vector.shape_cast %8 : vector<1x3x32xbf16> to vector<3x32xbf16>
    %cst_6 = arith.constant dense<0.000000e+00> : vector<256x32xf32>
    %10 = tpu.matmul %7, %9, %cst_6 {dimension_numbers = #tpu.dot_dimension_numbers<[1], [0], [0], [1], [0, 0, 1, 1], [], []>} : vector<256x3xbf16>, vector<3x32xbf16>, vector<256x32xf32> -> vector<256x32xf32>
    %11 = arith.addf %1, %10 : vector<256x32xf32>
    %c0_i32_7 = arith.constant 0 : i32
    %12 = arith.addi %0, %c0_i32_7 : i32
    %c0_i32_8 = arith.constant 0 : i32
    %13 = arith.addi %12, %c0_i32_8 : i32
    %c0_9 = arith.constant 0 : index
    %14 = arith.index_cast %13 : i32 to index
    %c1 = arith.constant 1 : index
    %c0_10 = arith.constant 0 : index
    %15 = vector.load %arg2[%c0_9, %14, %c1, %c0_10] : memref<1x18x18x3xbf16, #tpu.memory_space<vmem>>, vector<1x16x16x3xbf16>
    %16 = vector.shape_cast %15 : vector<1x16x16x3xbf16> to vector<16x16x3xbf16>
    %17 = vector.shape_cast %16 : vector<16x16x3xbf16> to vector<256x3xbf16>
    %c1_11 = arith.constant 1 : index
    %c0_12 = arith.constant 0 : index
    %c0_13 = arith.constant 0 : index
    %18 = vector.load %arg3[%c1_11, %c0_12, %c0_13] : memref<9x3x32xbf16, #tpu.memory_space<vmem>>, vector<1x3x32xbf16>
    %19 = vector.shape_cast %18 : vector<1x3x32xbf16> to vector<3x32xbf16>
    %cst_14 = arith.constant dense<0.000000e+00> : vector<256x32xf32>
    %20 = tpu.matmul %17, %19, %cst_14 {dimension_numbers = #tpu.dot_dimension_numbers<[1], [0], [0], [1], [0, 0, 1, 1], [], []>} : vector<256x3xbf16>, vector<3x32xbf16>, vector<256x32xf32> -> vector<256x32xf32>
    %21 = arith.addf %11, %20 : vector<256x32xf32>
    %c0_i32_15 = arith.constant 0 : i32
    %22 = arith.addi %0, %c0_i32_15 : i32
    %c0_i32_16 = arith.constant 0 : i32
    %23 = arith.addi %22, %c0_i32_16 : i32
    %c0_17 = arith.constant 0 : index
    %24 = arith.index_cast %23 : i32 to index
    %c2 = arith.constant 2 : index
    %c0_18 = arith.constant 0 : index
    %25 = vector.load %arg2[%c0_17, %24, %c2, %c0_18] : memref<1x18x18x3xbf16, #tpu.memory_space<vmem>>, vector<1x16x16x3xbf16>
    %26 = vector.shape_cast %25 : vector<1x16x16x3xbf16> to vector<16x16x3xbf16>
    %27 = vector.shape_cast %26 : vector<16x16x3xbf16> to vector<256x3xbf16>
    %c2_19 = arith.constant 2 : index
    %c0_20 = arith.constant 0 : index
    %c0_21 = arith.constant 0 : index
    %28 = vector.load %arg3[%c2_19, %c0_20, %c0_21] : memref<9x3x32xbf16, #tpu.memory_space<vmem>>, vector<1x3x32xbf16>
    %29 = vector.shape_cast %28 : vector<1x3x32xbf16> to vector<3x32xbf16>
    %cst_22 = arith.constant dense<0.000000e+00> : vector<256x32xf32>
    %30 = tpu.matmul %27, %29, %cst_22 {dimension_numbers = #tpu.dot_dimension_numbers<[1], [0], [0], [1], [0, 0, 1, 1], [], []>} : vector<256x3xbf16>, vector<3x32xbf16>, vector<256x32xf32> -> vector<256x32xf32>
    %31 = arith.addf %21, %30 : vector<256x32xf32>
    %c1_i32 = arith.constant 1 : i32
    %32 = arith.addi %0, %c1_i32 : i32
    %c0_i32_23 = arith.constant 0 : i32
    %33 = arith.addi %32, %c0_i32_23 : i32
    %c0_24 = arith.constant 0 : index
    %34 = arith.index_cast %33 : i32 to index
    %c0_25 = arith.constant 0 : index
    %c0_26 = arith.constant 0 : index
    %35 = vector.load %arg2[%c0_24, %34, %c0_25, %c0_26] : memref<1x18x18x3xbf16, #tpu.memory_space<vmem>>, vector<1x16x16x3xbf16>
    %36 = vector.shape_cast %35 : vector<1x16x16x3xbf16> to vector<16x16x3xbf16>
    %37 = vector.shape_cast %36 : vector<16x16x3xbf16> to vector<256x3xbf16>
    %c3 = arith.constant 3 : index
    %c0_27 = arith.constant 0 : index
    %c0_28 = arith.constant 0 : index
    %38 = vector.load %arg3[%c3, %c0_27, %c0_28] : memref<9x3x32xbf16, #tpu.memory_space<vmem>>, vector<1x3x32xbf16>
    %39 = vector.shape_cast %38 : vector<1x3x32xbf16> to vector<3x32xbf16>
    %cst_29 = arith.constant dense<0.000000e+00> : vector<256x32xf32>
    %40 = tpu.matmul %37, %39, %cst_29 {dimension_numbers = #tpu.dot_dimension_numbers<[1], [0], [0], [1], [0, 0, 1, 1], [], []>} : vector<256x3xbf16>, vector<3x32xbf16>, vector<256x32xf32> -> vector<256x32xf32>
    %41 = arith.addf %31, %40 : vector<256x32xf32>
    %c1_i32_30 = arith.constant 1 : i32
    %42 = arith.addi %0, %c1_i32_30 : i32
    %c0_i32_31 = arith.constant 0 : i32
    %43 = arith.addi %42, %c0_i32_31 : i32
    %c0_32 = arith.constant 0 : index
    %44 = arith.index_cast %43 : i32 to index
    %c1_33 = arith.constant 1 : index
    %c0_34 = arith.constant 0 : index
    %45 = vector.load %arg2[%c0_32, %44, %c1_33, %c0_34] : memref<1x18x18x3xbf16, #tpu.memory_space<vmem>>, vector<1x16x16x3xbf16>
    %46 = vector.shape_cast %45 : vector<1x16x16x3xbf16> to vector<16x16x3xbf16>
    %47 = vector.shape_cast %46 : vector<16x16x3xbf16> to vector<256x3xbf16>
    %c4 = arith.constant 4 : index
    %c0_35 = arith.constant 0 : index
    %c0_36 = arith.constant 0 : index
    %48 = vector.load %arg3[%c4, %c0_35, %c0_36] : memref<9x3x32xbf16, #tpu.memory_space<vmem>>, vector<1x3x32xbf16>
    %49 = vector.shape_cast %48 : vector<1x3x32xbf16> to vector<3x32xbf16>
    %cst_37 = arith.constant dense<0.000000e+00> : vector<256x32xf32>
    %50 = tpu.matmul %47, %49, %cst_37 {dimension_numbers = #tpu.dot_dimension_numbers<[1], [0], [0], [1], [0, 0, 1, 1], [], []>} : vector<256x3xbf16>, vector<3x32xbf16>, vector<256x32xf32> -> vector<256x32xf32>
    %51 = arith.addf %41, %50 : vector<256x32xf32>
    %c1_i32_38 = arith.constant 1 : i32
    %52 = arith.addi %0, %c1_i32_38 : i32
    %c0_i32_39 = arith.constant 0 : i32
    %53 = arith.addi %52, %c0_i32_39 : i32
    %c0_40 = arith.constant 0 : index
    %54 = arith.index_cast %53 : i32 to index
    %c2_41 = arith.constant 2 : index
    %c0_42 = arith.constant 0 : index
    %55 = vector.load %arg2[%c0_40, %54, %c2_41, %c0_42] : memref<1x18x18x3xbf16, #tpu.memory_space<vmem>>, vector<1x16x16x3xbf16>
    %56 = vector.shape_cast %55 : vector<1x16x16x3xbf16> to vector<16x16x3xbf16>
    %57 = vector.shape_cast %56 : vector<16x16x3xbf16> to vector<256x3xbf16>
    %c5 = arith.constant 5 : index
    %c0_43 = arith.constant 0 : index
    %c0_44 = arith.constant 0 : index
    %58 = vector.load %arg3[%c5, %c0_43, %c0_44] : memref<9x3x32xbf16, #tpu.memory_space<vmem>>, vector<1x3x32xbf16>
    %59 = vector.shape_cast %58 : vector<1x3x32xbf16> to vector<3x32xbf16>
    %cst_45 = arith.constant dense<0.000000e+00> : vector<256x32xf32>
    %60 = tpu.matmul %57, %59, %cst_45 {dimension_numbers = #tpu.dot_dimension_numbers<[1], [0], [0], [1], [0, 0, 1, 1], [], []>} : vector<256x3xbf16>, vector<3x32xbf16>, vector<256x32xf32> -> vector<256x32xf32>
    %61 = arith.addf %51, %60 : vector<256x32xf32>
    %c2_i32 = arith.constant 2 : i32
    %62 = arith.addi %0, %c2_i32 : i32
    %c0_i32_46 = arith.constant 0 : i32
    %63 = arith.addi %62, %c0_i32_46 : i32
    %c0_47 = arith.constant 0 : index
    %64 = arith.index_cast %63 : i32 to index
    %c0_48 = arith.constant 0 : index
    %c0_49 = arith.constant 0 : index
    %65 = vector.load %arg2[%c0_47, %64, %c0_48, %c0_49] : memref<1x18x18x3xbf16, #tpu.memory_space<vmem>>, vector<1x16x16x3xbf16>
    %66 = vector.shape_cast %65 : vector<1x16x16x3xbf16> to vector<16x16x3xbf16>
    %67 = vector.shape_cast %66 : vector<16x16x3xbf16> to vector<256x3xbf16>
    %c6 = arith.constant 6 : index
    %c0_50 = arith.constant 0 : index
    %c0_51 = arith.constant 0 : index
    %68 = vector.load %arg3[%c6, %c0_50, %c0_51] : memref<9x3x32xbf16, #tpu.memory_space<vmem>>, vector<1x3x32xbf16>
    %69 = vector.shape_cast %68 : vector<1x3x32xbf16> to vector<3x32xbf16>
    %cst_52 = arith.constant dense<0.000000e+00> : vector<256x32xf32>
    %70 = tpu.matmul %67, %69, %cst_52 {dimension_numbers = #tpu.dot_dimension_numbers<[1], [0], [0], [1], [0, 0, 1, 1], [], []>} : vector<256x3xbf16>, vector<3x32xbf16>, vector<256x32xf32> -> vector<256x32xf32>
    %71 = arith.addf %61, %70 : vector<256x32xf32>
    %c2_i32_53 = arith.constant 2 : i32
    %72 = arith.addi %0, %c2_i32_53 : i32
    %c0_i32_54 = arith.constant 0 : i32
    %73 = arith.addi %72, %c0_i32_54 : i32
    %c0_55 = arith.constant 0 : index
    %74 = arith.index_cast %73 : i32 to index
    %c1_56 = arith.constant 1 : index
    %c0_57 = arith.constant 0 : index
    %75 = vector.load %arg2[%c0_55, %74, %c1_56, %c0_57] : memref<1x18x18x3xbf16, #tpu.memory_space<vmem>>, vector<1x16x16x3xbf16>
    %76 = vector.shape_cast %75 : vector<1x16x16x3xbf16> to vector<16x16x3xbf16>
    %77 = vector.shape_cast %76 : vector<16x16x3xbf16> to vector<256x3xbf16>
    %c7 = arith.constant 7 : index
    %c0_58 = arith.constant 0 : index
    %c0_59 = arith.constant 0 : index
    %78 = vector.load %arg3[%c7, %c0_58, %c0_59] : memref<9x3x32xbf16, #tpu.memory_space<vmem>>, vector<1x3x32xbf16>
    %79 = vector.shape_cast %78 : vector<1x3x32xbf16> to vector<3x32xbf16>
    %cst_60 = arith.constant dense<0.000000e+00> : vector<256x32xf32>
    %80 = tpu.matmul %77, %79, %cst_60 {dimension_numbers = #tpu.dot_dimension_numbers<[1], [0], [0], [1], [0, 0, 1, 1], [], []>} : vector<256x3xbf16>, vector<3x32xbf16>, vector<256x32xf32> -> vector<256x32xf32>
    %81 = arith.addf %71, %80 : vector<256x32xf32>
    %c2_i32_61 = arith.constant 2 : i32
    %82 = arith.addi %0, %c2_i32_61 : i32
    %c0_i32_62 = arith.constant 0 : i32
    %83 = arith.addi %82, %c0_i32_62 : i32
    %c0_63 = arith.constant 0 : index
    %84 = arith.index_cast %83 : i32 to index
    %c2_64 = arith.constant 2 : index
    %c0_65 = arith.constant 0 : index
    %85 = vector.load %arg2[%c0_63, %84, %c2_64, %c0_65] : memref<1x18x18x3xbf16, #tpu.memory_space<vmem>>, vector<1x16x16x3xbf16>
    %86 = vector.shape_cast %85 : vector<1x16x16x3xbf16> to vector<16x16x3xbf16>
    %87 = vector.shape_cast %86 : vector<16x16x3xbf16> to vector<256x3xbf16>
    %c8 = arith.constant 8 : index
    %c0_66 = arith.constant 0 : index
    %c0_67 = arith.constant 0 : index
    %88 = vector.load %arg3[%c8, %c0_66, %c0_67] : memref<9x3x32xbf16, #tpu.memory_space<vmem>>, vector<1x3x32xbf16>
    %89 = vector.shape_cast %88 : vector<1x3x32xbf16> to vector<3x32xbf16>
    %cst_68 = arith.constant dense<0.000000e+00> : vector<256x32xf32>
    %90 = tpu.matmul %87, %89, %cst_68 {dimension_numbers = #tpu.dot_dimension_numbers<[1], [0], [0], [1], [0, 0, 1, 1], [], []>} : vector<256x3xbf16>, vector<3x32xbf16>, vector<256x32xf32> -> vector<256x32xf32>
    %91 = arith.addf %81, %90 : vector<256x32xf32>
    %c0_69 = arith.constant 0 : index
    %c0_70 = arith.constant 0 : index
    %92 = vector.load %arg4[%c0_69, %c0_70] : memref<1x32xf32, #tpu.memory_space<vmem>>, vector<1x32xf32>
    %93 = vector.broadcast %92 : vector<1x32xf32> to vector<256x32xf32>
    %94 = arith.addf %91, %93 : vector<256x32xf32>
    %95 = vector.shape_cast %94 : vector<256x32xf32> to vector<1x16x16x32xf32>
    %96 = arith.truncf %95 : vector<1x16x16x32xf32> to vector<1x16x16x32xbf16>
    %c0_71 = arith.constant 0 : index
    %c0_72 = arith.constant 0 : index
    %c0_73 = arith.constant 0 : index
    %c0_74 = arith.constant 0 : index
    %97 = vector.load %arg5[%c0_71, %c0_72, %c0_73, %c0_74] : memref<1x16x16x32xbf16, #tpu.memory_space<vmem>>, vector<1x16x16x32xbf16>
    tpu.vector_store %arg5[%c0_71, %c0_72, %c0_73, %c0_74], %96 {strides = array<i32>} : memref<1x16x16x32xbf16, #tpu.memory_space<vmem>>, vector<1x16x16x32xbf16>,
    return
  }
  func.func @transform_0(%arg0: i32, %arg1: i32) -> (i32, i32, i32, i32) {
    %c0_i32 = arith.constant 0 : i32
    %c0_i32_0 = arith.constant 0 : i32
    %c0_i32_1 = arith.constant 0 : i32
    %c0_i32_2 = arith.constant 0 : i32
    return %arg0, %c0_i32, %c0_i32_0, %c0_i32_1 : i32, i32, i32, i32
  }
  func.func @transform_1(%arg0: i32, %arg1: i32) -> (i32, i32, i32) {
    %c0_i32 = arith.constant 0 : i32
    %c0_i32_0 = arith.constant 0 : i32
    %c0_i32_1 = arith.constant 0 : i32
    %c0_i32_2 = arith.constant 0 : i32
    return %c0_i32, %c0_i32_0, %c0_i32_1 : i32, i32, i32
  }
  func.func @transform_2(%arg0: i32, %arg1: i32) -> (i32, i32) {
    %c0_i32 = arith.constant 0 : i32
    %c0_i32_0 = arith.constant 0 : i32
    %c0_i32_1 = arith.constant 0 : i32
    return %c0_i32, %c0_i32_0 : i32, i32
  }
  func.func @transform_3(%arg0: i32, %arg1: i32) -> (i32, i32, i32, i32) {
    %c0_i32 = arith.constant 0 : i32
    %c0_i32_0 = arith.constant 0 : i32
    %c0_i32_1 = arith.constant 0 : i32
    return %arg0, %arg1, %c0_i32, %c0_i32_0 : i32, i32, i32, i32
  }
}

</mosaic_0001>

<llo_original>
// kernel: _conv_call.1
$region0: #{_conv_call.1}
  #allocation0 [shape = 'u32[]', space=smem, size = 0x4, offset = 0x4, fixed_abs, tag = 'smem constant byte address 0x4 - core index']
  #allocation1 [shape = 'u32[144,128]{1,0:T(1,128)}', space=vmem, size = 0x12000, scoped, tag = 'internal scratch']
  %s0 = inlined_call_operand.vmem [shape: bf16[2,18,18,3], index: 0, kind: input, shape index: {}]
  %s1 = inlined_call_operand.vmem [shape: bf16[9,3,32], index: 1, kind: input, shape index: {}]
  %s2 = inlined_call_operand.vmem [shape: f32[1,32], index: 2, kind: input, shape index: {}]
  %s3 = inlined_call_operand.hbm [shape: bf16[2,16,16,32], index: 3, kind: output, shape index: {}]
  %s4 = sld [smem:[#allocation0]]
  $region45: #{_conv_call.1} parent=0
    _
  %s6 = ssub.s32 1, %s4
  %s7 = scalar_select 0, %s6, %s4
  $region1: #{_conv_call.1} parent=0
    #allocation2 [shape = 'u8[131072]{0}', space=vmem, size = 0x20000, scoped, tag = 'output window, operand 0']
    #allocation3 [shape = 's32[2]{0}', space=sflag, size = 0x8, scoped, tag = 'scoped memory for _conv_call.1']
    %8 = vsyncpa [#allocation3], 0
    %s9 = scalar_lea.sflag [#allocation3], 1
    %10 = vsyncpa %s9, 0
    loop: start=0, step=1, limit=4
    $region2: #{_conv_call.1} parent=1 // loop_pre_header
      _
    $region3: #{_conv_call.1} parent=1 // loop_header
      %s12 = sphi 0, %s16
      %p13 = scmp.ge.s32.totalorder %s12, 4
      %s19 = sphi 0, %s31
      %s20 = sphi 0, %s27
      %s21 = sphi 0, %s19
      %s22 = sphi 0, %s20
      %s23 = sphi 0, %s21
      %s24 = sphi 0, %s22
      %s34 = sphi 0, %s36
      %s37 = sphi 0, %s34
      %s38 = sphi 0, %s37
      %s54 = sphi 0, %s38
      %s58 = sphi 0, %s58
      %s60 = sphi 0, %s58
      %s61 = sphi 0, %s60
      %s75 = sphi 0, %s61
      %s79 = sphi 0, %s79
      %s81 = sphi 0, %s79
      %s82 = sphi 0, %s81
      %s96 = sphi 0, %s82
      %s104 = sphi 0, %s106
      %s107 = sphi 0, %s104
      %s108 = sphi 0, %s107
      %s124 = sphi 0, %s108
    $region4: #{_conv_call.1} parent=1 // loop_header_branch
      %15 = sbr.rel (%p13) target = $region8
    $region5: #{_conv_call.1} parent=1 // loop_body
      %s17 = ssub.s32 %s12, 1
      %s18 = ssub.s32 %s12, 2
      %s25 = sadd.s32 1, %s20
      %p26 = scmp.ge.s32.totalorder %s25, 1
      %s27 = scalar_select %p26, 0, %s25
      %s28 = sadd.s32 1, %s19
      %s29 = scalar_select %p26, %s28, %s19
      %p30 = scmp.ge.s32.totalorder %s29, 2
      %s31 = scalar_select %p30, 0, %s29
      %s32 = ssub.s32 %s19, %s31
      %p33 = scmp.eq.s32.totalorder %s32, 0
      %s35 = sadd.s32 %s34, 1
      %s36 = scalar_select %p33, %s34, %s35
      %p39 = pneg %p33
      %p40 = scmp.eq.s32.totalorder %s12, 1
      %p41 = por %p39, %p40
      %p42 = scmp.ne.s32.totalorder %s34, %s37
      %p43 = scmp.eq.s32.totalorder %s12, 0
      %p44 = por %p42, %p43
      %p45 = scmp.ne.s32.totalorder %s34, %s37
      %p46 = scmp.eq.s32.totalorder %s17, 1
      %p47 = por %p45, %p46
      %p48 = scmp.ne.s32.totalorder %s37, %s38
      %p49 = scmp.eq.s32.totalorder %s17, 0
      %p50 = por %p48, %p49
      %p51 = scmp.ne.s32.totalorder %s37, %s38
      %p52 = scmp.eq.s32.totalorder %s18, 1
      %p53 = por %p51, %p52
      %p55 = scmp.ne.s32.totalorder %s38, %s54
      %p56 = scmp.eq.s32.totalorder %s18, 0
      %p57 = por %p55, %p56
      %s59 = sadd.s32 %s58, 1
      %p62 = scmp.eq.s32.totalorder %s12, 1
      %p63 = scmp.ne.s32.totalorder %s58, %s60
      %p64 = scmp.eq.s32.totalorder %s12, 0
      %p65 = por %p63, %p64
      %p66 = scmp.ne.s32.totalorder %s58, %s60
      %p67 = scmp.eq.s32.totalorder %s17, 1
      %p68 = por %p66, %p67
      %p69 = scmp.ne.s32.totalorder %s60, %s61
      %p70 = scmp.eq.s32.totalorder %s17, 0
      %p71 = por %p69, %p70
      %p72 = scmp.ne.s32.totalorder %s60, %s61
      %p73 = scmp.eq.s32.totalorder %s18, 1
      %p74 = por %p72, %p73
      %p76 = scmp.ne.s32.totalorder %s61, %s75
      %p77 = scmp.eq.s32.totalorder %s18, 0
      %p78 = por %p76, %p77
      %s80 = sadd.s32 %s79, 1
      %p83 = scmp.eq.s32.totalorder %s12, 1
      %p84 = scmp.ne.s32.totalorder %s79, %s81
      %p85 = scmp.eq.s32.totalorder %s12, 0
      %p86 = por %p84, %p85
      %p87 = scmp.ne.s32.totalorder %s79, %s81
      %p88 = scmp.eq.s32.totalorder %s17, 1
      %p89 = por %p87, %p88
      %p90 = scmp.ne.s32.totalorder %s81, %s82
      %p91 = scmp.eq.s32.totalorder %s17, 0
      %p92 = por %p90, %p91
      %p93 = scmp.ne.s32.totalorder %s81, %s82
      %p94 = scmp.eq.s32.totalorder %s18, 1
      %p95 = por %p93, %p94
      %p97 = scmp.ne.s32.totalorder %s82, %s96
      %p98 = scmp.eq.s32.totalorder %s18, 0
      %p99 = por %p97, %p98
      %s100 = ssub.s32 %s19, %s31
      %s101 = ssub.s32 %s20, %s27
      %s102 = sor.u32 %s100, %s101
      %p103 = scmp.eq.s32.totalorder %s102, 0
      %s105 = sadd.s32 %s104, 1
      %s106 = scalar_select %p103, %s104, %s105
      %p109 = pneg %p103
      %p110 = scmp.eq.s32.totalorder %s12, 1
      %p111 = por %p109, %p110
      %p112 = scmp.ne.s32.totalorder %s104, %s107
      %p113 = scmp.eq.s32.totalorder %s12, 0
      %p114 = por %p112, %p113
      %p115 = scmp.ne.s32.totalorder %s104, %s107
      %p116 = scmp.eq.s32.totalorder %s17, 1
      %p117 = por %p115, %p116
      %p118 = scmp.ne.s32.totalorder %s107, %s108
      %p119 = scmp.eq.s32.totalorder %s17, 0
      %p120 = por %p118, %p119
      %p121 = scmp.ne.s32.totalorder %s107, %s108
      %p122 = scmp.eq.s32.totalorder %s18, 1
      %p123 = por %p121, %p122
      %p125 = scmp.ne.s32.totalorder %s108, %s124
      %p126 = scmp.eq.s32.totalorder %s18, 0
      %p127 = por %p125, %p126
      %p128 = scmp.le.s32.totalorder 1, %s12
      %p129 = scmp.lt.s32.totalorder %s12, 3
      %p130 = pnand %p128, %p129
      %p131 = pneg %p130
      // Predicated region
      $region9: #{_conv_call.1} parent=5 // pred_check
        _
      $region10: #{_conv_call.1} parent=5 // pred_check_branch
        %133 = sbr.rel (%p130) target = $region12
      $region11: #{_conv_call.1} parent=5 // pred_region
        %s134 = ssub.s32 %s12, 1
        // Predicated region
        $region13: #{_conv_call.1} parent=11 // pred_check
          %p135 = pneg %p71
        $region14: #{_conv_call.1} parent=11 // pred_check_branch
          %137 = sbr.rel (%p135) target = $region16
        $region15: #{_conv_call.1} parent=11 // pred_region
          _
        $region16: #{_conv_call.1} parent=11 // pred_fallthru
          _
        // Predicated region
        $region17: #{_conv_call.1} parent=11 // pred_check
          %p138 = pneg %p92
        $region18: #{_conv_call.1} parent=11 // pred_check_branch
          %140 = sbr.rel (%p138) target = $region20
        $region19: #{_conv_call.1} parent=11 // pred_region
          _
        $region20: #{_conv_call.1} parent=11 // pred_fallthru
          _
      $region12: #{_conv_call.1} parent=5 // pred_fallthru
        _
      %p141 = scmp.lt.s32.totalorder %s12, 2
      // Predicated region
      $region21: #{_conv_call.1} parent=5 // pred_check
        %p142 = pneg %p141
      $region22: #{_conv_call.1} parent=5 // pred_check_branch
        %144 = sbr.rel (%p142) target = $region24
      $region23: #{_conv_call.1} parent=5 // pred_region
        // Predicated region
        $region25: #{_conv_call.1} parent=23 // pred_check
          %p145 = pneg %p44
        $region26: #{_conv_call.1} parent=23 // pred_check_branch
          %147 = sbr.rel (%p145) target = $region28
        $region27: #{_conv_call.1} parent=23 // pred_region
          %p148 = scmp.lt.s32.totalorder %s19, 1
          %s149 = scalar_select %p148, %s19, 1
          %s150 = smul.addr %s149, 54
          %s151 = smul.addr %s150, 4
          %s152 = scalar_lea.vmem %s0, %s151
        $region28: #{_conv_call.1} parent=23 // pred_fallthru
          _
      $region24: #{_conv_call.1} parent=5 // pred_fallthru
        _
      %p153 = scmp.le.s32.totalorder 1, %s12
      %p154 = scmp.lt.s32.totalorder %s12, 3
      %p155 = pnand %p153, %p154
      %p156 = pneg %p155
      // Predicated region
      $region29: #{_conv_call.1} parent=5 // pred_check
        _
      $region30: #{_conv_call.1} parent=5 // pred_check_branch
        %158 = sbr.rel (%p155) target = $region32
      $region31: #{_conv_call.1} parent=5 // pred_region
        %s159 = ssub.s32 %s12, 1
        %p160 = scmp.lt.s32.totalorder %s21, 1
        %s161 = scalar_select %p160, %s21, 1
        %s162 = smul.addr %s161, 54
        %s163 = smul.addr %s162, 4
        %s164 = scalar_lea.vmem %s0, %s163
        %p165 = pneg %p50
        %p166 = pneg %p47
        %p167 = pneg %p71
        %p168 = pneg %p68
        %p169 = pneg %p92
        %p170 = pneg %p89
        %p171 = pneg %p120
        %p172 = pneg %p117
        %s173 = sand.u32 %s107, 1
        %s174 = scalar_lea.sflag [#allocation3], %s173
        %s175 = sand.u32 %s107, 1
        %s176 = smul.addr %s175, 128
        %s177 = scalar_lea.vmem [#allocation2], %s176
        %p178 = scmp.lt.s32.totalorder %s21, 1
        %s179 = scalar_select %p178, %s21, 1
        %s180 = smul.addr %s179, 54
        %s181 = smul.addr %s180, 4
        %s182 = scalar_lea.vmem %s0, %s181
        %s183 = smul.u32 16, %s22
        %s185 = smul.u32 %s22, 16
        %s186 = smul.u32 %s185, 3
        %s187 = smul.addr %s186, 4
        %s188 = scalar_lea.vmem %s182, %s187
        %v189 = vld [vmem:[%s188] sm:$0xf]
        %v190 = vld [vmem:[%s188 + $0x4] sm:$0xf]
        %v191 = vld [vmem:[%s188 + $0xc] sm:$0xf]
        %v192 = vld [vmem:[%s188 + $0x10] sm:$0xf]
        %v193 = vld [vmem:[%s188 + $0x18] sm:$0xf]
        %v194 = vld [vmem:[%s188 + $0x1c] sm:$0xf]
        %v195 = vld [vmem:[%s188 + $0x24] sm:$0xf]
        %v196 = vld [vmem:[%s188 + $0x28] sm:$0xf]
        %v197 = vld [vmem:[%s188 + $0x30] sm:$0xf]
        %v198 = vld [vmem:[%s188 + $0x34] sm:$0xf]
        %v199 = vld [vmem:[%s188 + $0x3c] sm:$0xf]
        %v200 = vld [vmem:[%s188 + $0x40] sm:$0xf]
        %v201 = vld [vmem:[%s188 + $0x48] sm:$0xf]
        %v202 = vld [vmem:[%s188 + $0x4c] sm:$0xf]
        %v203 = vld [vmem:[%s188 + $0x54] sm:$0xf]
        %v204 = vld [vmem:[%s188 + $0x58] sm:$0xf]
        %v205 = vld [vmem:[%s188 + $0x60] sm:$0xf]
        %v206 = vld [vmem:[%s188 + $0x64] sm:$0xf]
        %v207 = vld [vmem:[%s188 + $0x6c] sm:$0xf]
        %v208 = vld [vmem:[%s188 + $0x70] sm:$0xf]
        %v209 = vld [vmem:[%s188 + $0x78] sm:$0xf]
        %v210 = vld [vmem:[%s188 + $0x7c] sm:$0xf]
        %v211 = vld [vmem:[%s188 + $0x84] sm:$0xf]
        %v212 = vld [vmem:[%s188 + $0x88] sm:$0xf]
        %v213 = vld [vmem:[%s188 + $0x90] sm:$0xf]
        %v214 = vld [vmem:[%s188 + $0x94] sm:$0xf]
        %v215 = vld [vmem:[%s188 + $0x9c] sm:$0xf]
        %v216 = vld [vmem:[%s188 + $0xa0] sm:$0xf]
        %v217 = vld [vmem:[%s188 + $0xa8] sm:$0xf]
        %v218 = vld [vmem:[%s188 + $0xac] sm:$0xf]
        %v219 = vld [vmem:[%s188 + $0xb4] sm:$0xf]
        %v220 = vld [vmem:[%s188 + $0xb8] sm:$0xf]
        %v221 = vld [vmem:[%s1] sm:$0x3]
        %v222 = vld [vmem:[%s188 + $0x8] sm:$0x1]
        %v223 = vld [vmem:[%s188 + $0x14] sm:$0x1]
        %v224 = vld [vmem:[%s188 + $0x20] sm:$0x1]
        %v225 = vld [vmem:[%s188 + $0x2c] sm:$0x1]
        %v226 = vld [vmem:[%s188 + $0x38] sm:$0x1]
        %v227 = vld [vmem:[%s188 + $0x44] sm:$0x1]
        %v228 = vld [vmem:[%s188 + $0x50] sm:$0x1]
        %v229 = vld [vmem:[%s188 + $0x5c] sm:$0x1]
        %v230 = vld [vmem:[%s188 + $0x68] sm:$0x1]
        %v231 = vld [vmem:[%s188 + $0x74] sm:$0x1]
        %v232 = vld [vmem:[%s188 + $0x80] sm:$0x1]
        %v233 = vld [vmem:[%s188 + $0x8c] sm:$0x1]
        %v234 = vld [vmem:[%s188 + $0x98] sm:$0x1]
        %v235 = vld [vmem:[%s188 + $0xa4] sm:$0x1]
        %v236 = vld [vmem:[%s188 + $0xb0] sm:$0x1]
        %v237 = vld [vmem:[%s188 + $0xbc] sm:$0x1]
        %vm238 = vsmask.f32 3328
        %vm239 = vsmask.f32 7440
        %vm240 = vmor %vm238, %vm239
        %v242 = vshrl.u32 %v189, 16
        %v244 = vrot.slane %v242, 4
        %v245 = vshll.u32 %v189, 16
        %v247 = vrot.slane %v245, 5
        %v248 = vor.u32 %v244, %v247
        %v249 = vrot.slane %v248, 4
        %v251 = vshll.u32 %v190, 16
        %v253 = vrot.slane %v251, 5
        %v254 = vsel %vm240, %v249, %v253
        %v255 = vshrl.u32 %v190, 16
        %v257 = vrot.slane %v255, 4
        %v258 = vor.u32 %v257, %v253
        %v259 = vrot.slane %v258, 4
        %v261 = vshll.u32 %v222, 16
        %v263 = vrot.slane %v261, 5
        %v264 = vsel %vm240, %v259, %v263
        %v266 = vshrl.u32 %v191, 16
        %v268 = vrot.slane %v266, 4
        %v269 = vshll.u32 %v191, 16
        %v271 = vrot.slane %v269, 5
        %v272 = vor.u32 %v268, %v271
        %v273 = vrot.slane %v272, 4
        %v275 = vshll.u32 %v192, 16
        %v277 = vrot.slane %v275, 5
        %v278 = vsel %vm240, %v273, %v277
        %v279 = vshrl.u32 %v192, 16
        %v281 = vrot.slane %v279, 4
        %v282 = vor.u32 %v281, %v277
        %v283 = vrot.slane %v282, 4
        %v285 = vshll.u32 %v223, 16
        %v287 = vrot.slane %v285, 5
        %v288 = vsel %vm240, %v283, %v287
        %v290 = vshrl.u32 %v193, 16
        %v292 = vrot.slane %v290, 4
        %v293 = vshll.u32 %v193, 16
        %v295 = vrot.slane %v293, 5
        %v296 = vor.u32 %v292, %v295
        %v297 = vrot.slane %v296, 4
        %v299 = vshll.u32 %v194, 16
        %v301 = vrot.slane %v299, 5
        %v302 = vsel %vm240, %v297, %v301
        %v303 = vshrl.u32 %v194, 16
        %v305 = vrot.slane %v303, 4
        %v306 = vor.u32 %v305, %v301
        %v307 = vrot.slane %v306, 4
        %v309 = vshll.u32 %v224, 16
        %v311 = vrot.slane %v309, 5
        %v312 = vsel %vm240, %v307, %v311
        %v314 = vshrl.u32 %v195, 16
        %v316 = vrot.slane %v314, 4
        %v317 = vshll.u32 %v195, 16
        %v319 = vrot.slane %v317, 5
        %v320 = vor.u32 %v316, %v319
        %v321 = vrot.slane %v320, 4
        %v323 = vshll.u32 %v196, 16
        %v325 = vrot.slane %v323, 5
        %v326 = vsel %vm240, %v321, %v325
        %v327 = vshrl.u32 %v196, 16
        %v329 = vrot.slane %v327, 4
        %v330 = vor.u32 %v329, %v325
        %v331 = vrot.slane %v330, 4
        %v333 = vshll.u32 %v225, 16
        %v335 = vrot.slane %v333, 5
        %v336 = vsel %vm240, %v331, %v335
        %v338 = vshrl.u32 %v197, 16
        %v340 = vrot.slane %v338, 4
        %v341 = vshll.u32 %v197, 16
        %v343 = vrot.slane %v341, 5
        %v344 = vor.u32 %v340, %v343
        %v345 = vrot.slane %v344, 4
        %v347 = vshll.u32 %v198, 16
        %v349 = vrot.slane %v347, 5
        %v350 = vsel %vm240, %v345, %v349
        %v351 = vshrl.u32 %v198, 16
        %v353 = vrot.slane %v351, 4
        %v354 = vor.u32 %v353, %v349
        %v355 = vrot.slane %v354, 4
        %v357 = vshll.u32 %v226, 16
        %v359 = vrot.slane %v357, 5
        %v360 = vsel %vm240, %v355, %v359
        %v362 = vshrl.u32 %v199, 16
        %v364 = vrot.slane %v362, 4
        %v365 = vshll.u32 %v199, 16
        %v367 = vrot.slane %v365, 5
        %v368 = vor.u32 %v364, %v367
        %v369 = vrot.slane %v368, 4
        %v371 = vshll.u32 %v200, 16
        %v373 = vrot.slane %v371, 5
        %v374 = vsel %vm240, %v369, %v373
        %v375 = vshrl.u32 %v200, 16
        %v377 = vrot.slane %v375, 4
        %v378 = vor.u32 %v377, %v373
        %v379 = vrot.slane %v378, 4
        %v381 = vshll.u32 %v227, 16
        %v383 = vrot.slane %v381, 5
        %v384 = vsel %vm240, %v379, %v383
        %v386 = vshrl.u32 %v201, 16
        %v388 = vrot.slane %v386, 4
        %v389 = vshll.u32 %v201, 16
        %v391 = vrot.slane %v389, 5
        %v392 = vor.u32 %v388, %v391
        %v393 = vrot.slane %v392, 4
        %v395 = vshll.u32 %v202, 16
        %v397 = vrot.slane %v395, 5
        %v398 = vsel %vm240, %v393, %v397
        %v399 = vshrl.u32 %v202, 16
        %v401 = vrot.slane %v399, 4
        %v402 = vor.u32 %v401, %v397
        %v403 = vrot.slane %v402, 4
        %v405 = vshll.u32 %v228, 16
        %v407 = vrot.slane %v405, 5
        %v408 = vsel %vm240, %v403, %v407
        %v410 = vshrl.u32 %v203, 16
        %v412 = vrot.slane %v410, 4
        %v413 = vshll.u32 %v203, 16
        %v415 = vrot.slane %v413, 5
        %v416 = vor.u32 %v412, %v415
        %v417 = vrot.slane %v416, 4
        %v419 = vshll.u32 %v204, 16
        %v421 = vrot.slane %v419, 5
        %v422 = vsel %vm240, %v417, %v421
        %v423 = vshrl.u32 %v204, 16
        %v425 = vrot.slane %v423, 4
        %v426 = vor.u32 %v425, %v421
        %v427 = vrot.slane %v426, 4
        %v429 = vshll.u32 %v229, 16
        %v431 = vrot.slane %v429, 5
        %v432 = vsel %vm240, %v427, %v431
        %v434 = vshrl.u32 %v205, 16
        %v436 = vrot.slane %v434, 4
        %v437 = vshll.u32 %v205, 16
        %v439 = vrot.slane %v437, 5
        %v440 = vor.u32 %v436, %v439
        %v441 = vrot.slane %v440, 4
        %v443 = vshll.u32 %v206, 16
        %v445 = vrot.slane %v443, 5
        %v446 = vsel %vm240, %v441, %v445
        %v447 = vshrl.u32 %v206, 16
        %v449 = vrot.slane %v447, 4
        %v450 = vor.u32 %v449, %v445
        %v451 = vrot.slane %v450, 4
        %v453 = vshll.u32 %v230, 16
        %v455 = vrot.slane %v453, 5
        %v456 = vsel %vm240, %v451, %v455
        %v458 = vshrl.u32 %v207, 16
        %v460 = vrot.slane %v458, 4
        %v461 = vshll.u32 %v207, 16
        %v463 = vrot.slane %v461, 5
        %v464 = vor.u32 %v460, %v463
        %v465 = vrot.slane %v464, 4
        %v467 = vshll.u32 %v208, 16
        %v469 = vrot.slane %v467, 5
        %v470 = vsel %vm240, %v465, %v469
        %v471 = vshrl.u32 %v208, 16
        %v473 = vrot.slane %v471, 4
        %v474 = vor.u32 %v473, %v469
        %v475 = vrot.slane %v474, 4
        %v477 = vshll.u32 %v231, 16
        %v479 = vrot.slane %v477, 5
        %v480 = vsel %vm240, %v475, %v479
        %v482 = vshrl.u32 %v209, 16
        %v484 = vrot.slane %v482, 4
        %v485 = vshll.u32 %v209, 16
        %v487 = vrot.slane %v485, 5
        %v488 = vor.u32 %v484, %v487
        %v489 = vrot.slane %v488, 4
        %v491 = vshll.u32 %v210, 16
        %v493 = vrot.slane %v491, 5
        %v494 = vsel %vm240, %v489, %v493
        %v495 = vshrl.u32 %v210, 16
        %v497 = vrot.slane %v495, 4
        %v498 = vor.u32 %v497, %v493
        %v499 = vrot.slane %v498, 4
        %v501 = vshll.u32 %v232, 16
        %v503 = vrot.slane %v501, 5
        %v504 = vsel %vm240, %v499, %v503
        %v506 = vshrl.u32 %v211, 16
        %v508 = vrot.slane %v506, 4
        %v509 = vshll.u32 %v211, 16
        %v511 = vrot.slane %v509, 5
        %v512 = vor.u32 %v508, %v511
        %v513 = vrot.slane %v512, 4
        %v515 = vshll.u32 %v212, 16
        %v517 = vrot.slane %v515, 5
        %v518 = vsel %vm240, %v513, %v517
        %v519 = vshrl.u32 %v212, 16
        %v521 = vrot.slane %v519, 4
        %v522 = vor.u32 %v521, %v517
        %v523 = vrot.slane %v522, 4
        %v525 = vshll.u32 %v233, 16
        %v527 = vrot.slane %v525, 5
        %v528 = vsel %vm240, %v523, %v527
        %v530 = vshrl.u32 %v213, 16
        %v532 = vrot.slane %v530, 4
        %v533 = vshll.u32 %v213, 16
        %v535 = vrot.slane %v533, 5
        %v536 = vor.u32 %v532, %v535
        %v537 = vrot.slane %v536, 4
        %v539 = vshll.u32 %v214, 16
        %v541 = vrot.slane %v539, 5
        %v542 = vsel %vm240, %v537, %v541
        %v543 = vshrl.u32 %v214, 16
        %v545 = vrot.slane %v543, 4
        %v546 = vor.u32 %v545, %v541
        %v547 = vrot.slane %v546, 4
        %v549 = vshll.u32 %v234, 16
        %v551 = vrot.slane %v549, 5
        %v552 = vsel %vm240, %v547, %v551
        %v554 = vshrl.u32 %v215, 16
        %v556 = vrot.slane %v554, 4
        %v557 = vshll.u32 %v215, 16
        %v559 = vrot.slane %v557, 5
        %v560 = vor.u32 %v556, %v559
        %v561 = vrot.slane %v560, 4
        %v563 = vshll.u32 %v216, 16
        %v565 = vrot.slane %v563, 5
        %v566 = vsel %vm240, %v561, %v565
        %v567 = vshrl.u32 %v216, 16
        %v569 = vrot.slane %v567, 4
        %v570 = vor.u32 %v569, %v565
        %v571 = vrot.slane %v570, 4
        %v573 = vshll.u32 %v235, 16
        %v575 = vrot.slane %v573, 5
        %v576 = vsel %vm240, %v571, %v575
        %v578 = vshrl.u32 %v217, 16
        %v580 = vrot.slane %v578, 4
        %v581 = vshll.u32 %v217, 16
        %v583 = vrot.slane %v581, 5
        %v584 = vor.u32 %v580, %v583
        %v585 = vrot.slane %v584, 4
        %v587 = vshll.u32 %v218, 16
        %v589 = vrot.slane %v587, 5
        %v590 = vsel %vm240, %v585, %v589
        %v591 = vshrl.u32 %v218, 16
        %v593 = vrot.slane %v591, 4
        %v594 = vor.u32 %v593, %v589
        %v595 = vrot.slane %v594, 4
        %v597 = vshll.u32 %v236, 16
        %v599 = vrot.slane %v597, 5
        %v600 = vsel %vm240, %v595, %v599
        %v602 = vshrl.u32 %v219, 16
        %v604 = vrot.slane %v602, 4
        %v605 = vshll.u32 %v219, 16
        %v607 = vrot.slane %v605, 5
        %v608 = vor.u32 %v604, %v607
        %v609 = vrot.slane %v608, 4
        %v611 = vshll.u32 %v220, 16
        %v613 = vrot.slane %v611, 5
        %v614 = vsel %vm240, %v609, %v613
        %v615 = vshrl.u32 %v220, 16
        %v617 = vrot.slane %v615, 4
        %v618 = vor.u32 %v617, %v613
        %v619 = vrot.slane %v618, 4
        %v621 = vshll.u32 %v237, 16
        %v623 = vrot.slane %v621, 5
        %v624 = vsel %vm240, %v619, %v623
        %s625 = scalar_lea.vmem %s1, 2
        %v626 = vld [vmem:[%s625] sm:$0x3]
        %v627 = vunpack.c.l.b16 %v254
        %v628 = vunpack.c.l.b16 %v264
        %v629 = vunpack.c.l.b16 %v278
        %v630 = vunpack.c.l.b16 %v288
        %v631 = vunpack.c.l.b16 %v302
        %v632 = vunpack.c.l.b16 %v312
        %v633 = vunpack.c.l.b16 %v326
        %v634 = vunpack.c.l.b16 %v336
        %v635 = vunpack.c.l.b16 %v350
        %v636 = vunpack.c.l.b16 %v360
        %v637 = vunpack.c.l.b16 %v374
        %v638 = vunpack.c.l.b16 %v384
        %v639 = vunpack.c.l.b16 %v398
        %v640 = vunpack.c.l.b16 %v408
        %v641 = vunpack.c.l.b16 %v422
        %v642 = vunpack.c.l.b16 %v432
        %v643 = vunpack.c.l.b16 %v446
        %v644 = vunpack.c.l.b16 %v456
        %v645 = vunpack.c.l.b16 %v470
        %v646 = vunpack.c.l.b16 %v480
        %v647 = vunpack.c.l.b16 %v494
        %v648 = vunpack.c.l.b16 %v504
        %v649 = vunpack.c.l.b16 %v518
        %v650 = vunpack.c.l.b16 %v528
        %v651 = vunpack.c.l.b16 %v542
        %v652 = vunpack.c.l.b16 %v552
        %v653 = vunpack.c.l.b16 %v566
        %v654 = vunpack.c.l.b16 %v576
        %v655 = vunpack.c.l.b16 %v590
        %v656 = vunpack.c.l.b16 %v600
        %v657 = vunpack.c.l.b16 %v614
        %v658 = vunpack.c.l.b16 %v624
        %v659 = vpack.c.b16 %v628, %v627
        %v660 = vpack.c.b16 %v630, %v629
        %v661 = vpack.c.b16 %v632, %v631
        %v662 = vpack.c.b16 %v634, %v633
        %v663 = vpack.c.b16 %v636, %v635
        %v664 = vpack.c.b16 %v638, %v637
        %v665 = vpack.c.b16 %v640, %v639
        %v666 = vpack.c.b16 %v642, %v641
        %v667 = vpack.c.b16 %v644, %v643
        %v668 = vpack.c.b16 %v646, %v645
        %v669 = vpack.c.b16 %v648, %v647
        %v670 = vpack.c.b16 %v650, %v649
        %v671 = vpack.c.b16 %v652, %v651
        %v672 = vpack.c.b16 %v654, %v653
        %v673 = vpack.c.b16 %v656, %v655
        %v674 = vpack.c.b16 %v658, %v657
        %vm675 = vcmask 23552
        %v677 = vsel %vm675, %v659, 0
        %v680 = vsel %vm675, %v660, 0
        %v683 = vsel %vm675, %v661, 0
        %v686 = vsel %vm675, %v662, 0
        %v689 = vsel %vm675, %v663, 0
        %v692 = vsel %vm675, %v664, 0
        %v695 = vsel %vm675, %v665, 0
        %v698 = vsel %vm675, %v666, 0
        %v701 = vsel %vm675, %v667, 0
        %v704 = vsel %vm675, %v668, 0
        %v707 = vsel %vm675, %v669, 0
        %v710 = vsel %vm675, %v670, 0
        %v713 = vsel %vm675, %v671, 0
        %v716 = vsel %vm675, %v672, 0
        %v719 = vsel %vm675, %v673, 0
        %v722 = vsel %vm675, %v674, 0
        %vm724 = vcmask 1040384
        %vm725 = vcmask 1041408
        %v726 = vsel %vm724, 4294967295, 65535
        %v727 = vsel %vm725, %v726, 0
        %v729 = vand.u32 %v626, %v727
        %731 = vmatprep.subr.bf16.mxu0 0
        %732 = vmatpush1.bf16.msra.mxu0 %v729
        %733 = vmatprep.subr.bf16.mxu0 0
        %734 = vmatpush1.bf16.msra.mxu0 0
        %735 = vmatprep.subr.bf16.mxu0 0
        %736 = vmatpush1.bf16.msra.mxu0 0
        %737 = vmatprep.subr.bf16.mxu0 0
        %738 = vmatpush1.bf16.msra.mxu0 0
        %739 = vmatprep.subr.bf16.mxu0 0
        %740 = vmatpush1.bf16.msra.mxu0 0
        %741 = vmatprep.subr.bf16.mxu0 0
        %742 = vmatpush1.bf16.msra.mxu0 0
        %743 = vmatprep.subr.bf16.mxu0 0
        %744 = vmatpush1.bf16.msra.mxu0 0
        %745 = vmatprep.subr.bf16.mxu0 0
        %746 = vmatpush1.bf16.msra.mxu0 0
        %747 = vmatprep.subr.bf16.mxu0 0
        %748 = vmatpush1.bf16.msra.mxu0 0
        %749 = vmatprep.subr.bf16.mxu0 0
        %750 = vmatpush1.bf16.msra.mxu0 0
        %751 = vmatprep.subr.bf16.mxu0 0
        %752 = vmatpush1.bf16.msra.mxu0 0
        %753 = vmatprep.subr.bf16.mxu0 0
        %754 = vmatpush1.bf16.msra.mxu0 0
        %755 = vmatprep.subr.bf16.mxu0 0
        %756 = vmatpush1.bf16.msra.mxu0 0
        %757 = vmatprep.subr.bf16.mxu0 0
        %758 = vmatpush1.bf16.msra.mxu0 0
        %759 = vmatprep.subr.bf16.mxu0 0
        %760 = vmatpush1.bf16.msra.mxu0 0
        %761 = vmatprep.subr.bf16.mxu0 0
        %762 = vmatpush1.bf16.msra.mxu0 0
        %763 = vmatprep.mubr.bf16.mxu0 0
        %764 = vmatmul.mubr.bf16.gmra.mrb[0].mxu0 %v677
        %v765 = vpop.f32.mrb[0].mxu0
        %v766 = vadd.f32 0.0, %v765
        %v767 = vpop.f32.mrb[0].mxu0
        %v768 = vpop.f32.mrb[0].mxu0
        %v769 = vadd.f32 0.0, %v768
        %v770 = vpop.f32.mrb[0].mxu0
        %771 = vmatprep.mubr.bf16.mxu0 0
        %772 = vmatmul.mubr.bf16.gmra.mrb[0].mxu0 %v680
        %v773 = vpop.f32.mrb[0].mxu0
        %v774 = vadd.f32 0.0, %v773
        %v775 = vpop.f32.mrb[0].mxu0
        %v776 = vpop.f32.mrb[0].mxu0
        %v777 = vadd.f32 0.0, %v776
        %v778 = vpop.f32.mrb[0].mxu0
        %779 = vmatprep.mubr.bf16.mxu0 0
        %780 = vmatmul.mubr.bf16.gmra.mrb[0].mxu0 %v683
        %v781 = vpop.f32.mrb[0].mxu0
        %v782 = vadd.f32 0.0, %v781
        %v783 = vpop.f32.mrb[0].mxu0
        %v784 = vpop.f32.mrb[0].mxu0
        %v785 = vadd.f32 0.0, %v784
        %v786 = vpop.f32.mrb[0].mxu0
        %787 = vmatprep.mubr.bf16.mxu0 0
        %788 = vmatmul.mubr.bf16.gmra.mrb[0].mxu0 %v686
        %v789 = vpop.f32.mrb[0].mxu0
        %v790 = vadd.f32 0.0, %v789
        %v791 = vpop.f32.mrb[0].mxu0
        %v792 = vpop.f32.mrb[0].mxu0
        %v793 = vadd.f32 0.0, %v792
        %v794 = vpop.f32.mrb[0].mxu0
        %795 = vmatprep.mubr.bf16.mxu0 0
        %796 = vmatmul.mubr.bf16.gmra.mrb[0].mxu0 %v689
        %v797 = vpop.f32.mrb[0].mxu0
        %v798 = vadd.f32 0.0, %v797
        %v799 = vpop.f32.mrb[0].mxu0
        %v800 = vpop.f32.mrb[0].mxu0
        %v801 = vadd.f32 0.0, %v800
        %v802 = vpop.f32.mrb[0].mxu0
        %803 = vmatprep.mubr.bf16.mxu0 0
        %804 = vmatmul.mubr.bf16.gmra.mrb[0].mxu0 %v692
        %v805 = vpop.f32.mrb[0].mxu0
        %v806 = vadd.f32 0.0, %v805
        %v807 = vpop.f32.mrb[0].mxu0
        %v808 = vpop.f32.mrb[0].mxu0
        %v809 = vadd.f32 0.0, %v808
        %v810 = vpop.f32.mrb[0].mxu0
        %811 = vmatprep.mubr.bf16.mxu0 0
        %812 = vmatmul.mubr.bf16.gmra.mrb[0].mxu0 %v695
        %v813 = vpop.f32.mrb[0].mxu0
        %v814 = vadd.f32 0.0, %v813
        %v815 = vpop.f32.mrb[0].mxu0
        %v816 = vpop.f32.mrb[0].mxu0
        %v817 = vadd.f32 0.0, %v816
        %v818 = vpop.f32.mrb[0].mxu0
        %819 = vmatprep.mubr.bf16.mxu0 0
        %820 = vmatmul.mubr.bf16.gmra.mrb[0].mxu0 %v698
        %v821 = vpop.f32.mrb[0].mxu0
        %v822 = vadd.f32 0.0, %v821
        %v823 = vpop.f32.mrb[0].mxu0
        %v824 = vpop.f32.mrb[0].mxu0
        %v825 = vadd.f32 0.0, %v824
        %v826 = vpop.f32.mrb[0].mxu0
        %827 = vmatprep.mubr.bf16.mxu0 0
        %828 = vmatmul.mubr.bf16.gmra.mrb[0].mxu0 %v701
        %v829 = vpop.f32.mrb[0].mxu0
        %v830 = vadd.f32 0.0, %v829
        %v831 = vpop.f32.mrb[0].mxu0
        %v832 = vpop.f32.mrb[0].mxu0
        %v833 = vadd.f32 0.0, %v832
        %v834 = vpop.f32.mrb[0].mxu0
        %835 = vmatprep.mubr.bf16.mxu0 0
        %836 = vmatmul.mubr.bf16.gmra.mrb[0].mxu0 %v704
        %v837 = vpop.f32.mrb[0].mxu0
        %v838 = vadd.f32 0.0, %v837
        %v839 = vpop.f32.mrb[0].mxu0
        %v840 = vpop.f32.mrb[0].mxu0
        %v841 = vadd.f32 0.0, %v840
        %v842 = vpop.f32.mrb[0].mxu0
        %843 = vmatprep.mubr.bf16.mxu0 0
        %844 = vmatmul.mubr.bf16.gmra.mrb[0].mxu0 %v707
        %v845 = vpop.f32.mrb[0].mxu0
        %v846 = vadd.f32 0.0, %v845
        %v847 = vpop.f32.mrb[0].mxu0
        %v848 = vpop.f32.mrb[0].mxu0
        %v849 = vadd.f32 0.0, %v848
        %v850 = vpop.f32.mrb[0].mxu0
        %851 = vmatprep.mubr.bf16.mxu0 0
        %852 = vmatmul.mubr.bf16.gmra.mrb[0].mxu0 %v710
        %v853 = vpop.f32.mrb[0].mxu0
        %v854 = vadd.f32 0.0, %v853
        %v855 = vpop.f32.mrb[0].mxu0
        %v856 = vpop.f32.mrb[0].mxu0
        %v857 = vadd.f32 0.0, %v856
        %v858 = vpop.f32.mrb[0].mxu0
        %859 = vmatprep.mubr.bf16.mxu0 0
        %860 = vmatmul.mubr.bf16.gmra.mrb[0].mxu0 %v713
        %v861 = vpop.f32.mrb[0].mxu0
        %v862 = vadd.f32 0.0, %v861
        %v863 = vpop.f32.mrb[0].mxu0
        %v864 = vpop.f32.mrb[0].mxu0
        %v865 = vadd.f32 0.0, %v864
        %v866 = vpop.f32.mrb[0].mxu0
        %867 = vmatprep.mubr.bf16.mxu0 0
        %868 = vmatmul.mubr.bf16.gmra.mrb[0].mxu0 %v716
        %v869 = vpop.f32.mrb[0].mxu0
        %v870 = vadd.f32 0.0, %v869
        %v871 = vpop.f32.mrb[0].mxu0
        %v872 = vpop.f32.mrb[0].mxu0
        %v873 = vadd.f32 0.0, %v872
        %v874 = vpop.f32.mrb[0].mxu0
        %875 = vmatprep.mubr.bf16.mxu0 0
        %876 = vmatmul.mubr.bf16.gmra.mrb[0].mxu0 %v719
        %v877 = vpop.f32.mrb[0].mxu0
        %v878 = vadd.f32 0.0, %v877
        %v879 = vpop.f32.mrb[0].mxu0
        %v880 = vpop.f32.mrb[0].mxu0
        %v881 = vadd.f32 0.0, %v880
        %v882 = vpop.f32.mrb[0].mxu0
        %883 = vmatprep.mubr.bf16.mxu0 0
        %884 = vmatmul.mubr.bf16.gmra.mrb[0].mxu0 %v722
        %v885 = vpop.f32.mrb[0].mxu0
        %v886 = vadd.f32 0.0, %v885
        %v887 = vpop.f32.mrb[0].mxu0
        %v888 = vpop.f32.mrb[0].mxu0
        %v889 = vadd.f32 0.0, %v888
        %v890 = vpop.f32.mrb[0].mxu0
        %891 = vdwg.mxu0
        %v924 = vunpack.c.l.b16 %v189
        %v925 = vunpack.c.l.b16 %v190
        %v926 = vunpack.c.l.b16 %v191
        %v927 = vunpack.c.l.b16 %v192
        %v928 = vunpack.c.l.b16 %v193
        %v929 = vunpack.c.l.b16 %v194
        %v930 = vunpack.c.l.b16 %v195
        %v931 = vunpack.c.l.b16 %v196
        %v932 = vunpack.c.l.b16 %v197
        %v933 = vunpack.c.l.b16 %v198
        %v934 = vunpack.c.l.b16 %v199
        %v935 = vunpack.c.l.b16 %v200
        %v936 = vunpack.c.l.b16 %v201
        %v937 = vunpack.c.l.b16 %v202
        %v938 = vunpack.c.l.b16 %v203
        %v939 = vunpack.c.l.b16 %v204
        %v940 = vunpack.c.l.b16 %v205
        %v941 = vunpack.c.l.b16 %v206
        %v942 = vunpack.c.l.b16 %v207
        %v943 = vunpack.c.l.b16 %v208
        %v944 = vunpack.c.l.b16 %v209
        %v945 = vunpack.c.l.b16 %v210
        %v946 = vunpack.c.l.b16 %v211
        %v947 = vunpack.c.l.b16 %v212
        %v948 = vunpack.c.l.b16 %v213
        %v949 = vunpack.c.l.b16 %v214
        %v950 = vunpack.c.l.b16 %v215
        %v951 = vunpack.c.l.b16 %v216
        %v952 = vunpack.c.l.b16 %v217
        %v953 = vunpack.c.l.b16 %v218
        %v954 = vunpack.c.l.b16 %v219
        %v955 = vunpack.c.l.b16 %v220
        %v956 = vpack.c.b16 %v925, %v924
        %v957 = vpack.c.b16 %v927, %v926
        %v958 = vpack.c.b16 %v929, %v928
        %v959 = vpack.c.b16 %v931, %v930
        %v960 = vpack.c.b16 %v933, %v932
        %v961 = vpack.c.b16 %v935, %v934
        %v962 = vpack.c.b16 %v937, %v936
        %v963 = vpack.c.b16 %v939, %v938
        %v964 = vpack.c.b16 %v941, %v940
        %v965 = vpack.c.b16 %v943, %v942
        %v966 = vpack.c.b16 %v945, %v944
        %v967 = vpack.c.b16 %v947, %v946
        %v968 = vpack.c.b16 %v949, %v948
        %v969 = vpack.c.b16 %v951, %v950
        %v970 = vpack.c.b16 %v953, %v952
        %v971 = vpack.c.b16 %v955, %v954
        %v973 = vsel %vm675, %v956, 0
        %v976 = vsel %vm675, %v957, 0
        %v979 = vsel %vm675, %v958, 0
        %v982 = vsel %vm675, %v959, 0
        %v985 = vsel %vm675, %v960, 0
        %v988 = vsel %vm675, %v961, 0
        %v991 = vsel %vm675, %v962, 0
        %v994 = vsel %vm675, %v963, 0
        %v997 = vsel %vm675, %v964, 0
        %v1000 = vsel %vm675, %v965, 0
        %v1003 = vsel %vm675, %v966, 0
        %v1006 = vsel %vm675, %v967, 0
        %v1009 = vsel %vm675, %v968, 0
        %v1012 = vsel %vm675, %v969, 0
        %v1015 = vsel %vm675, %v970, 0
        %v1018 = vsel %vm675, %v971, 0
        %v1021 = vand.u32 %v221, %v727
        %1023 = vmatprep.subr.bf16.mxu0 0
        %1024 = vmatpush1.bf16.msra.mxu0 %v1021
        %1025 = vmatprep.subr.bf16.mxu0 0
        %1026 = vmatpush1.bf16.msra.mxu0 0
        %1027 = vmatprep.subr.bf16.mxu0 0
        %1028 = vmatpush1.bf16.msra.mxu0 0
        %1029 = vmatprep.subr.bf16.mxu0 0
        %1030 = vmatpush1.bf16.msra.mxu0 0
        %1031 = vmatprep.subr.bf16.mxu0 0
        %1032 = vmatpush1.bf16.msra.mxu0 0
        %1033 = vmatprep.subr.bf16.mxu0 0
        %1034 = vmatpush1.bf16.msra.mxu0 0
        %1035 = vmatprep.subr.bf16.mxu0 0
        %1036 = vmatpush1.bf16.msra.mxu0 0
        %1037 = vmatprep.subr.bf16.mxu0 0
        %1038 = vmatpush1.bf16.msra.mxu0 0
        %1039 = vmatprep.subr.bf16.mxu0 0
        %1040 = vmatpush1.bf16.msra.mxu0 0
        %1041 = vmatprep.subr.bf16.mxu0 0
        %1042 = vmatpush1.bf16.msra.mxu0 0
        %1043 = vmatprep.subr.bf16.mxu0 0
        %1044 = vmatpush1.bf16.msra.mxu0 0
        %1045 = vmatprep.subr.bf16.mxu0 0
        %1046 = vmatpush1.bf16.msra.mxu0 0
        %1047 = vmatprep.subr.bf16.mxu0 0
        %1048 = vmatpush1.bf16.msra.mxu0 0
        %1049 = vmatprep.subr.bf16.mxu0 0
        %1050 = vmatpush1.bf16.msra.mxu0 0
        %1051 = vmatprep.subr.bf16.mxu0 0
        %1052 = vmatpush1.bf16.msra.mxu0 0
        %1053 = vmatprep.subr.bf16.mxu0 0
        %1054 = vmatpush1.bf16.msra.mxu0 0
        %1055 = vmatprep.mubr.bf16.mxu0 0
        %1056 = vmatmul.mubr.bf16.gmra.mrb[0].mxu0 %v973
        %v1057 = vpop.f32.mrb[0].mxu0
        %v1058 = vadd.f32 %v766, %v1057
        %v1059 = vpop.f32.mrb[0].mxu0
        %v1060 = vpop.f32.mrb[0].mxu0
        %v1061 = vadd.f32 %v769, %v1060
        %v1062 = vpop.f32.mrb[0].mxu0
        %1063 = vmatprep.mubr.bf16.mxu0 0
        %1064 = vmatmul.mubr.bf16.gmra.mrb[0].mxu0 %v976
        %v1065 = vpop.f32.mrb[0].mxu0
        %v1066 = vadd.f32 %v774, %v1065
        %v1067 = vpop.f32.mrb[0].mxu0
        %v1068 = vpop.f32.mrb[0].mxu0
        %v1069 = vadd.f32 %v777, %v1068
        %v1070 = vpop.f32.mrb[0].mxu0
        %1071 = vmatprep.mubr.bf16.mxu0 0
        %1072 = vmatmul.mubr.bf16.gmra.mrb[0].mxu0 %v979
        %v1073 = vpop.f32.mrb[0].mxu0
        %v1074 = vadd.f32 %v782, %v1073
        %v1075 = vpop.f32.mrb[0].mxu0
        %v1076 = vpop.f32.mrb[0].mxu0
        %v1077 = vadd.f32 %v785, %v1076
        %v1078 = vpop.f32.mrb[0].mxu0
        %1079 = vmatprep.mubr.bf16.mxu0 0
        %1080 = vmatmul.mubr.bf16.gmra.mrb[0].mxu0 %v982
        %v1081 = vpop.f32.mrb[0].mxu0
        %v1082 = vadd.f32 %v790, %v1081
        %v1083 = vpop.f32.mrb[0].mxu0
        %v1084 = vpop.f32.mrb[0].mxu0
        %v1085 = vadd.f32 %v793, %v1084
        %v1086 = vpop.f32.mrb[0].mxu0
        %1087 = vmatprep.mubr.bf16.mxu0 0
        %1088 = vmatmul.mubr.bf16.gmra.mrb[0].mxu0 %v985
        %v1089 = vpop.f32.mrb[0].mxu0
        %v1090 = vadd.f32 %v798, %v1089
        %v1091 = vpop.f32.mrb[0].mxu0
        %v1092 = vpop.f32.mrb[0].mxu0
        %v1093 = vadd.f32 %v801, %v1092
        %v1094 = vpop.f32.mrb[0].mxu0
        %1095 = vmatprep.mubr.bf16.mxu0 0
        %1096 = vmatmul.mubr.bf16.gmra.mrb[0].mxu0 %v988
        %v1097 = vpop.f32.mrb[0].mxu0
        %v1098 = vadd.f32 %v806, %v1097
        %v1099 = vpop.f32.mrb[0].mxu0
        %v1100 = vpop.f32.mrb[0].mxu0
        %v1101 = vadd.f32 %v809, %v1100
        %v1102 = vpop.f32.mrb[0].mxu0
        %1103 = vmatprep.mubr.bf16.mxu0 0
        %1104 = vmatmul.mubr.bf16.gmra.mrb[0].mxu0 %v991
        %v1105 = vpop.f32.mrb[0].mxu0
        %v1106 = vadd.f32 %v814, %v1105
        %v1107 = vpop.f32.mrb[0].mxu0
        %v1108 = vpop.f32.mrb[0].mxu0
        %v1109 = vadd.f32 %v817, %v1108
        %v1110 = vpop.f32.mrb[0].mxu0
        %1111 = vmatprep.mubr.bf16.mxu0 0
        %1112 = vmatmul.mubr.bf16.gmra.mrb[0].mxu0 %v994
        %v1113 = vpop.f32.mrb[0].mxu0
        %v1114 = vadd.f32 %v822, %v1113
        %v1115 = vpop.f32.mrb[0].mxu0
        %v1116 = vpop.f32.mrb[0].mxu0
        %v1117 = vadd.f32 %v825, %v1116
        %v1118 = vpop.f32.mrb[0].mxu0
        %1119 = vmatprep.mubr.bf16.mxu0 0
        %1120 = vmatmul.mubr.bf16.gmra.mrb[0].mxu0 %v997
        %v1121 = vpop.f32.mrb[0].mxu0
        %v1122 = vadd.f32 %v830, %v1121
        %v1123 = vpop.f32.mrb[0].mxu0
        %v1124 = vpop.f32.mrb[0].mxu0
        %v1125 = vadd.f32 %v833, %v1124
        %v1126 = vpop.f32.mrb[0].mxu0
        %1127 = vmatprep.mubr.bf16.mxu0 0
        %1128 = vmatmul.mubr.bf16.gmra.mrb[0].mxu0 %v1000
        %v1129 = vpop.f32.mrb[0].mxu0
        %v1130 = vadd.f32 %v838, %v1129
        %v1131 = vpop.f32.mrb[0].mxu0
        %v1132 = vpop.f32.mrb[0].mxu0
        %v1133 = vadd.f32 %v841, %v1132
        %v1134 = vpop.f32.mrb[0].mxu0
        %1135 = vmatprep.mubr.bf16.mxu0 0
        %1136 = vmatmul.mubr.bf16.gmra.mrb[0].mxu0 %v1003
        %v1137 = vpop.f32.mrb[0].mxu0
        %v1138 = vadd.f32 %v846, %v1137
        %v1139 = vpop.f32.mrb[0].mxu0
        %v1140 = vpop.f32.mrb[0].mxu0
        %v1141 = vadd.f32 %v849, %v1140
        %v1142 = vpop.f32.mrb[0].mxu0
        %1143 = vmatprep.mubr.bf16.mxu0 0
        %1144 = vmatmul.mubr.bf16.gmra.mrb[0].mxu0 %v1006
        %v1145 = vpop.f32.mrb[0].mxu0
        %v1146 = vadd.f32 %v854, %v1145
        %v1147 = vpop.f32.mrb[0].mxu0
        %v1148 = vpop.f32.mrb[0].mxu0
        %v1149 = vadd.f32 %v857, %v1148
        %v1150 = vpop.f32.mrb[0].mxu0
        %1151 = vmatprep.mubr.bf16.mxu0 0
        %1152 = vmatmul.mubr.bf16.gmra.mrb[0].mxu0 %v1009
        %v1153 = vpop.f32.mrb[0].mxu0
        %v1154 = vadd.f32 %v862, %v1153
        %v1155 = vpop.f32.mrb[0].mxu0
        %v1156 = vpop.f32.mrb[0].mxu0
        %v1157 = vadd.f32 %v865, %v1156
        %v1158 = vpop.f32.mrb[0].mxu0
        %1159 = vmatprep.mubr.bf16.mxu0 0
        %1160 = vmatmul.mubr.bf16.gmra.mrb[0].mxu0 %v1012
        %v1161 = vpop.f32.mrb[0].mxu0
        %v1162 = vadd.f32 %v870, %v1161
        %v1163 = vpop.f32.mrb[0].mxu0
        %v1164 = vpop.f32.mrb[0].mxu0
        %v1165 = vadd.f32 %v873, %v1164
        %v1166 = vpop.f32.mrb[0].mxu0
        %1167 = vmatprep.mubr.bf16.mxu0 0
        %1168 = vmatmul.mubr.bf16.gmra.mrb[0].mxu0 %v1015
        %v1169 = vpop.f32.mrb[0].mxu0
        %v1170 = vadd.f32 %v878, %v1169
        %v1171 = vpop.f32.mrb[0].mxu0
        %v1172 = vpop.f32.mrb[0].mxu0
        %v1173 = vadd.f32 %v881, %v1172
        %v1174 = vpop.f32.mrb[0].mxu0
        %1175 = vmatprep.mubr.bf16.mxu0 0
        %1176 = vmatmul.mubr.bf16.gmra.mrb[0].mxu0 %v1018
        %v1177 = vpop.f32.mrb[0].mxu0
        %v1178 = vadd.f32 %v886, %v1177
        %v1179 = vpop.f32.mrb[0].mxu0
        %v1180 = vpop.f32.mrb[0].mxu0
        %v1181 = vadd.f32 %v889, %v1180
        %v1182 = vpop.f32.mrb[0].mxu0
        %1183 = vdwg.mxu0
        %v1184 = vld [vmem:[%s188] sm:$0xe]
        %v1185 = vld [vmem:[%s188 + $0xc] sm:$0xe]
        %v1186 = vld [vmem:[%s188 + $0x18] sm:$0xe]
        %v1187 = vld [vmem:[%s188 + $0x24] sm:$0xe]
        %v1188 = vld [vmem:[%s188 + $0x30] sm:$0xe]
        %v1189 = vld [vmem:[%s188 + $0x3c] sm:$0xe]
        %v1190 = vld [vmem:[%s188 + $0x48] sm:$0xe]
        %v1191 = vld [vmem:[%s188 + $0x54] sm:$0xe]
        %v1192 = vld [vmem:[%s188 + $0x60] sm:$0xe]
        %v1193 = vld [vmem:[%s188 + $0x6c] sm:$0xe]
        %v1194 = vld [vmem:[%s188 + $0x78] sm:$0xe]
        %v1195 = vld [vmem:[%s188 + $0x84] sm:$0xe]
        %v1196 = vld [vmem:[%s188 + $0x90] sm:$0xe]
        %v1197 = vld [vmem:[%s188 + $0x9c] sm:$0xe]
        %v1198 = vld [vmem:[%s188 + $0xa8] sm:$0xe]
        %v1199 = vld [vmem:[%s188 + $0xb4] sm:$0xe]
        %vm1232 = vcmask 1042432
        %vm1233 = vcmask 1046532
        %vm1234 = vmor %vm1232, %vm1233
        %v1235 = vrot.slane %v1184, 5
        %v1236 = vrot.slane %v1235, 4
        %v1237 = vrot.slane %v190, 5
        %v1238 = vsel %vm1234, %v1236, %v1237
        %v1239 = vrot.slane %v1237, 4
        %v1240 = vrot.slane %v222, 5
        %v1241 = vsel %vm1234, %v1239, %v1240
        %v1242 = vrot.slane %v1185, 5
        %v1243 = vrot.slane %v1242, 4
        %v1244 = vrot.slane %v192, 5
        %v1245 = vsel %vm1234, %v1243, %v1244
        %v1246 = vrot.slane %v1244, 4
        %v1247 = vrot.slane %v223, 5
        %v1248 = vsel %vm1234, %v1246, %v1247
        %v1249 = vrot.slane %v1186, 5
        %v1250 = vrot.slane %v1249, 4
        %v1251 = vrot.slane %v194, 5
        %v1252 = vsel %vm1234, %v1250, %v1251
        %v1253 = vrot.slane %v1251, 4
        %v1254 = vrot.slane %v224, 5
        %v1255 = vsel %vm1234, %v1253, %v1254
        %v1256 = vrot.slane %v1187, 5
        %v1257 = vrot.slane %v1256, 4
        %v1258 = vrot.slane %v196, 5
        %v1259 = vsel %vm1234, %v1257, %v1258
        %v1260 = vrot.slane %v1258, 4
        %v1261 = vrot.slane %v225, 5
        %v1262 = vsel %vm1234, %v1260, %v1261
        %v1263 = vrot.slane %v1188, 5
        %v1264 = vrot.slane %v1263, 4
        %v1265 = vrot.slane %v198, 5
        %v1266 = vsel %vm1234, %v1264, %v1265
        %v1267 = vrot.slane %v1265, 4
        %v1268 = vrot.slane %v226, 5
        %v1269 = vsel %vm1234, %v1267, %v1268
        %v1270 = vrot.slane %v1189, 5
        %v1271 = vrot.slane %v1270, 4
        %v1272 = vrot.slane %v200, 5
        %v1273 = vsel %vm1234, %v1271, %v1272
        %v1274 = vrot.slane %v1272, 4
        %v1275 = vrot.slane %v227, 5
        %v1276 = vsel %vm1234, %v1274, %v1275
        %v1277 = vrot.slane %v1190, 5
        %v1278 = vrot.slane %v1277, 4
        %v1279 = vrot.slane %v202, 5
        %v1280 = vsel %vm1234, %v1278, %v1279
        %v1281 = vrot.slane %v1279, 4
        %v1282 = vrot.slane %v228, 5
        %v1283 = vsel %vm1234, %v1281, %v1282
        %v1284 = vrot.slane %v1191, 5
        %v1285 = vrot.slane %v1284, 4
        %v1286 = vrot.slane %v204, 5
        %v1287 = vsel %vm1234, %v1285, %v1286
        %v1288 = vrot.slane %v1286, 4
        %v1289 = vrot.slane %v229, 5
        %v1290 = vsel %vm1234, %v1288, %v1289
        %v1291 = vrot.slane %v1192, 5
        %v1292 = vrot.slane %v1291, 4
        %v1293 = vrot.slane %v206, 5
        %v1294 = vsel %vm1234, %v1292, %v1293
        %v1295 = vrot.slane %v1293, 4
        %v1296 = vrot.slane %v230, 5
        %v1297 = vsel %vm1234, %v1295, %v1296
        %v1298 = vrot.slane %v1193, 5
        %v1299 = vrot.slane %v1298, 4
        %v1300 = vrot.slane %v208, 5
        %v1301 = vsel %vm1234, %v1299, %v1300
        %v1302 = vrot.slane %v1300, 4
        %v1303 = vrot.slane %v231, 5
        %v1304 = vsel %vm1234, %v1302, %v1303
        %v1305 = vrot.slane %v1194, 5
        %v1306 = vrot.slane %v1305, 4
        %v1307 = vrot.slane %v210, 5
        %v1308 = vsel %vm1234, %v1306, %v1307
        %v1309 = vrot.slane %v1307, 4
        %v1310 = vrot.slane %v232, 5
        %v1311 = vsel %vm1234, %v1309, %v1310
        %v1312 = vrot.slane %v1195, 5
        %v1313 = vrot.slane %v1312, 4
        %v1314 = vrot.slane %v212, 5
        %v1315 = vsel %vm1234, %v1313, %v1314
        %v1316 = vrot.slane %v1314, 4
        %v1317 = vrot.slane %v233, 5
        %v1318 = vsel %vm1234, %v1316, %v1317
        %v1319 = vrot.slane %v1196, 5
        %v1320 = vrot.slane %v1319, 4
        %v1321 = vrot.slane %v214, 5
        %v1322 = vsel %vm1234, %v1320, %v1321
        %v1323 = vrot.slane %v1321, 4
        %v1324 = vrot.slane %v234, 5
        %v1325 = vsel %vm1234, %v1323, %v1324
        %v1326 = vrot.slane %v1197, 5
        %v1327 = vrot.slane %v1326, 4
        %v1328 = vrot.slane %v216, 5
        %v1329 = vsel %vm1234, %v1327, %v1328
        %v1330 = vrot.slane %v1328, 4
        %v1331 = vrot.slane %v235, 5
        %v1332 = vsel %vm1234, %v1330, %v1331
        %v1333 = vrot.slane %v1198, 5
        %v1334 = vrot.slane %v1333, 4
        %v1335 = vrot.slane %v218, 5
        %v1336 = vsel %vm1234, %v1334, %v1335
        %v1337 = vrot.slane %v1335, 4
        %v1338 = vrot.slane %v236, 5
        %v1339 = vsel %vm1234, %v1337, %v1338
        %v1340 = vrot.slane %v1199, 5
        %v1341 = vrot.slane %v1340, 4
        %v1342 = vrot.slane %v220, 5
        %v1343 = vsel %vm1234, %v1341, %v1342
        %v1344 = vrot.slane %v1342, 4
        %v1345 = vrot.slane %v237, 5
        %v1346 = vsel %vm1234, %v1344, %v1345
        %s1347 = scalar_lea.vmem %s1, 4
        %v1348 = vld [vmem:[%s1347] sm:$0x3]
        %v1349 = vunpack.c.l.b16 %v1238
        %v1350 = vunpack.c.l.b16 %v1241
        %v1351 = vunpack.c.l.b16 %v1245
        %v1352 = vunpack.c.l.b16 %v1248
        %v1353 = vunpack.c.l.b16 %v1252
        %v1354 = vunpack.c.l.b16 %v1255
        %v1355 = vunpack.c.l.b16 %v1259
        %v1356 = vunpack.c.l.b16 %v1262
        %v1357 = vunpack.c.l.b16 %v1266
        %v1358 = vunpack.c.l.b16 %v1269
        %v1359 = vunpack.c.l.b16 %v1273
        %v1360 = vunpack.c.l.b16 %v1276
        %v1361 = vunpack.c.l.b16 %v1280
        %v1362 = vunpack.c.l.b16 %v1283
        %v1363 = vunpack.c.l.b16 %v1287
        %v1364 = vunpack.c.l.b16 %v1290
        %v1365 = vunpack.c.l.b16 %v1294
        %v1366 = vunpack.c.l.b16 %v1297
        %v1367 = vunpack.c.l.b16 %v1301
        %v1368 = vunpack.c.l.b16 %v1304
        %v1369 = vunpack.c.l.b16 %v1308
        %v1370 = vunpack.c.l.b16 %v1311
        %v1371 = vunpack.c.l.b16 %v1315
        %v1372 = vunpack.c.l.b16 %v1318
        %v1373 = vunpack.c.l.b16 %v1322
        %v1374 = vunpack.c.l.b16 %v1325
        %v1375 = vunpack.c.l.b16 %v1329
        %v1376 = vunpack.c.l.b16 %v1332
        %v1377 = vunpack.c.l.b16 %v1336
        %v1378 = vunpack.c.l.b16 %v1339
        %v1379 = vunpack.c.l.b16 %v1343
        %v1380 = vunpack.c.l.b16 %v1346
        %v1381 = vpack.c.b16 %v1350, %v1349
        %v1382 = vpack.c.b16 %v1352, %v1351
        %v1383 = vpack.c.b16 %v1354, %v1353
        %v1384 = vpack.c.b16 %v1356, %v1355
        %v1385 = vpack.c.b16 %v1358, %v1357
        %v1386 = vpack.c.b16 %v1360, %v1359
        %v1387 = vpack.c.b16 %v1362, %v1361
        %v1388 = vpack.c.b16 %v1364, %v1363
        %v1389 = vpack.c.b16 %v1366, %v1365
        %v1390 = vpack.c.b16 %v1368, %v1367
        %v1391 = vpack.c.b16 %v1370, %v1369
        %v1392 = vpack.c.b16 %v1372, %v1371
        %v1393 = vpack.c.b16 %v1374, %v1373
        %v1394 = vpack.c.b16 %v1376, %v1375
        %v1395 = vpack.c.b16 %v1378, %v1377
        %v1396 = vpack.c.b16 %v1380, %v1379
        %v1398 = vsel %vm675, %v1381, 0
        %v1401 = vsel %vm675, %v1382, 0
        %v1404 = vsel %vm675, %v1383, 0
        %v1407 = vsel %vm675, %v1384, 0
        %v1410 = vsel %vm675, %v1385, 0
        %v1413 = vsel %vm675, %v1386, 0
        %v1416 = vsel %vm675, %v1387, 0
        %v1419 = vsel %vm675, %v1388, 0
        %v1422 = vsel %vm675, %v1389, 0
        %v1425 = vsel %vm675, %v1390, 0
        %v1428 = vsel %vm675, %v1391, 0
        %v1431 = vsel %vm675, %v1392, 0
        %v1434 = vsel %vm675, %v1393, 0
        %v1437 = vsel %vm675, %v1394, 0
        %v1440 = vsel %vm675, %v1395, 0
        %v1443 = vsel %vm675, %v1396, 0
        %v1446 = vand.u32 %v1348, %v727
        %1448 = vmatprep.subr.bf16.mxu0 0
        %1449 = vmatpush1.bf16.msra.mxu0 %v1446
        %1450 = vmatprep.subr.bf16.mxu0 0
        %1451 = vmatpush1.bf16.msra.mxu0 0
        %1452 = vmatprep.subr.bf16.mxu0 0
        %1453 = vmatpush1.bf16.msra.mxu0 0
        %1454 = vmatprep.subr.bf16.mxu0 0
        %1455 = vmatpush1.bf16.msra.mxu0 0
        %1456 = vmatprep.subr.bf16.mxu0 0
        %1457 = vmatpush1.bf16.msra.mxu0 0
        %1458 = vmatprep.subr.bf16.mxu0 0
        %1459 = vmatpush1.bf16.msra.mxu0 0
        %1460 = vmatprep.subr.bf16.mxu0 0
        %1461 = vmatpush1.bf16.msra.mxu0 0
        %1462 = vmatprep.subr.bf16.mxu0 0
        %1463 = vmatpush1.bf16.msra.mxu0 0
        %1464 = vmatprep.subr.bf16.mxu0 0
        %1465 = vmatpush1.bf16.msra.mxu0 0
        %1466 = vmatprep.subr.bf16.mxu0 0
        %1467 = vmatpush1.bf16.msra.mxu0 0
        %1468 = vmatprep.subr.bf16.mxu0 0
        %1469 = vmatpush1.bf16.msra.mxu0 0
        %1470 = vmatprep.subr.bf16.mxu0 0
        %1471 = vmatpush1.bf16.msra.mxu0 0
        %1472 = vmatprep.subr.bf16.mxu0 0
        %1473 = vmatpush1.bf16.msra.mxu0 0
        %1474 = vmatprep.subr.bf16.mxu0 0
        %1475 = vmatpush1.bf16.msra.mxu0 0
        %1476 = vmatprep.subr.bf16.mxu0 0
        %1477 = vmatpush1.bf16.msra.mxu0 0
        %1478 = vmatprep.subr.bf16.mxu0 0
        %1479 = vmatpush1.bf16.msra.mxu0 0
        %1480 = vmatprep.mubr.bf16.mxu0 0
        %1481 = vmatmul.mubr.bf16.gmra.mrb[0].mxu0 %v1398
        %v1482 = vpop.f32.mrb[0].mxu0
        %v1483 = vadd.f32 0.0, %v1482
        %v1484 = vpop.f32.mrb[0].mxu0
        %v1485 = vpop.f32.mrb[0].mxu0
        %v1486 = vadd.f32 0.0, %v1485
        %v1487 = vpop.f32.mrb[0].mxu0
        %1488 = vmatprep.mubr.bf16.mxu0 0
        %1489 = vmatmul.mubr.bf16.gmra.mrb[0].mxu0 %v1401
        %v1490 = vpop.f32.mrb[0].mxu0
        %v1491 = vadd.f32 0.0, %v1490
        %v1492 = vpop.f32.mrb[0].mxu0
        %v1493 = vpop.f32.mrb[0].mxu0
        %v1494 = vadd.f32 0.0, %v1493
        %v1495 = vpop.f32.mrb[0].mxu0
        %1496 = vmatprep.mubr.bf16.mxu0 0
        %1497 = vmatmul.mubr.bf16.gmra.mrb[0].mxu0 %v1404
        %v1498 = vpop.f32.mrb[0].mxu0
        %v1499 = vadd.f32 0.0, %v1498
        %v1500 = vpop.f32.mrb[0].mxu0
        %v1501 = vpop.f32.mrb[0].mxu0
        %v1502 = vadd.f32 0.0, %v1501
        %v1503 = vpop.f32.mrb[0].mxu0
        %1504 = vmatprep.mubr.bf16.mxu0 0
        %1505 = vmatmul.mubr.bf16.gmra.mrb[0].mxu0 %v1407
        %v1506 = vpop.f32.mrb[0].mxu0
        %v1507 = vadd.f32 0.0, %v1506
        %v1508 = vpop.f32.mrb[0].mxu0
        %v1509 = vpop.f32.mrb[0].mxu0
        %v1510 = vadd.f32 0.0, %v1509
        %v1511 = vpop.f32.mrb[0].mxu0
        %1512 = vmatprep.mubr.bf16.mxu0 0
        %1513 = vmatmul.mubr.bf16.gmra.mrb[0].mxu0 %v1410
        %v1514 = vpop.f32.mrb[0].mxu0
        %v1515 = vadd.f32 0.0, %v1514
        %v1516 = vpop.f32.mrb[0].mxu0
        %v1517 = vpop.f32.mrb[0].mxu0
        %v1518 = vadd.f32 0.0, %v1517
        %v1519 = vpop.f32.mrb[0].mxu0
        %1520 = vmatprep.mubr.bf16.mxu0 0
        %1521 = vmatmul.mubr.bf16.gmra.mrb[0].mxu0 %v1413
        %v1522 = vpop.f32.mrb[0].mxu0
        %v1523 = vadd.f32 0.0, %v1522
        %v1524 = vpop.f32.mrb[0].mxu0
        %v1525 = vpop.f32.mrb[0].mxu0
        %v1526 = vadd.f32 0.0, %v1525
        %v1527 = vpop.f32.mrb[0].mxu0
        %1528 = vmatprep.mubr.bf16.mxu0 0
        %1529 = vmatmul.mubr.bf16.gmra.mrb[0].mxu0 %v1416
        %v1530 = vpop.f32.mrb[0].mxu0
        %v1531 = vadd.f32 0.0, %v1530
        %v1532 = vpop.f32.mrb[0].mxu0
        %v1533 = vpop.f32.mrb[0].mxu0
        %v1534 = vadd.f32 0.0, %v1533
        %v1535 = vpop.f32.mrb[0].mxu0
        %1536 = vmatprep.mubr.bf16.mxu0 0
        %1537 = vmatmul.mubr.bf16.gmra.mrb[0].mxu0 %v1419
        %v1538 = vpop.f32.mrb[0].mxu0
        %v1539 = vadd.f32 0.0, %v1538
        %v1540 = vpop.f32.mrb[0].mxu0
        %v1541 = vpop.f32.mrb[0].mxu0
        %v1542 = vadd.f32 0.0, %v1541
        %v1543 = vpop.f32.mrb[0].mxu0
        %1544 = vmatprep.mubr.bf16.mxu0 0
        %1545 = vmatmul.mubr.bf16.gmra.mrb[0].mxu0 %v1422
        %v1546 = vpop.f32.mrb[0].mxu0
        %v1547 = vadd.f32 0.0, %v1546
        %v1548 = vpop.f32.mrb[0].mxu0
        %v1549 = vpop.f32.mrb[0].mxu0
        %v1550 = vadd.f32 0.0, %v1549
        %v1551 = vpop.f32.mrb[0].mxu0
        %1552 = vmatprep.mubr.bf16.mxu0 0
        %1553 = vmatmul.mubr.bf16.gmra.mrb[0].mxu0 %v1425
        %v1554 = vpop.f32.mrb[0].mxu0
        %v1555 = vadd.f32 0.0, %v1554
        %v1556 = vpop.f32.mrb[0].mxu0
        %v1557 = vpop.f32.mrb[0].mxu0
        %v1558 = vadd.f32 0.0, %v1557
        %v1559 = vpop.f32.mrb[0].mxu0
        %1560 = vmatprep.mubr.bf16.mxu0 0
        %1561 = vmatmul.mubr.bf16.gmra.mrb[0].mxu0 %v1428
        %v1562 = vpop.f32.mrb[0].mxu0
        %v1563 = vadd.f32 0.0, %v1562
        %v1564 = vpop.f32.mrb[0].mxu0
        %v1565 = vpop.f32.mrb[0].mxu0
        %v1566 = vadd.f32 0.0, %v1565
        %v1567 = vpop.f32.mrb[0].mxu0
        %1568 = vmatprep.mubr.bf16.mxu0 0
        %1569 = vmatmul.mubr.bf16.gmra.mrb[0].mxu0 %v1431
        %v1570 = vpop.f32.mrb[0].mxu0
        %v1571 = vadd.f32 0.0, %v1570
        %v1572 = vpop.f32.mrb[0].mxu0
        %v1573 = vpop.f32.mrb[0].mxu0
        %v1574 = vadd.f32 0.0, %v1573
        %v1575 = vpop.f32.mrb[0].mxu0
        %1576 = vmatprep.mubr.bf16.mxu0 0
        %1577 = vmatmul.mubr.bf16.gmra.mrb[0].mxu0 %v1434
        %v1578 = vpop.f32.mrb[0].mxu0
        %v1579 = vadd.f32 0.0, %v1578
        %v1580 = vpop.f32.mrb[0].mxu0
        %v1581 = vpop.f32.mrb[0].mxu0
        %v1582 = vadd.f32 0.0, %v1581
        %v1583 = vpop.f32.mrb[0].mxu0
        %1584 = vmatprep.mubr.bf16.mxu0 0
        %1585 = vmatmul.mubr.bf16.gmra.mrb[0].mxu0 %v1437
        %v1586 = vpop.f32.mrb[0].mxu0
        %v1587 = vadd.f32 0.0, %v1586
        %v1588 = vpop.f32.mrb[0].mxu0
        %v1589 = vpop.f32.mrb[0].mxu0
        %v1590 = vadd.f32 0.0, %v1589
        %v1591 = vpop.f32.mrb[0].mxu0
        %1592 = vmatprep.mubr.bf16.mxu0 0
        %1593 = vmatmul.mubr.bf16.gmra.mrb[0].mxu0 %v1440
        %v1594 = vpop.f32.mrb[0].mxu0
        %v1595 = vadd.f32 0.0, %v1594
        %v1596 = vpop.f32.mrb[0].mxu0
        %v1597 = vpop.f32.mrb[0].mxu0
        %v1598 = vadd.f32 0.0, %v1597
        %v1599 = vpop.f32.mrb[0].mxu0
        %1600 = vmatprep.mubr.bf16.mxu0 0
        %1601 = vmatmul.mubr.bf16.gmra.mrb[0].mxu0 %v1443
        %v1602 = vpop.f32.mrb[0].mxu0
        %v1603 = vadd.f32 0.0, %v1602
        %v1604 = vpop.f32.mrb[0].mxu0
        %v1605 = vpop.f32.mrb[0].mxu0
        %v1606 = vadd.f32 0.0, %v1605
        %v1607 = vpop.f32.mrb[0].mxu0
        %1608 = vdwg.mxu0
        %v1609 = vadd.f32 %v1058, %v1483
        %v1610 = vadd.f32 %v1061, %v1486
        %v1611 = vadd.f32 %v1066, %v1491
        %v1612 = vadd.f32 %v1069, %v1494
        %v1613 = vadd.f32 %v1074, %v1499
        %v1614 = vadd.f32 %v1077, %v1502
        %v1615 = vadd.f32 %v1082, %v1507
        %v1616 = vadd.f32 %v1085, %v1510
        %v1617 = vadd.f32 %v1090, %v1515
        %v1618 = vadd.f32 %v1093, %v1518
        %v1619 = vadd.f32 %v1098, %v1523
        %v1620 = vadd.f32 %v1101, %v1526
        %v1621 = vadd.f32 %v1106, %v1531
        %v1622 = vadd.f32 %v1109, %v1534
        %v1623 = vadd.f32 %v1114, %v1539
        %v1624 = vadd.f32 %v1117, %v1542
        %v1625 = vadd.f32 %v1122, %v1547
        %v1626 = vadd.f32 %v1125, %v1550
        %v1627 = vadd.f32 %v1130, %v1555
        %v1628 = vadd.f32 %v1133, %v1558
        %v1629 = vadd.f32 %v1138, %v1563
        %v1630 = vadd.f32 %v1141, %v1566
        %v1631 = vadd.f32 %v1146, %v1571
        %v1632 = vadd.f32 %v1149, %v1574
        %v1633 = vadd.f32 %v1154, %v1579
        %v1634 = vadd.f32 %v1157, %v1582
        %v1635 = vadd.f32 %v1162, %v1587
        %v1636 = vadd.f32 %v1165, %v1590
        %v1637 = vadd.f32 %v1170, %v1595
        %v1638 = vadd.f32 %v1173, %v1598
        %v1639 = vadd.f32 %v1178, %v1603
        %v1640 = vadd.f32 %v1181, %v1606
        %s1641 = sadd.s32 %s185, 1
        %s1642 = smul.u32 %s1641, 3
        %s1643 = smul.addr %s1642, 4
        %s1644 = scalar_lea.vmem %s182, %s1643
        %v1645 = vld [vmem:[%s1644] sm:$0xf]
        %v1646 = vld [vmem:[%s1644 + $0x4] sm:$0xf]
        %v1647 = vld [vmem:[%s1644 + $0xc] sm:$0xf]
        %v1648 = vld [vmem:[%s1644 + $0x10] sm:$0xf]
        %v1649 = vld [vmem:[%s1644 + $0x18] sm:$0xf]
        %v1650 = vld [vmem:[%s1644 + $0x1c] sm:$0xf]
        %v1651 = vld [vmem:[%s1644 + $0x24] sm:$0xf]
        %v1652 = vld [vmem:[%s1644 + $0x28] sm:$0xf]
        %v1653 = vld [vmem:[%s1644 + $0x30] sm:$0xf]
        %v1654 = vld [vmem:[%s1644 + $0x34] sm:$0xf]
        %v1655 = vld [vmem:[%s1644 + $0x3c] sm:$0xf]
        %v1656 = vld [vmem:[%s1644 + $0x40] sm:$0xf]
        %v1657 = vld [vmem:[%s1644 + $0x48] sm:$0xf]
        %v1658 = vld [vmem:[%s1644 + $0x4c] sm:$0xf]
        %v1659 = vld [vmem:[%s1644 + $0x54] sm:$0xf]
        %v1660 = vld [vmem:[%s1644 + $0x58] sm:$0xf]
        %v1661 = vld [vmem:[%s1644 + $0x60] sm:$0xf]
        %v1662 = vld [vmem:[%s1644 + $0x64] sm:$0xf]
        %v1663 = vld [vmem:[%s1644 + $0x6c] sm:$0xf]
        %v1664 = vld [vmem:[%s1644 + $0x70] sm:$0xf]
        %v1665 = vld [vmem:[%s1644 + $0x78] sm:$0xf]
        %v1666 = vld [vmem:[%s1644 + $0x7c] sm:$0xf]
        %v1667 = vld [vmem:[%s1644 + $0x84] sm:$0xf]
        %v1668 = vld [vmem:[%s1644 + $0x88] sm:$0xf]
        %v1669 = vld [vmem:[%s1644 + $0x90] sm:$0xf]
        %v1670 = vld [vmem:[%s1644 + $0x94] sm:$0xf]
        %v1671 = vld [vmem:[%s1644 + $0x9c] sm:$0xf]
        %v1672 = vld [vmem:[%s1644 + $0xa0] sm:$0xf]
        %v1673 = vld [vmem:[%s1644 + $0xa8] sm:$0xf]
        %v1674 = vld [vmem:[%s1644 + $0xac] sm:$0xf]
        %v1675 = vld [vmem:[%s1644 + $0xb4] sm:$0xf]
        %v1676 = vld [vmem:[%s1644 + $0xb8] sm:$0xf]
        %s1677 = scalar_lea.vmem %s1, 6
        %v1678 = vld [vmem:[%s1677] sm:$0x3]
        %v1711 = vunpack.c.l.b16 %v1645
        %v1712 = vunpack.c.l.b16 %v1646
        %v1713 = vunpack.c.l.b16 %v1647
        %v1714 = vunpack.c.l.b16 %v1648
        %v1715 = vunpack.c.l.b16 %v1649
        %v1716 = vunpack.c.l.b16 %v1650
        %v1717 = vunpack.c.l.b16 %v1651
        %v1718 = vunpack.c.l.b16 %v1652
        %v1719 = vunpack.c.l.b16 %v1653
        %v1720 = vunpack.c.l.b16 %v1654
        %v1721 = vunpack.c.l.b16 %v1655
        %v1722 = vunpack.c.l.b16 %v1656
        %v1723 = vunpack.c.l.b16 %v1657
        %v1724 = vunpack.c.l.b16 %v1658
        %v1725 = vunpack.c.l.b16 %v1659
        %v1726 = vunpack.c.l.b16 %v1660
        %v1727 = vunpack.c.l.b16 %v1661
        %v1728 = vunpack.c.l.b16 %v1662
        %v1729 = vunpack.c.l.b16 %v1663
        %v1730 = vunpack.c.l.b16 %v1664
        %v1731 = vunpack.c.l.b16 %v1665
        %v1732 = vunpack.c.l.b16 %v1666
        %v1733 = vunpack.c.l.b16 %v1667
        %v1734 = vunpack.c.l.b16 %v1668
        %v1735 = vunpack.c.l.b16 %v1669
        %v1736 = vunpack.c.l.b16 %v1670
        %v1737 = vunpack.c.l.b16 %v1671
        %v1738 = vunpack.c.l.b16 %v1672
        %v1739 = vunpack.c.l.b16 %v1673
        %v1740 = vunpack.c.l.b16 %v1674
        %v1741 = vunpack.c.l.b16 %v1675
        %v1742 = vunpack.c.l.b16 %v1676
        %v1743 = vpack.c.b16 %v1712, %v1711
        %v1744 = vpack.c.b16 %v1714, %v1713
        %v1745 = vpack.c.b16 %v1716, %v1715
        %v1746 = vpack.c.b16 %v1718, %v1717
        %v1747 = vpack.c.b16 %v1720, %v1719
        %v1748 = vpack.c.b16 %v1722, %v1721
        %v1749 = vpack.c.b16 %v1724, %v1723
        %v1750 = vpack.c.b16 %v1726, %v1725
        %v1751 = vpack.c.b16 %v1728, %v1727
        %v1752 = vpack.c.b16 %v1730, %v1729
        %v1753 = vpack.c.b16 %v1732, %v1731
        %v1754 = vpack.c.b16 %v1734, %v1733
        %v1755 = vpack.c.b16 %v1736, %v1735
        %v1756 = vpack.c.b16 %v1738, %v1737
        %v1757 = vpack.c.b16 %v1740, %v1739
        %v1758 = vpack.c.b16 %v1742, %v1741
        %v1760 = vsel %vm675, %v1743, 0
        %v1763 = vsel %vm675, %v1744, 0
        %v1766 = vsel %vm675, %v1745, 0
        %v1769 = vsel %vm675, %v1746, 0
        %v1772 = vsel %vm675, %v1747, 0
        %v1775 = vsel %vm675, %v1748, 0
        %v1778 = vsel %vm675, %v1749, 0
        %v1781 = vsel %vm675, %v1750, 0
        %v1784 = vsel %vm675, %v1751, 0
        %v1787 = vsel %vm675, %v1752, 0
        %v1790 = vsel %vm675, %v1753, 0
        %v1793 = vsel %vm675, %v1754, 0
        %v1796 = vsel %vm675, %v1755, 0
        %v1799 = vsel %vm675, %v1756, 0
        %v1802 = vsel %vm675, %v1757, 0
        %v1805 = vsel %vm675, %v1758, 0
        %v1808 = vand.u32 %v1678, %v727
        %1810 = vmatprep.subr.bf16.mxu0 0
        %1811 = vmatpush1.bf16.msra.mxu0 %v1808
        %1812 = vmatprep.subr.bf16.mxu0 0
        %1813 = vmatpush1.bf16.msra.mxu0 0
        %1814 = vmatprep.subr.bf16.mxu0 0
        %1815 = vmatpush1.bf16.msra.mxu0 0
        %1816 = vmatprep.subr.bf16.mxu0 0
        %1817 = vmatpush1.bf16.msra.mxu0 0
        %1818 = vmatprep.subr.bf16.mxu0 0
        %1819 = vmatpush1.bf16.msra.mxu0 0
        %1820 = vmatprep.subr.bf16.mxu0 0
        %1821 = vmatpush1.bf16.msra.mxu0 0
        %1822 = vmatprep.subr.bf16.mxu0 0
        %1823 = vmatpush1.bf16.msra.mxu0 0
        %1824 = vmatprep.subr.bf16.mxu0 0
        %1825 = vmatpush1.bf16.msra.mxu0 0
        %1826 = vmatprep.subr.bf16.mxu0 0
        %1827 = vmatpush1.bf16.msra.mxu0 0
        %1828 = vmatprep.subr.bf16.mxu0 0
        %1829 = vmatpush1.bf16.msra.mxu0 0
        %1830 = vmatprep.subr.bf16.mxu0 0
        %1831 = vmatpush1.bf16.msra.mxu0 0
        %1832 = vmatprep.subr.bf16.mxu0 0
        %1833 = vmatpush1.bf16.msra.mxu0 0
        %1834 = vmatprep.subr.bf16.mxu0 0
        %1835 = vmatpush1.bf16.msra.mxu0 0
        %1836 = vmatprep.subr.bf16.mxu0 0
        %1837 = vmatpush1.bf16.msra.mxu0 0
        %1838 = vmatprep.subr.bf16.mxu0 0
        %1839 = vmatpush1.bf16.msra.mxu0 0
        %1840 = vmatprep.subr.bf16.mxu0 0
        %1841 = vmatpush1.bf16.msra.mxu0 0
        %1842 = vmatprep.mubr.bf16.mxu0 0
        %1843 = vmatmul.mubr.bf16.gmra.mrb[0].mxu0 %v1760
        %v1844 = vpop.f32.mrb[0].mxu0
        %v1845 = vadd.f32 0.0, %v1844
        %v1846 = vpop.f32.mrb[0].mxu0
        %v1847 = vpop.f32.mrb[0].mxu0
        %v1848 = vadd.f32 0.0, %v1847
        %v1849 = vpop.f32.mrb[0].mxu0
        %1850 = vmatprep.mubr.bf16.mxu0 0
        %1851 = vmatmul.mubr.bf16.gmra.mrb[0].mxu0 %v1763
        %v1852 = vpop.f32.mrb[0].mxu0
        %v1853 = vadd.f32 0.0, %v1852
        %v1854 = vpop.f32.mrb[0].mxu0
        %v1855 = vpop.f32.mrb[0].mxu0
        %v1856 = vadd.f32 0.0, %v1855
        %v1857 = vpop.f32.mrb[0].mxu0
        %1858 = vmatprep.mubr.bf16.mxu0 0
        %1859 = vmatmul.mubr.bf16.gmra.mrb[0].mxu0 %v1766
        %v1860 = vpop.f32.mrb[0].mxu0
        %v1861 = vadd.f32 0.0, %v1860
        %v1862 = vpop.f32.mrb[0].mxu0
        %v1863 = vpop.f32.mrb[0].mxu0
        %v1864 = vadd.f32 0.0, %v1863
        %v1865 = vpop.f32.mrb[0].mxu0
        %1866 = vmatprep.mubr.bf16.mxu0 0
        %1867 = vmatmul.mubr.bf16.gmra.mrb[0].mxu0 %v1769
        %v1868 = vpop.f32.mrb[0].mxu0
        %v1869 = vadd.f32 0.0, %v1868
        %v1870 = vpop.f32.mrb[0].mxu0
        %v1871 = vpop.f32.mrb[0].mxu0
        %v1872 = vadd.f32 0.0, %v1871
        %v1873 = vpop.f32.mrb[0].mxu0
        %1874 = vmatprep.mubr.bf16.mxu0 0
        %1875 = vmatmul.mubr.bf16.gmra.mrb[0].mxu0 %v1772
        %v1876 = vpop.f32.mrb[0].mxu0
        %v1877 = vadd.f32 0.0, %v1876
        %v1878 = vpop.f32.mrb[0].mxu0
        %v1879 = vpop.f32.mrb[0].mxu0
        %v1880 = vadd.f32 0.0, %v1879
        %v1881 = vpop.f32.mrb[0].mxu0
        %1882 = vmatprep.mubr.bf16.mxu0 0
        %1883 = vmatmul.mubr.bf16.gmra.mrb[0].mxu0 %v1775
        %v1884 = vpop.f32.mrb[0].mxu0
        %v1885 = vadd.f32 0.0, %v1884
        %v1886 = vpop.f32.mrb[0].mxu0
        %v1887 = vpop.f32.mrb[0].mxu0
        %v1888 = vadd.f32 0.0, %v1887
        %v1889 = vpop.f32.mrb[0].mxu0
        %1890 = vmatprep.mubr.bf16.mxu0 0
        %1891 = vmatmul.mubr.bf16.gmra.mrb[0].mxu0 %v1778
        %v1892 = vpop.f32.mrb[0].mxu0
        %v1893 = vadd.f32 0.0, %v1892
        %v1894 = vpop.f32.mrb[0].mxu0
        %v1895 = vpop.f32.mrb[0].mxu0
        %v1896 = vadd.f32 0.0, %v1895
        %v1897 = vpop.f32.mrb[0].mxu0
        %1898 = vmatprep.mubr.bf16.mxu0 0
        %1899 = vmatmul.mubr.bf16.gmra.mrb[0].mxu0 %v1781
        %v1900 = vpop.f32.mrb[0].mxu0
        %v1901 = vadd.f32 0.0, %v1900
        %v1902 = vpop.f32.mrb[0].mxu0
        %v1903 = vpop.f32.mrb[0].mxu0
        %v1904 = vadd.f32 0.0, %v1903
        %v1905 = vpop.f32.mrb[0].mxu0
        %1906 = vmatprep.mubr.bf16.mxu0 0
        %1907 = vmatmul.mubr.bf16.gmra.mrb[0].mxu0 %v1784
        %v1908 = vpop.f32.mrb[0].mxu0
        %v1909 = vadd.f32 0.0, %v1908
        %v1910 = vpop.f32.mrb[0].mxu0
        %v1911 = vpop.f32.mrb[0].mxu0
        %v1912 = vadd.f32 0.0, %v1911
        %v1913 = vpop.f32.mrb[0].mxu0
        %1914 = vmatprep.mubr.bf16.mxu0 0
        %1915 = vmatmul.mubr.bf16.gmra.mrb[0].mxu0 %v1787
        %v1916 = vpop.f32.mrb[0].mxu0
        %v1917 = vadd.f32 0.0, %v1916
        %v1918 = vpop.f32.mrb[0].mxu0
        %v1919 = vpop.f32.mrb[0].mxu0
        %v1920 = vadd.f32 0.0, %v1919
        %v1921 = vpop.f32.mrb[0].mxu0
        %1922 = vmatprep.mubr.bf16.mxu0 0
        %1923 = vmatmul.mubr.bf16.gmra.mrb[0].mxu0 %v1790
        %v1924 = vpop.f32.mrb[0].mxu0
        %v1925 = vadd.f32 0.0, %v1924
        %v1926 = vpop.f32.mrb[0].mxu0
        %v1927 = vpop.f32.mrb[0].mxu0
        %v1928 = vadd.f32 0.0, %v1927
        %v1929 = vpop.f32.mrb[0].mxu0
        %1930 = vmatprep.mubr.bf16.mxu0 0
        %1931 = vmatmul.mubr.bf16.gmra.mrb[0].mxu0 %v1793
        %v1932 = vpop.f32.mrb[0].mxu0
        %v1933 = vadd.f32 0.0, %v1932
        %v1934 = vpop.f32.mrb[0].mxu0
        %v1935 = vpop.f32.mrb[0].mxu0
        %v1936 = vadd.f32 0.0, %v1935
        %v1937 = vpop.f32.mrb[0].mxu0
        %1938 = vmatprep.mubr.bf16.mxu0 0
        %1939 = vmatmul.mubr.bf16.gmra.mrb[0].mxu0 %v1796
        %v1940 = vpop.f32.mrb[0].mxu0
        %v1941 = vadd.f32 0.0, %v1940
        %v1942 = vpop.f32.mrb[0].mxu0
        %v1943 = vpop.f32.mrb[0].mxu0
        %v1944 = vadd.f32 0.0, %v1943
        %v1945 = vpop.f32.mrb[0].mxu0
        %1946 = vmatprep.mubr.bf16.mxu0 0
        %1947 = vmatmul.mubr.bf16.gmra.mrb[0].mxu0 %v1799
        %v1948 = vpop.f32.mrb[0].mxu0
        %v1949 = vadd.f32 0.0, %v1948
        %v1950 = vpop.f32.mrb[0].mxu0
        %v1951 = vpop.f32.mrb[0].mxu0
        %v1952 = vadd.f32 0.0, %v1951
        %v1953 = vpop.f32.mrb[0].mxu0
        %1954 = vmatprep.mubr.bf16.mxu0 0
        %1955 = vmatmul.mubr.bf16.gmra.mrb[0].mxu0 %v1802
        %v1956 = vpop.f32.mrb[0].mxu0
        %v1957 = vadd.f32 0.0, %v1956
        %v1958 = vpop.f32.mrb[0].mxu0
        %v1959 = vpop.f32.mrb[0].mxu0
        %v1960 = vadd.f32 0.0, %v1959
        %v1961 = vpop.f32.mrb[0].mxu0
        %1962 = vmatprep.mubr.bf16.mxu0 0
        %1963 = vmatmul.mubr.bf16.gmra.mrb[0].mxu0 %v1805
        %v1964 = vpop.f32.mrb[0].mxu0
        %v1965 = vadd.f32 0.0, %v1964
        %v1966 = vpop.f32.mrb[0].mxu0
        %v1967 = vpop.f32.mrb[0].mxu0
        %v1968 = vadd.f32 0.0, %v1967
        %v1969 = vpop.f32.mrb[0].mxu0
        %1970 = vdwg.mxu0
        %v1971 = vadd.f32 %v1609, %v1845
        %v1972 = vadd.f32 %v1610, %v1848
        %v1973 = vadd.f32 %v1611, %v1853
        %v1974 = vadd.f32 %v1612, %v1856
        %v1975 = vadd.f32 %v1613, %v1861
        %v1976 = vadd.f32 %v1614, %v1864
        %v1977 = vadd.f32 %v1615, %v1869
        %v1978 = vadd.f32 %v1616, %v1872
        %v1979 = vadd.f32 %v1617, %v1877
        %v1980 = vadd.f32 %v1618, %v1880
        %v1981 = vadd.f32 %v1619, %v1885
        %v1982 = vadd.f32 %v1620, %v1888
        %v1983 = vadd.f32 %v1621, %v1893
        %v1984 = vadd.f32 %v1622, %v1896
        %v1985 = vadd.f32 %v1623, %v1901
        %v1986 = vadd.f32 %v1624, %v1904
        %v1987 = vadd.f32 %v1625, %v1909
        %v1988 = vadd.f32 %v1626, %v1912
        %v1989 = vadd.f32 %v1627, %v1917
        %v1990 = vadd.f32 %v1628, %v1920
        %v1991 = vadd.f32 %v1629, %v1925
        %v1992 = vadd.f32 %v1630, %v1928
        %v1993 = vadd.f32 %v1631, %v1933
        %v1994 = vadd.f32 %v1632, %v1936
        %v1995 = vadd.f32 %v1633, %v1941
        %v1996 = vadd.f32 %v1634, %v1944
        %v1997 = vadd.f32 %v1635, %v1949
        %v1998 = vadd.f32 %v1636, %v1952
        %v1999 = vadd.f32 %v1637, %v1957
        %v2000 = vadd.f32 %v1638, %v1960
        %v2001 = vadd.f32 %v1639, %v1965
        %v2002 = vadd.f32 %v1640, %v1968
        %v2003 = vld [vmem:[%s1644] sm:$0xf]
        %v2004 = vld [vmem:[%s1644 + $0x4] sm:$0xf]
        %v2005 = vld [vmem:[%s1644 + $0x8] sm:$0x1]
        %v2006 = vld [vmem:[%s1644 + $0xc] sm:$0xf]
        %v2007 = vld [vmem:[%s1644 + $0x10] sm:$0xf]
        %v2008 = vld [vmem:[%s1644 + $0x14] sm:$0x1]
        %v2009 = vld [vmem:[%s1644 + $0x18] sm:$0xf]
        %v2010 = vld [vmem:[%s1644 + $0x1c] sm:$0xf]
        %v2011 = vld [vmem:[%s1644 + $0x20] sm:$0x1]
        %v2012 = vld [vmem:[%s1644 + $0x24] sm:$0xf]
        %v2013 = vld [vmem:[%s1644 + $0x28] sm:$0xf]
        %v2014 = vld [vmem:[%s1644 + $0x2c] sm:$0x1]
        %v2015 = vld [vmem:[%s1644 + $0x30] sm:$0xf]
        %v2016 = vld [vmem:[%s1644 + $0x34] sm:$0xf]
        %v2017 = vld [vmem:[%s1644 + $0x38] sm:$0x1]
        %v2018 = vld [vmem:[%s1644 + $0x3c] sm:$0xf]
        %v2019 = vld [vmem:[%s1644 + $0x40] sm:$0xf]
        %v2020 = vld [vmem:[%s1644 + $0x44] sm:$0x1]
        %v2021 = vld [vmem:[%s1644 + $0x48] sm:$0xf]
        %v2022 = vld [vmem:[%s1644 + $0x4c] sm:$0xf]
        %v2023 = vld [vmem:[%s1644 + $0x50] sm:$0x1]
        %v2024 = vld [vmem:[%s1644 + $0x54] sm:$0xf]
        %v2025 = vld [vmem:[%s1644 + $0x58] sm:$0xf]
        %v2026 = vld [vmem:[%s1644 + $0x5c] sm:$0x1]
        %v2027 = vld [vmem:[%s1644 + $0x60] sm:$0xf]
        %v2028 = vld [vmem:[%s1644 + $0x64] sm:$0xf]
        %v2029 = vld [vmem:[%s1644 + $0x68] sm:$0x1]
        %v2030 = vld [vmem:[%s1644 + $0x6c] sm:$0xf]
        %v2031 = vld [vmem:[%s1644 + $0x70] sm:$0xf]
        %v2032 = vld [vmem:[%s1644 + $0x74] sm:$0x1]
        %v2033 = vld [vmem:[%s1644 + $0x78] sm:$0xf]
        %v2034 = vld [vmem:[%s1644 + $0x7c] sm:$0xf]
        %v2035 = vld [vmem:[%s1644 + $0x80] sm:$0x1]
        %v2036 = vld [vmem:[%s1644 + $0x84] sm:$0xf]
        %v2037 = vld [vmem:[%s1644 + $0x88] sm:$0xf]
        %v2038 = vld [vmem:[%s1644 + $0x8c] sm:$0x1]
        %v2039 = vld [vmem:[%s1644 + $0x90] sm:$0xf]
        %v2040 = vld [vmem:[%s1644 + $0x94] sm:$0xf]
        %v2041 = vld [vmem:[%s1644 + $0x98] sm:$0x1]
        %v2042 = vld [vmem:[%s1644 + $0x9c] sm:$0xf]
        %v2043 = vld [vmem:[%s1644 + $0xa0] sm:$0xf]
        %v2044 = vld [vmem:[%s1644 + $0xa4] sm:$0x1]
        %v2045 = vld [vmem:[%s1644 + $0xa8] sm:$0xf]
        %v2046 = vld [vmem:[%s1644 + $0xac] sm:$0xf]
        %v2047 = vld [vmem:[%s1644 + $0xb0] sm:$0x1]
        %v2048 = vld [vmem:[%s1644 + $0xb4] sm:$0xf]
        %v2049 = vld [vmem:[%s1644 + $0xb8] sm:$0xf]
        %v2050 = vld [vmem:[%s1644 + $0xbc] sm:$0x1]
        %v2052 = vshrl.u32 %v2003, 16
        %v2054 = vrot.slane %v2052, 4
        %v2055 = vshll.u32 %v2003, 16
        %v2057 = vrot.slane %v2055, 5
        %v2058 = vor.u32 %v2054, %v2057
        %v2059 = vrot.slane %v2058, 4
        %v2061 = vshll.u32 %v2004, 16
        %v2063 = vrot.slane %v2061, 5
        %v2064 = vsel %vm240, %v2059, %v2063
        %v2065 = vshrl.u32 %v2004, 16
        %v2067 = vrot.slane %v2065, 4
        %v2068 = vor.u32 %v2067, %v2063
        %v2069 = vrot.slane %v2068, 4
        %v2071 = vshll.u32 %v2005, 16
        %v2073 = vrot.slane %v2071, 5
        %v2074 = vsel %vm240, %v2069, %v2073
        %v2076 = vshrl.u32 %v2006, 16
        %v2078 = vrot.slane %v2076, 4
        %v2079 = vshll.u32 %v2006, 16
        %v2081 = vrot.slane %v2079, 5
        %v2082 = vor.u32 %v2078, %v2081
        %v2083 = vrot.slane %v2082, 4
        %v2085 = vshll.u32 %v2007, 16
        %v2087 = vrot.slane %v2085, 5
        %v2088 = vsel %vm240, %v2083, %v2087
        %v2089 = vshrl.u32 %v2007, 16
        %v2091 = vrot.slane %v2089, 4
        %v2092 = vor.u32 %v2091, %v2087
        %v2093 = vrot.slane %v2092, 4
        %v2095 = vshll.u32 %v2008, 16
        %v2097 = vrot.slane %v2095, 5
        %v2098 = vsel %vm240, %v2093, %v2097
        %v2100 = vshrl.u32 %v2009, 16
        %v2102 = vrot.slane %v2100, 4
        %v2103 = vshll.u32 %v2009, 16
        %v2105 = vrot.slane %v2103, 5
        %v2106 = vor.u32 %v2102, %v2105
        %v2107 = vrot.slane %v2106, 4
        %v2109 = vshll.u32 %v2010, 16
        %v2111 = vrot.slane %v2109, 5
        %v2112 = vsel %vm240, %v2107, %v2111
        %v2113 = vshrl.u32 %v2010, 16
        %v2115 = vrot.slane %v2113, 4
        %v2116 = vor.u32 %v2115, %v2111
        %v2117 = vrot.slane %v2116, 4
        %v2119 = vshll.u32 %v2011, 16
        %v2121 = vrot.slane %v2119, 5
        %v2122 = vsel %vm240, %v2117, %v2121
        %v2124 = vshrl.u32 %v2012, 16
        %v2126 = vrot.slane %v2124, 4
        %v2127 = vshll.u32 %v2012, 16
        %v2129 = vrot.slane %v2127, 5
        %v2130 = vor.u32 %v2126, %v2129
        %v2131 = vrot.slane %v2130, 4
        %v2133 = vshll.u32 %v2013, 16
        %v2135 = vrot.slane %v2133, 5
        %v2136 = vsel %vm240, %v2131, %v2135
        %v2137 = vshrl.u32 %v2013, 16
        %v2139 = vrot.slane %v2137, 4
        %v2140 = vor.u32 %v2139, %v2135
        %v2141 = vrot.slane %v2140, 4
        %v2143 = vshll.u32 %v2014, 16
        %v2145 = vrot.slane %v2143, 5
        %v2146 = vsel %vm240, %v2141, %v2145
        %v2148 = vshrl.u32 %v2015, 16
        %v2150 = vrot.slane %v2148, 4
        %v2151 = vshll.u32 %v2015, 16
        %v2153 = vrot.slane %v2151, 5
        %v2154 = vor.u32 %v2150, %v2153
        %v2155 = vrot.slane %v2154, 4
        %v2157 = vshll.u32 %v2016, 16
        %v2159 = vrot.slane %v2157, 5
        %v2160 = vsel %vm240, %v2155, %v2159
        %v2161 = vshrl.u32 %v2016, 16
        %v2163 = vrot.slane %v2161, 4
        %v2164 = vor.u32 %v2163, %v2159
        %v2165 = vrot.slane %v2164, 4
        %v2167 = vshll.u32 %v2017, 16
        %v2169 = vrot.slane %v2167, 5
        %v2170 = vsel %vm240, %v2165, %v2169
        %v2172 = vshrl.u32 %v2018, 16
        %v2174 = vrot.slane %v2172, 4
        %v2175 = vshll.u32 %v2018, 16
        %v2177 = vrot.slane %v2175, 5
        %v2178 = vor.u32 %v2174, %v2177
        %v2179 = vrot.slane %v2178, 4
        %v2181 = vshll.u32 %v2019, 16
        %v2183 = vrot.slane %v2181, 5
        %v2184 = vsel %vm240, %v2179, %v2183
        %v2185 = vshrl.u32 %v2019, 16
        %v2187 = vrot.slane %v2185, 4
        %v2188 = vor.u32 %v2187, %v2183
        %v2189 = vrot.slane %v2188, 4
        %v2191 = vshll.u32 %v2020, 16
        %v2193 = vrot.slane %v2191, 5
        %v2194 = vsel %vm240, %v2189, %v2193
        %v2196 = vshrl.u32 %v2021, 16
        %v2198 = vrot.slane %v2196, 4
        %v2199 = vshll.u32 %v2021, 16
        %v2201 = vrot.slane %v2199, 5
        %v2202 = vor.u32 %v2198, %v2201
        %v2203 = vrot.slane %v2202, 4
        %v2205 = vshll.u32 %v2022, 16
        %v2207 = vrot.slane %v2205, 5
        %v2208 = vsel %vm240, %v2203, %v2207
        %v2209 = vshrl.u32 %v2022, 16
        %v2211 = vrot.slane %v2209, 4
        %v2212 = vor.u32 %v2211, %v2207
        %v2213 = vrot.slane %v2212, 4
        %v2215 = vshll.u32 %v2023, 16
        %v2217 = vrot.slane %v2215, 5
        %v2218 = vsel %vm240, %v2213, %v2217
        %v2220 = vshrl.u32 %v2024, 16
        %v2222 = vrot.slane %v2220, 4
        %v2223 = vshll.u32 %v2024, 16
        %v2225 = vrot.slane %v2223, 5
        %v2226 = vor.u32 %v2222, %v2225
        %v2227 = vrot.slane %v2226, 4
        %v2229 = vshll.u32 %v2025, 16
        %v2231 = vrot.slane %v2229, 5
        %v2232 = vsel %vm240, %v2227, %v2231
        %v2233 = vshrl.u32 %v2025, 16
        %v2235 = vrot.slane %v2233, 4
        %v2236 = vor.u32 %v2235, %v2231
        %v2237 = vrot.slane %v2236, 4
        %v2239 = vshll.u32 %v2026, 16
        %v2241 = vrot.slane %v2239, 5
        %v2242 = vsel %vm240, %v2237, %v2241
        %v2244 = vshrl.u32 %v2027, 16
        %v2246 = vrot.slane %v2244, 4
        %v2247 = vshll.u32 %v2027, 16
        %v2249 = vrot.slane %v2247, 5
        %v2250 = vor.u32 %v2246, %v2249
        %v2251 = vrot.slane %v2250, 4
        %v2253 = vshll.u32 %v2028, 16
        %v2255 = vrot.slane %v2253, 5
        %v2256 = vsel %vm240, %v2251, %v2255
        %v2257 = vshrl.u32 %v2028, 16
        %v2259 = vrot.slane %v2257, 4
        %v2260 = vor.u32 %v2259, %v2255
        %v2261 = vrot.slane %v2260, 4
        %v2263 = vshll.u32 %v2029, 16
        %v2265 = vrot.slane %v2263, 5
        %v2266 = vsel %vm240, %v2261, %v2265
        %v2268 = vshrl.u32 %v2030, 16
        %v2270 = vrot.slane %v2268, 4
        %v2271 = vshll.u32 %v2030, 16
        %v2273 = vrot.slane %v2271, 5
        %v2274 = vor.u32 %v2270, %v2273
        %v2275 = vrot.slane %v2274, 4
        %v2277 = vshll.u32 %v2031, 16
        %v2279 = vrot.slane %v2277, 5
        %v2280 = vsel %vm240, %v2275, %v2279
        %v2281 = vshrl.u32 %v2031, 16
        %v2283 = vrot.slane %v2281, 4
        %v2284 = vor.u32 %v2283, %v2279
        %v2285 = vrot.slane %v2284, 4
        %v2287 = vshll.u32 %v2032, 16
        %v2289 = vrot.slane %v2287, 5
        %v2290 = vsel %vm240, %v2285, %v2289
        %v2292 = vshrl.u32 %v2033, 16
        %v2294 = vrot.slane %v2292, 4
        %v2295 = vshll.u32 %v2033, 16
        %v2297 = vrot.slane %v2295, 5
        %v2298 = vor.u32 %v2294, %v2297
        %v2299 = vrot.slane %v2298, 4
        %v2301 = vshll.u32 %v2034, 16
        %v2303 = vrot.slane %v2301, 5
        %v2304 = vsel %vm240, %v2299, %v2303
        %v2305 = vshrl.u32 %v2034, 16
        %v2307 = vrot.slane %v2305, 4
        %v2308 = vor.u32 %v2307, %v2303
        %v2309 = vrot.slane %v2308, 4
        %v2311 = vshll.u32 %v2035, 16
        %v2313 = vrot.slane %v2311, 5
        %v2314 = vsel %vm240, %v2309, %v2313
        %v2316 = vshrl.u32 %v2036, 16
        %v2318 = vrot.slane %v2316, 4
        %v2319 = vshll.u32 %v2036, 16
        %v2321 = vrot.slane %v2319, 5
        %v2322 = vor.u32 %v2318, %v2321
        %v2323 = vrot.slane %v2322, 4
        %v2325 = vshll.u32 %v2037, 16
        %v2327 = vrot.slane %v2325, 5
        %v2328 = vsel %vm240, %v2323, %v2327
        %v2329 = vshrl.u32 %v2037, 16
        %v2331 = vrot.slane %v2329, 4
        %v2332 = vor.u32 %v2331, %v2327
        %v2333 = vrot.slane %v2332, 4
        %v2335 = vshll.u32 %v2038, 16
        %v2337 = vrot.slane %v2335, 5
        %v2338 = vsel %vm240, %v2333, %v2337
        %v2340 = vshrl.u32 %v2039, 16
        %v2342 = vrot.slane %v2340, 4
        %v2343 = vshll.u32 %v2039, 16
        %v2345 = vrot.slane %v2343, 5
        %v2346 = vor.u32 %v2342, %v2345
        %v2347 = vrot.slane %v2346, 4
        %v2349 = vshll.u32 %v2040, 16
        %v2351 = vrot.slane %v2349, 5
        %v2352 = vsel %vm240, %v2347, %v2351
        %v2353 = vshrl.u32 %v2040, 16
        %v2355 = vrot.slane %v2353, 4
        %v2356 = vor.u32 %v2355, %v2351
        %v2357 = vrot.slane %v2356, 4
        %v2359 = vshll.u32 %v2041, 16
        %v2361 = vrot.slane %v2359, 5
        %v2362 = vsel %vm240, %v2357, %v2361
        %v2364 = vshrl.u32 %v2042, 16
        %v2366 = vrot.slane %v2364, 4
        %v2367 = vshll.u32 %v2042, 16
        %v2369 = vrot.slane %v2367, 5
        %v2370 = vor.u32 %v2366, %v2369
        %v2371 = vrot.slane %v2370, 4
        %v2373 = vshll.u32 %v2043, 16
        %v2375 = vrot.slane %v2373, 5
        %v2376 = vsel %vm240, %v2371, %v2375
        %v2377 = vshrl.u32 %v2043, 16
        %v2379 = vrot.slane %v2377, 4
        %v2380 = vor.u32 %v2379, %v2375
        %v2381 = vrot.slane %v2380, 4
        %v2383 = vshll.u32 %v2044, 16
        %v2385 = vrot.slane %v2383, 5
        %v2386 = vsel %vm240, %v2381, %v2385
        %v2388 = vshrl.u32 %v2045, 16
        %v2390 = vrot.slane %v2388, 4
        %v2391 = vshll.u32 %v2045, 16
        %v2393 = vrot.slane %v2391, 5
        %v2394 = vor.u32 %v2390, %v2393
        %v2395 = vrot.slane %v2394, 4
        %v2397 = vshll.u32 %v2046, 16
        %v2399 = vrot.slane %v2397, 5
        %v2400 = vsel %vm240, %v2395, %v2399
        %v2401 = vshrl.u32 %v2046, 16
        %v2403 = vrot.slane %v2401, 4
        %v2404 = vor.u32 %v2403, %v2399
        %v2405 = vrot.slane %v2404, 4
        %v2407 = vshll.u32 %v2047, 16
        %v2409 = vrot.slane %v2407, 5
        %v2410 = vsel %vm240, %v2405, %v2409
        %v2412 = vshrl.u32 %v2048, 16
        %v2414 = vrot.slane %v2412, 4
        %v2415 = vshll.u32 %v2048, 16
        %v2417 = vrot.slane %v2415, 5
        %v2418 = vor.u32 %v2414, %v2417
        %v2419 = vrot.slane %v2418, 4
        %v2421 = vshll.u32 %v2049, 16
        %v2423 = vrot.slane %v2421, 5
        %v2424 = vsel %vm240, %v2419, %v2423
        %v2425 = vshrl.u32 %v2049, 16
        %v2427 = vrot.slane %v2425, 4
        %v2428 = vor.u32 %v2427, %v2423
        %v2429 = vrot.slane %v2428, 4
        %v2431 = vshll.u32 %v2050, 16
        %v2433 = vrot.slane %v2431, 5
        %v2434 = vsel %vm240, %v2429, %v2433
        %s2435 = scalar_lea.vmem %s1, 8
        %v2436 = vld [vmem:[%s2435] sm:$0x3]
        %v2437 = vunpack.c.l.b16 %v2064
        %v2438 = vunpack.c.l.b16 %v2074
        %v2439 = vunpack.c.l.b16 %v2088
        %v2440 = vunpack.c.l.b16 %v2098
        %v2441 = vunpack.c.l.b16 %v2112
        %v2442 = vunpack.c.l.b16 %v2122
        %v2443 = vunpack.c.l.b16 %v2136
        %v2444 = vunpack.c.l.b16 %v2146
        %v2445 = vunpack.c.l.b16 %v2160
        %v2446 = vunpack.c.l.b16 %v2170
        %v2447 = vunpack.c.l.b16 %v2184
        %v2448 = vunpack.c.l.b16 %v2194
        %v2449 = vunpack.c.l.b16 %v2208
        %v2450 = vunpack.c.l.b16 %v2218
        %v2451 = vunpack.c.l.b16 %v2232
        %v2452 = vunpack.c.l.b16 %v2242
        %v2453 = vunpack.c.l.b16 %v2256
        %v2454 = vunpack.c.l.b16 %v2266
        %v2455 = vunpack.c.l.b16 %v2280
        %v2456 = vunpack.c.l.b16 %v2290
        %v2457 = vunpack.c.l.b16 %v2304
        %v2458 = vunpack.c.l.b16 %v2314
        %v2459 = vunpack.c.l.b16 %v2328
        %v2460 = vunpack.c.l.b16 %v2338
        %v2461 = vunpack.c.l.b16 %v2352
        %v2462 = vunpack.c.l.b16 %v2362
        %v2463 = vunpack.c.l.b16 %v2376
        %v2464 = vunpack.c.l.b16 %v2386
        %v2465 = vunpack.c.l.b16 %v2400
        %v2466 = vunpack.c.l.b16 %v2410
        %v2467 = vunpack.c.l.b16 %v2424
        %v2468 = vunpack.c.l.b16 %v2434
        %v2469 = vpack.c.b16 %v2438, %v2437
        %v2470 = vpack.c.b16 %v2440, %v2439
        %v2471 = vpack.c.b16 %v2442, %v2441
        %v2472 = vpack.c.b16 %v2444, %v2443
        %v2473 = vpack.c.b16 %v2446, %v2445
        %v2474 = vpack.c.b16 %v2448, %v2447
        %v2475 = vpack.c.b16 %v2450, %v2449
        %v2476 = vpack.c.b16 %v2452, %v2451
        %v2477 = vpack.c.b16 %v2454, %v2453
        %v2478 = vpack.c.b16 %v2456, %v2455
        %v2479 = vpack.c.b16 %v2458, %v2457
        %v2480 = vpack.c.b16 %v2460, %v2459
        %v2481 = vpack.c.b16 %v2462, %v2461
        %v2482 = vpack.c.b16 %v2464, %v2463
        %v2483 = vpack.c.b16 %v2466, %v2465
        %v2484 = vpack.c.b16 %v2468, %v2467
        %v2486 = vsel %vm675, %v2469, 0
        %v2489 = vsel %vm675, %v2470, 0
        %v2492 = vsel %vm675, %v2471, 0
        %v2495 = vsel %vm675, %v2472, 0
        %v2498 = vsel %vm675, %v2473, 0
        %v2501 = vsel %vm675, %v2474, 0
        %v2504 = vsel %vm675, %v2475, 0
        %v2507 = vsel %vm675, %v2476, 0
        %v2510 = vsel %vm675, %v2477, 0
        %v2513 = vsel %vm675, %v2478, 0
        %v2516 = vsel %vm675, %v2479, 0
        %v2519 = vsel %vm675, %v2480, 0
        %v2522 = vsel %vm675, %v2481, 0
        %v2525 = vsel %vm675, %v2482, 0
        %v2528 = vsel %vm675, %v2483, 0
        %v2531 = vsel %vm675, %v2484, 0
        %v2534 = vand.u32 %v2436, %v727
        %2536 = vmatprep.subr.bf16.mxu0 0
        %2537 = vmatpush1.bf16.msra.mxu0 %v2534
        %2538 = vmatprep.subr.bf16.mxu0 0
        %2539 = vmatpush1.bf16.msra.mxu0 0
        %2540 = vmatprep.subr.bf16.mxu0 0
        %2541 = vmatpush1.bf16.msra.mxu0 0
        %2542 = vmatprep.subr.bf16.mxu0 0
        %2543 = vmatpush1.bf16.msra.mxu0 0
        %2544 = vmatprep.subr.bf16.mxu0 0
        %2545 = vmatpush1.bf16.msra.mxu0 0
        %2546 = vmatprep.subr.bf16.mxu0 0
        %2547 = vmatpush1.bf16.msra.mxu0 0
        %2548 = vmatprep.subr.bf16.mxu0 0
        %2549 = vmatpush1.bf16.msra.mxu0 0
        %2550 = vmatprep.subr.bf16.mxu0 0
        %2551 = vmatpush1.bf16.msra.mxu0 0
        %2552 = vmatprep.subr.bf16.mxu0 0
        %2553 = vmatpush1.bf16.msra.mxu0 0
        %2554 = vmatprep.subr.bf16.mxu0 0
        %2555 = vmatpush1.bf16.msra.mxu0 0
        %2556 = vmatprep.subr.bf16.mxu0 0
        %2557 = vmatpush1.bf16.msra.mxu0 0
        %2558 = vmatprep.subr.bf16.mxu0 0
        %2559 = vmatpush1.bf16.msra.mxu0 0
        %2560 = vmatprep.subr.bf16.mxu0 0
        %2561 = vmatpush1.bf16.msra.mxu0 0
        %2562 = vmatprep.subr.bf16.mxu0 0
        %2563 = vmatpush1.bf16.msra.mxu0 0
        %2564 = vmatprep.subr.bf16.mxu0 0
        %2565 = vmatpush1.bf16.msra.mxu0 0
        %2566 = vmatprep.subr.bf16.mxu0 0
        %2567 = vmatpush1.bf16.msra.mxu0 0
        %2568 = vmatprep.mubr.bf16.mxu0 0
        %2569 = vmatmul.mubr.bf16.gmra.mrb[0].mxu0 %v2486
        %v2570 = vpop.f32.mrb[0].mxu0
        %v2571 = vadd.f32 0.0, %v2570
        %v2572 = vpop.f32.mrb[0].mxu0
        %v2573 = vpop.f32.mrb[0].mxu0
        %v2574 = vadd.f32 0.0, %v2573
        %v2575 = vpop.f32.mrb[0].mxu0
        %2576 = vmatprep.mubr.bf16.mxu0 0
        %2577 = vmatmul.mubr.bf16.gmra.mrb[0].mxu0 %v2489
        %v2578 = vpop.f32.mrb[0].mxu0
        %v2579 = vadd.f32 0.0, %v2578
        %v2580 = vpop.f32.mrb[0].mxu0
        %v2581 = vpop.f32.mrb[0].mxu0
        %v2582 = vadd.f32 0.0, %v2581
        %v2583 = vpop.f32.mrb[0].mxu0
        %2584 = vmatprep.mubr.bf16.mxu0 0
        %2585 = vmatmul.mubr.bf16.gmra.mrb[0].mxu0 %v2492
        %v2586 = vpop.f32.mrb[0].mxu0
        %v2587 = vadd.f32 0.0, %v2586
        %v2588 = vpop.f32.mrb[0].mxu0
        %v2589 = vpop.f32.mrb[0].mxu0
        %v2590 = vadd.f32 0.0, %v2589
        %v2591 = vpop.f32.mrb[0].mxu0
        %2592 = vmatprep.mubr.bf16.mxu0 0
        %2593 = vmatmul.mubr.bf16.gmra.mrb[0].mxu0 %v2495
        %v2594 = vpop.f32.mrb[0].mxu0
        %v2595 = vadd.f32 0.0, %v2594
        %v2596 = vpop.f32.mrb[0].mxu0
        %v2597 = vpop.f32.mrb[0].mxu0
        %v2598 = vadd.f32 0.0, %v2597
        %v2599 = vpop.f32.mrb[0].mxu0
        %2600 = vmatprep.mubr.bf16.mxu0 0
        %2601 = vmatmul.mubr.bf16.gmra.mrb[0].mxu0 %v2498
        %v2602 = vpop.f32.mrb[0].mxu0
        %v2603 = vadd.f32 0.0, %v2602
        %v2604 = vpop.f32.mrb[0].mxu0
        %v2605 = vpop.f32.mrb[0].mxu0
        %v2606 = vadd.f32 0.0, %v2605
        %v2607 = vpop.f32.mrb[0].mxu0
        %2608 = vmatprep.mubr.bf16.mxu0 0
        %2609 = vmatmul.mubr.bf16.gmra.mrb[0].mxu0 %v2501
        %v2610 = vpop.f32.mrb[0].mxu0
        %v2611 = vadd.f32 0.0, %v2610
        %v2612 = vpop.f32.mrb[0].mxu0
        %v2613 = vpop.f32.mrb[0].mxu0
        %v2614 = vadd.f32 0.0, %v2613
        %v2615 = vpop.f32.mrb[0].mxu0
        %2616 = vmatprep.mubr.bf16.mxu0 0
        %2617 = vmatmul.mubr.bf16.gmra.mrb[0].mxu0 %v2504
        %v2618 = vpop.f32.mrb[0].mxu0
        %v2619 = vadd.f32 0.0, %v2618
        %v2620 = vpop.f32.mrb[0].mxu0
        %v2621 = vpop.f32.mrb[0].mxu0
        %v2622 = vadd.f32 0.0, %v2621
        %v2623 = vpop.f32.mrb[0].mxu0
        %2624 = vmatprep.mubr.bf16.mxu0 0
        %2625 = vmatmul.mubr.bf16.gmra.mrb[0].mxu0 %v2507
        %v2626 = vpop.f32.mrb[0].mxu0
        %v2627 = vadd.f32 0.0, %v2626
        %v2628 = vpop.f32.mrb[0].mxu0
        %v2629 = vpop.f32.mrb[0].mxu0
        %v2630 = vadd.f32 0.0, %v2629
        %v2631 = vpop.f32.mrb[0].mxu0
        %2632 = vmatprep.mubr.bf16.mxu0 0
        %2633 = vmatmul.mubr.bf16.gmra.mrb[0].mxu0 %v2510
        %v2634 = vpop.f32.mrb[0].mxu0
        %v2635 = vadd.f32 0.0, %v2634
        %v2636 = vpop.f32.mrb[0].mxu0
        %v2637 = vpop.f32.mrb[0].mxu0
        %v2638 = vadd.f32 0.0, %v2637
        %v2639 = vpop.f32.mrb[0].mxu0
        %2640 = vmatprep.mubr.bf16.mxu0 0
        %2641 = vmatmul.mubr.bf16.gmra.mrb[0].mxu0 %v2513
        %v2642 = vpop.f32.mrb[0].mxu0
        %v2643 = vadd.f32 0.0, %v2642
        %v2644 = vpop.f32.mrb[0].mxu0
        %v2645 = vpop.f32.mrb[0].mxu0
        %v2646 = vadd.f32 0.0, %v2645
        %v2647 = vpop.f32.mrb[0].mxu0
        %2648 = vmatprep.mubr.bf16.mxu0 0
        %2649 = vmatmul.mubr.bf16.gmra.mrb[0].mxu0 %v2516
        %v2650 = vpop.f32.mrb[0].mxu0
        %v2651 = vadd.f32 0.0, %v2650
        %v2652 = vpop.f32.mrb[0].mxu0
        %v2653 = vpop.f32.mrb[0].mxu0
        %v2654 = vadd.f32 0.0, %v2653
        %v2655 = vpop.f32.mrb[0].mxu0
        %2656 = vmatprep.mubr.bf16.mxu0 0
        %2657 = vmatmul.mubr.bf16.gmra.mrb[0].mxu0 %v2519
        %v2658 = vpop.f32.mrb[0].mxu0
        %v2659 = vadd.f32 0.0, %v2658
        %v2660 = vpop.f32.mrb[0].mxu0
        %v2661 = vpop.f32.mrb[0].mxu0
        %v2662 = vadd.f32 0.0, %v2661
        %v2663 = vpop.f32.mrb[0].mxu0
        %2664 = vmatprep.mubr.bf16.mxu0 0
        %2665 = vmatmul.mubr.bf16.gmra.mrb[0].mxu0 %v2522
        %v2666 = vpop.f32.mrb[0].mxu0
        %v2667 = vadd.f32 0.0, %v2666
        %v2668 = vpop.f32.mrb[0].mxu0
        %v2669 = vpop.f32.mrb[0].mxu0
        %v2670 = vadd.f32 0.0, %v2669
        %v2671 = vpop.f32.mrb[0].mxu0
        %2672 = vmatprep.mubr.bf16.mxu0 0
        %2673 = vmatmul.mubr.bf16.gmra.mrb[0].mxu0 %v2525
        %v2674 = vpop.f32.mrb[0].mxu0
        %v2675 = vadd.f32 0.0, %v2674
        %v2676 = vpop.f32.mrb[0].mxu0
        %v2677 = vpop.f32.mrb[0].mxu0
        %v2678 = vadd.f32 0.0, %v2677
        %v2679 = vpop.f32.mrb[0].mxu0
        %2680 = vmatprep.mubr.bf16.mxu0 0
        %2681 = vmatmul.mubr.bf16.gmra.mrb[0].mxu0 %v2528
        %v2682 = vpop.f32.mrb[0].mxu0
        %v2683 = vadd.f32 0.0, %v2682
        %v2684 = vpop.f32.mrb[0].mxu0
        %v2685 = vpop.f32.mrb[0].mxu0
        %v2686 = vadd.f32 0.0, %v2685
        %v2687 = vpop.f32.mrb[0].mxu0
        %2688 = vmatprep.mubr.bf16.mxu0 0
        %2689 = vmatmul.mubr.bf16.gmra.mrb[0].mxu0 %v2531
        %v2690 = vpop.f32.mrb[0].mxu0
        %v2691 = vadd.f32 0.0, %v2690
        %v2692 = vpop.f32.mrb[0].mxu0
        %v2693 = vpop.f32.mrb[0].mxu0
        %v2694 = vadd.f32 0.0, %v2693
        %v2695 = vpop.f32.mrb[0].mxu0
        %2696 = vdwg.mxu0
        %v2697 = vadd.f32 %v1971, %v2571
        %v2698 = vadd.f32 %v1972, %v2574
        %v2699 = vadd.f32 %v1973, %v2579
        %v2700 = vadd.f32 %v1974, %v2582
        %v2701 = vadd.f32 %v1975, %v2587
        %v2702 = vadd.f32 %v1976, %v2590
        %v2703 = vadd.f32 %v1977, %v2595
        %v2704 = vadd.f32 %v1978, %v2598
        %v2705 = vadd.f32 %v1979, %v2603
        %v2706 = vadd.f32 %v1980, %v2606
        %v2707 = vadd.f32 %v1981, %v2611
        %v2708 = vadd.f32 %v1982, %v2614
        %v2709 = vadd.f32 %v1983, %v2619
        %v2710 = vadd.f32 %v1984, %v2622
        %v2711 = vadd.f32 %v1985, %v2627
        %v2712 = vadd.f32 %v1986, %v2630
        %v2713 = vadd.f32 %v1987, %v2635
        %v2714 = vadd.f32 %v1988, %v2638
        %v2715 = vadd.f32 %v1989, %v2643
        %v2716 = vadd.f32 %v1990, %v2646
        %v2717 = vadd.f32 %v1991, %v2651
        %v2718 = vadd.f32 %v1992, %v2654
        %v2719 = vadd.f32 %v1993, %v2659
        %v2720 = vadd.f32 %v1994, %v2662
        %v2721 = vadd.f32 %v1995, %v2667
        %v2722 = vadd.f32 %v1996, %v2670
        %v2723 = vadd.f32 %v1997, %v2675
        %v2724 = vadd.f32 %v1998, %v2678
        %v2725 = vadd.f32 %v1999, %v2683
        %v2726 = vadd.f32 %v2000, %v2686
        %v2727 = vadd.f32 %v2001, %v2691
        %v2728 = vadd.f32 %v2002, %v2694
        %v2729 = vld [vmem:[%s1644] sm:$0xe]
        %v2730 = vld [vmem:[%s1644 + $0xc] sm:$0xe]
        %v2731 = vld [vmem:[%s1644 + $0x18] sm:$0xe]
        %v2732 = vld [vmem:[%s1644 + $0x24] sm:$0xe]
        %v2733 = vld [vmem:[%s1644 + $0x30] sm:$0xe]
        %v2734 = vld [vmem:[%s1644 + $0x3c] sm:$0xe]
        %v2735 = vld [vmem:[%s1644 + $0x48] sm:$0xe]
        %v2736 = vld [vmem:[%s1644 + $0x54] sm:$0xe]
        %v2737 = vld [vmem:[%s1644 + $0x60] sm:$0xe]
        %v2738 = vld [vmem:[%s1644 + $0x6c] sm:$0xe]
        %v2739 = vld [vmem:[%s1644 + $0x78] sm:$0xe]
        %v2740 = vld [vmem:[%s1644 + $0x84] sm:$0xe]
        %v2741 = vld [vmem:[%s1644 + $0x90] sm:$0xe]
        %v2742 = vld [vmem:[%s1644 + $0x9c] sm:$0xe]
        %v2743 = vld [vmem:[%s1644 + $0xa8] sm:$0xe]
        %v2744 = vld [vmem:[%s1644 + $0xb4] sm:$0xe]
        %v2793 = vrot.slane %v2729, 5
        %v2794 = vrot.slane %v2793, 4
        %v2795 = vrot.slane %v2004, 5
        %v2796 = vsel %vm1234, %v2794, %v2795
        %v2797 = vrot.slane %v2795, 4
        %v2798 = vrot.slane %v2005, 5
        %v2799 = vsel %vm1234, %v2797, %v2798
        %v2800 = vrot.slane %v2730, 5
        %v2801 = vrot.slane %v2800, 4
        %v2802 = vrot.slane %v2007, 5
        %v2803 = vsel %vm1234, %v2801, %v2802
        %v2804 = vrot.slane %v2802, 4
        %v2805 = vrot.slane %v2008, 5
        %v2806 = vsel %vm1234, %v2804, %v2805
        %v2807 = vrot.slane %v2731, 5
        %v2808 = vrot.slane %v2807, 4
        %v2809 = vrot.slane %v2010, 5
        %v2810 = vsel %vm1234, %v2808, %v2809
        %v2811 = vrot.slane %v2809, 4
        %v2812 = vrot.slane %v2011, 5
        %v2813 = vsel %vm1234, %v2811, %v2812
        %v2814 = vrot.slane %v2732, 5
        %v2815 = vrot.slane %v2814, 4
        %v2816 = vrot.slane %v2013, 5
        %v2817 = vsel %vm1234, %v2815, %v2816
        %v2818 = vrot.slane %v2816, 4
        %v2819 = vrot.slane %v2014, 5
        %v2820 = vsel %vm1234, %v2818, %v2819
        %v2821 = vrot.slane %v2733, 5
        %v2822 = vrot.slane %v2821, 4
        %v2823 = vrot.slane %v2016, 5
        %v2824 = vsel %vm1234, %v2822, %v2823
        %v2825 = vrot.slane %v2823, 4
        %v2826 = vrot.slane %v2017, 5
        %v2827 = vsel %vm1234, %v2825, %v2826
        %v2828 = vrot.slane %v2734, 5
        %v2829 = vrot.slane %v2828, 4
        %v2830 = vrot.slane %v2019, 5
        %v2831 = vsel %vm1234, %v2829, %v2830
        %v2832 = vrot.slane %v2830, 4
        %v2833 = vrot.slane %v2020, 5
        %v2834 = vsel %vm1234, %v2832, %v2833
        %v2835 = vrot.slane %v2735, 5
        %v2836 = vrot.slane %v2835, 4
        %v2837 = vrot.slane %v2022, 5
        %v2838 = vsel %vm1234, %v2836, %v2837
        %v2839 = vrot.slane %v2837, 4
        %v2840 = vrot.slane %v2023, 5
        %v2841 = vsel %vm1234, %v2839, %v2840
        %v2842 = vrot.slane %v2736, 5
        %v2843 = vrot.slane %v2842, 4
        %v2844 = vrot.slane %v2025, 5
        %v2845 = vsel %vm1234, %v2843, %v2844
        %v2846 = vrot.slane %v2844, 4
        %v2847 = vrot.slane %v2026, 5
        %v2848 = vsel %vm1234, %v2846, %v2847
        %v2849 = vrot.slane %v2737, 5
        %v2850 = vrot.slane %v2849, 4
        %v2851 = vrot.slane %v2028, 5
        %v2852 = vsel %vm1234, %v2850, %v2851
        %v2853 = vrot.slane %v2851, 4
        %v2854 = vrot.slane %v2029, 5
        %v2855 = vsel %vm1234, %v2853, %v2854
        %v2856 = vrot.slane %v2738, 5
        %v2857 = vrot.slane %v2856, 4
        %v2858 = vrot.slane %v2031, 5
        %v2859 = vsel %vm1234, %v2857, %v2858
        %v2860 = vrot.slane %v2858, 4
        %v2861 = vrot.slane %v2032, 5
        %v2862 = vsel %vm1234, %v2860, %v2861
        %v2863 = vrot.slane %v2739, 5
        %v2864 = vrot.slane %v2863, 4
        %v2865 = vrot.slane %v2034, 5
        %v2866 = vsel %vm1234, %v2864, %v2865
        %v2867 = vrot.slane %v2865, 4
        %v2868 = vrot.slane %v2035, 5
        %v2869 = vsel %vm1234, %v2867, %v2868
        %v2870 = vrot.slane %v2740, 5
        %v2871 = vrot.slane %v2870, 4
        %v2872 = vrot.slane %v2037, 5
        %v2873 = vsel %vm1234, %v2871, %v2872
        %v2874 = vrot.slane %v2872, 4
        %v2875 = vrot.slane %v2038, 5
        %v2876 = vsel %vm1234, %v2874, %v2875
        %v2877 = vrot.slane %v2741, 5
        %v2878 = vrot.slane %v2877, 4
        %v2879 = vrot.slane %v2040, 5
        %v2880 = vsel %vm1234, %v2878, %v2879
        %v2881 = vrot.slane %v2879, 4
        %v2882 = vrot.slane %v2041, 5
        %v2883 = vsel %vm1234, %v2881, %v2882
        %v2884 = vrot.slane %v2742, 5
        %v2885 = vrot.slane %v2884, 4
        %v2886 = vrot.slane %v2043, 5
        %v2887 = vsel %vm1234, %v2885, %v2886
        %v2888 = vrot.slane %v2886, 4
        %v2889 = vrot.slane %v2044, 5
        %v2890 = vsel %vm1234, %v2888, %v2889
        %v2891 = vrot.slane %v2743, 5
        %v2892 = vrot.slane %v2891, 4
        %v2893 = vrot.slane %v2046, 5
        %v2894 = vsel %vm1234, %v2892, %v2893
        %v2895 = vrot.slane %v2893, 4
        %v2896 = vrot.slane %v2047, 5
        %v2897 = vsel %vm1234, %v2895, %v2896
        %v2898 = vrot.slane %v2744, 5
        %v2899 = vrot.slane %v2898, 4
        %v2900 = vrot.slane %v2049, 5
        %v2901 = vsel %vm1234, %v2899, %v2900
        %v2902 = vrot.slane %v2900, 4
        %v2903 = vrot.slane %v2050, 5
        %v2904 = vsel %vm1234, %v2902, %v2903
        %s2905 = scalar_lea.vmem %s1, 10
        %v2906 = vld [vmem:[%s2905] sm:$0x3]
        %v2907 = vunpack.c.l.b16 %v2796
        %v2908 = vunpack.c.l.b16 %v2799
        %v2909 = vunpack.c.l.b16 %v2803
        %v2910 = vunpack.c.l.b16 %v2806
        %v2911 = vunpack.c.l.b16 %v2810
        %v2912 = vunpack.c.l.b16 %v2813
        %v2913 = vunpack.c.l.b16 %v2817
        %v2914 = vunpack.c.l.b16 %v2820
        %v2915 = vunpack.c.l.b16 %v2824
        %v2916 = vunpack.c.l.b16 %v2827
        %v2917 = vunpack.c.l.b16 %v2831
        %v2918 = vunpack.c.l.b16 %v2834
        %v2919 = vunpack.c.l.b16 %v2838
        %v2920 = vunpack.c.l.b16 %v2841
        %v2921 = vunpack.c.l.b16 %v2845
        %v2922 = vunpack.c.l.b16 %v2848
        %v2923 = vunpack.c.l.b16 %v2852
        %v2924 = vunpack.c.l.b16 %v2855
        %v2925 = vunpack.c.l.b16 %v2859
        %v2926 = vunpack.c.l.b16 %v2862
        %v2927 = vunpack.c.l.b16 %v2866
        %v2928 = vunpack.c.l.b16 %v2869
        %v2929 = vunpack.c.l.b16 %v2873
        %v2930 = vunpack.c.l.b16 %v2876
        %v2931 = vunpack.c.l.b16 %v2880
        %v2932 = vunpack.c.l.b16 %v2883
        %v2933 = vunpack.c.l.b16 %v2887
        %v2934 = vunpack.c.l.b16 %v2890
        %v2935 = vunpack.c.l.b16 %v2894
        %v2936 = vunpack.c.l.b16 %v2897
        %v2937 = vunpack.c.l.b16 %v2901
        %v2938 = vunpack.c.l.b16 %v2904
        %v2939 = vpack.c.b16 %v2908, %v2907
        %v2940 = vpack.c.b16 %v2910, %v2909
        %v2941 = vpack.c.b16 %v2912, %v2911
        %v2942 = vpack.c.b16 %v2914, %v2913
        %v2943 = vpack.c.b16 %v2916, %v2915
        %v2944 = vpack.c.b16 %v2918, %v2917
        %v2945 = vpack.c.b16 %v2920, %v2919
        %v2946 = vpack.c.b16 %v2922, %v2921
        %v2947 = vpack.c.b16 %v2924, %v2923
        %v2948 = vpack.c.b16 %v2926, %v2925
        %v2949 = vpack.c.b16 %v2928, %v2927
        %v2950 = vpack.c.b16 %v2930, %v2929
        %v2951 = vpack.c.b16 %v2932, %v2931
        %v2952 = vpack.c.b16 %v2934, %v2933
        %v2953 = vpack.c.b16 %v2936, %v2935
        %v2954 = vpack.c.b16 %v2938, %v2937
        %v2956 = vsel %vm675, %v2939, 0
        %v2959 = vsel %vm675, %v2940, 0
        %v2962 = vsel %vm675, %v2941, 0
        %v2965 = vsel %vm675, %v2942, 0
        %v2968 = vsel %vm675, %v2943, 0
        %v2971 = vsel %vm675, %v2944, 0
        %v2974 = vsel %vm675, %v2945, 0
        %v2977 = vsel %vm675, %v2946, 0
        %v2980 = vsel %vm675, %v2947, 0
        %v2983 = vsel %vm675, %v2948, 0
        %v2986 = vsel %vm675, %v2949, 0
        %v2989 = vsel %vm675, %v2950, 0
        %v2992 = vsel %vm675, %v2951, 0
        %v2995 = vsel %vm675, %v2952, 0
        %v2998 = vsel %vm675, %v2953, 0
        %v3001 = vsel %vm675, %v2954, 0
        %v3004 = vand.u32 %v2906, %v727
        %3006 = vmatprep.subr.bf16.mxu0 0
        %3007 = vmatpush1.bf16.msra.mxu0 %v3004
        %3008 = vmatprep.subr.bf16.mxu0 0
        %3009 = vmatpush1.bf16.msra.mxu0 0
        %3010 = vmatprep.subr.bf16.mxu0 0
        %3011 = vmatpush1.bf16.msra.mxu0 0
        %3012 = vmatprep.subr.bf16.mxu0 0
        %3013 = vmatpush1.bf16.msra.mxu0 0
        %3014 = vmatprep.subr.bf16.mxu0 0
        %3015 = vmatpush1.bf16.msra.mxu0 0
        %3016 = vmatprep.subr.bf16.mxu0 0
        %3017 = vmatpush1.bf16.msra.mxu0 0
        %3018 = vmatprep.subr.bf16.mxu0 0
        %3019 = vmatpush1.bf16.msra.mxu0 0
        %3020 = vmatprep.subr.bf16.mxu0 0
        %3021 = vmatpush1.bf16.msra.mxu0 0
        %3022 = vmatprep.subr.bf16.mxu0 0
        %3023 = vmatpush1.bf16.msra.mxu0 0
        %3024 = vmatprep.subr.bf16.mxu0 0
        %3025 = vmatpush1.bf16.msra.mxu0 0
        %3026 = vmatprep.subr.bf16.mxu0 0
        %3027 = vmatpush1.bf16.msra.mxu0 0
        %3028 = vmatprep.subr.bf16.mxu0 0
        %3029 = vmatpush1.bf16.msra.mxu0 0
        %3030 = vmatprep.subr.bf16.mxu0 0
        %3031 = vmatpush1.bf16.msra.mxu0 0
        %3032 = vmatprep.subr.bf16.mxu0 0
        %3033 = vmatpush1.bf16.msra.mxu0 0
        %3034 = vmatprep.subr.bf16.mxu0 0
        %3035 = vmatpush1.bf16.msra.mxu0 0
        %3036 = vmatprep.subr.bf16.mxu0 0
        %3037 = vmatpush1.bf16.msra.mxu0 0
        %3038 = vmatprep.mubr.bf16.mxu0 0
        %3039 = vmatmul.mubr.bf16.gmra.mrb[0].mxu0 %v2956
        %v3040 = vpop.f32.mrb[0].mxu0
        %v3041 = vadd.f32 0.0, %v3040
        %v3042 = vpop.f32.mrb[0].mxu0
        %v3043 = vpop.f32.mrb[0].mxu0
        %v3044 = vadd.f32 0.0, %v3043
        %v3045 = vpop.f32.mrb[0].mxu0
        %3046 = vmatprep.mubr.bf16.mxu0 0
        %3047 = vmatmul.mubr.bf16.gmra.mrb[0].mxu0 %v2959
        %v3048 = vpop.f32.mrb[0].mxu0
        %v3049 = vadd.f32 0.0, %v3048
        %v3050 = vpop.f32.mrb[0].mxu0
        %v3051 = vpop.f32.mrb[0].mxu0
        %v3052 = vadd.f32 0.0, %v3051
        %v3053 = vpop.f32.mrb[0].mxu0
        %3054 = vmatprep.mubr.bf16.mxu0 0
        %3055 = vmatmul.mubr.bf16.gmra.mrb[0].mxu0 %v2962
        %v3056 = vpop.f32.mrb[0].mxu0
        %v3057 = vadd.f32 0.0, %v3056
        %v3058 = vpop.f32.mrb[0].mxu0
        %v3059 = vpop.f32.mrb[0].mxu0
        %v3060 = vadd.f32 0.0, %v3059
        %v3061 = vpop.f32.mrb[0].mxu0
        %3062 = vmatprep.mubr.bf16.mxu0 0
        %3063 = vmatmul.mubr.bf16.gmra.mrb[0].mxu0 %v2965
        %v3064 = vpop.f32.mrb[0].mxu0
        %v3065 = vadd.f32 0.0, %v3064
        %v3066 = vpop.f32.mrb[0].mxu0
        %v3067 = vpop.f32.mrb[0].mxu0
        %v3068 = vadd.f32 0.0, %v3067
        %v3069 = vpop.f32.mrb[0].mxu0
        %3070 = vmatprep.mubr.bf16.mxu0 0
        %3071 = vmatmul.mubr.bf16.gmra.mrb[0].mxu0 %v2968
        %v3072 = vpop.f32.mrb[0].mxu0
        %v3073 = vadd.f32 0.0, %v3072
        %v3074 = vpop.f32.mrb[0].mxu0
        %v3075 = vpop.f32.mrb[0].mxu0
        %v3076 = vadd.f32 0.0, %v3075
        %v3077 = vpop.f32.mrb[0].mxu0
        %3078 = vmatprep.mubr.bf16.mxu0 0
        %3079 = vmatmul.mubr.bf16.gmra.mrb[0].mxu0 %v2971
        %v3080 = vpop.f32.mrb[0].mxu0
        %v3081 = vadd.f32 0.0, %v3080
        %v3082 = vpop.f32.mrb[0].mxu0
        %v3083 = vpop.f32.mrb[0].mxu0
        %v3084 = vadd.f32 0.0, %v3083
        %v3085 = vpop.f32.mrb[0].mxu0
        %3086 = vmatprep.mubr.bf16.mxu0 0
        %3087 = vmatmul.mubr.bf16.gmra.mrb[0].mxu0 %v2974
        %v3088 = vpop.f32.mrb[0].mxu0
        %v3089 = vadd.f32 0.0, %v3088
        %v3090 = vpop.f32.mrb[0].mxu0
        %v3091 = vpop.f32.mrb[0].mxu0
        %v3092 = vadd.f32 0.0, %v3091
        %v3093 = vpop.f32.mrb[0].mxu0
        %3094 = vmatprep.mubr.bf16.mxu0 0
        %3095 = vmatmul.mubr.bf16.gmra.mrb[0].mxu0 %v2977
        %v3096 = vpop.f32.mrb[0].mxu0
        %v3097 = vadd.f32 0.0, %v3096
        %v3098 = vpop.f32.mrb[0].mxu0
        %v3099 = vpop.f32.mrb[0].mxu0
        %v3100 = vadd.f32 0.0, %v3099
        %v3101 = vpop.f32.mrb[0].mxu0
        %3102 = vmatprep.mubr.bf16.mxu0 0
        %3103 = vmatmul.mubr.bf16.gmra.mrb[0].mxu0 %v2980
        %v3104 = vpop.f32.mrb[0].mxu0
        %v3105 = vadd.f32 0.0, %v3104
        %v3106 = vpop.f32.mrb[0].mxu0
        %v3107 = vpop.f32.mrb[0].mxu0
        %v3108 = vadd.f32 0.0, %v3107
        %v3109 = vpop.f32.mrb[0].mxu0
        %3110 = vmatprep.mubr.bf16.mxu0 0
        %3111 = vmatmul.mubr.bf16.gmra.mrb[0].mxu0 %v2983
        %v3112 = vpop.f32.mrb[0].mxu0
        %v3113 = vadd.f32 0.0, %v3112
        %v3114 = vpop.f32.mrb[0].mxu0
        %v3115 = vpop.f32.mrb[0].mxu0
        %v3116 = vadd.f32 0.0, %v3115
        %v3117 = vpop.f32.mrb[0].mxu0
        %3118 = vmatprep.mubr.bf16.mxu0 0
        %3119 = vmatmul.mubr.bf16.gmra.mrb[0].mxu0 %v2986
        %v3120 = vpop.f32.mrb[0].mxu0
        %v3121 = vadd.f32 0.0, %v3120
        %v3122 = vpop.f32.mrb[0].mxu0
        %v3123 = vpop.f32.mrb[0].mxu0
        %v3124 = vadd.f32 0.0, %v3123
        %v3125 = vpop.f32.mrb[0].mxu0
        %3126 = vmatprep.mubr.bf16.mxu0 0
        %3127 = vmatmul.mubr.bf16.gmra.mrb[0].mxu0 %v2989
        %v3128 = vpop.f32.mrb[0].mxu0
        %v3129 = vadd.f32 0.0, %v3128
        %v3130 = vpop.f32.mrb[0].mxu0
        %v3131 = vpop.f32.mrb[0].mxu0
        %v3132 = vadd.f32 0.0, %v3131
        %v3133 = vpop.f32.mrb[0].mxu0
        %3134 = vmatprep.mubr.bf16.mxu0 0
        %3135 = vmatmul.mubr.bf16.gmra.mrb[0].mxu0 %v2992
        %v3136 = vpop.f32.mrb[0].mxu0
        %v3137 = vadd.f32 0.0, %v3136
        %v3138 = vpop.f32.mrb[0].mxu0
        %v3139 = vpop.f32.mrb[0].mxu0
        %v3140 = vadd.f32 0.0, %v3139
        %v3141 = vpop.f32.mrb[0].mxu0
        %3142 = vmatprep.mubr.bf16.mxu0 0
        %3143 = vmatmul.mubr.bf16.gmra.mrb[0].mxu0 %v2995
        %v3144 = vpop.f32.mrb[0].mxu0
        %v3145 = vadd.f32 0.0, %v3144
        %v3146 = vpop.f32.mrb[0].mxu0
        %v3147 = vpop.f32.mrb[0].mxu0
        %v3148 = vadd.f32 0.0, %v3147
        %v3149 = vpop.f32.mrb[0].mxu0
        %3150 = vmatprep.mubr.bf16.mxu0 0
        %3151 = vmatmul.mubr.bf16.gmra.mrb[0].mxu0 %v2998
        %v3152 = vpop.f32.mrb[0].mxu0
        %v3153 = vadd.f32 0.0, %v3152
        %v3154 = vpop.f32.mrb[0].mxu0
        %v3155 = vpop.f32.mrb[0].mxu0
        %v3156 = vadd.f32 0.0, %v3155
        %v3157 = vpop.f32.mrb[0].mxu0
        %3158 = vmatprep.mubr.bf16.mxu0 0
        %3159 = vmatmul.mubr.bf16.gmra.mrb[0].mxu0 %v3001
        %v3160 = vpop.f32.mrb[0].mxu0
        %v3161 = vadd.f32 0.0, %v3160
        %v3162 = vpop.f32.mrb[0].mxu0
        %v3163 = vpop.f32.mrb[0].mxu0
        %v3164 = vadd.f32 0.0, %v3163
        %v3165 = vpop.f32.mrb[0].mxu0
        %3166 = vdwg.mxu0
        %v3167 = vadd.f32 %v2697, %v3041
        %v3168 = vadd.f32 %v2698, %v3044
        %v3169 = vadd.f32 %v2699, %v3049
        %v3170 = vadd.f32 %v2700, %v3052
        %v3171 = vadd.f32 %v2701, %v3057
        %v3172 = vadd.f32 %v2702, %v3060
        %v3173 = vadd.f32 %v2703, %v3065
        %v3174 = vadd.f32 %v2704, %v3068
        %v3175 = vadd.f32 %v2705, %v3073
        %v3176 = vadd.f32 %v2706, %v3076
        %v3177 = vadd.f32 %v2707, %v3081
        %v3178 = vadd.f32 %v2708, %v3084
        %v3179 = vadd.f32 %v2709, %v3089
        %v3180 = vadd.f32 %v2710, %v3092
        %v3181 = vadd.f32 %v2711, %v3097
        %v3182 = vadd.f32 %v2712, %v3100
        %v3183 = vadd.f32 %v2713, %v3105
        %v3184 = vadd.f32 %v2714, %v3108
        %v3185 = vadd.f32 %v2715, %v3113
        %v3186 = vadd.f32 %v2716, %v3116
        %v3187 = vadd.f32 %v2717, %v3121
        %v3188 = vadd.f32 %v2718, %v3124
        %v3189 = vadd.f32 %v2719, %v3129
        %v3190 = vadd.f32 %v2720, %v3132
        %v3191 = vadd.f32 %v2721, %v3137
        %v3192 = vadd.f32 %v2722, %v3140
        %v3193 = vadd.f32 %v2723, %v3145
        %v3194 = vadd.f32 %v2724, %v3148
        %v3195 = vadd.f32 %v2725, %v3153
        %v3196 = vadd.f32 %v2726, %v3156
        %v3197 = vadd.f32 %v2727, %v3161
        %v3198 = vadd.f32 %v2728, %v3164
        %s3199 = sadd.s32 %s185, 2
        %s3200 = smul.u32 %s3199, 3
        %s3201 = smul.addr %s3200, 4
        %s3202 = scalar_lea.vmem %s182, %s3201
        %v3203 = vld [vmem:[%s3202] sm:$0xf]
        %v3204 = vld [vmem:[%s3202 + $0x4] sm:$0xf]
        %v3205 = vld [vmem:[%s3202 + $0xc] sm:$0xf]
        %v3206 = vld [vmem:[%s3202 + $0x10] sm:$0xf]
        %v3207 = vld [vmem:[%s3202 + $0x18] sm:$0xf]
        %v3208 = vld [vmem:[%s3202 + $0x1c] sm:$0xf]
        %v3209 = vld [vmem:[%s3202 + $0x24] sm:$0xf]
        %v3210 = vld [vmem:[%s3202 + $0x28] sm:$0xf]
        %v3211 = vld [vmem:[%s3202 + $0x30] sm:$0xf]
        %v3212 = vld [vmem:[%s3202 + $0x34] sm:$0xf]
        %v3213 = vld [vmem:[%s3202 + $0x3c] sm:$0xf]
        %v3214 = vld [vmem:[%s3202 + $0x40] sm:$0xf]
        %v3215 = vld [vmem:[%s3202 + $0x48] sm:$0xf]
        %v3216 = vld [vmem:[%s3202 + $0x4c] sm:$0xf]
        %v3217 = vld [vmem:[%s3202 + $0x54] sm:$0xf]
        %v3218 = vld [vmem:[%s3202 + $0x58] sm:$0xf]
        %v3219 = vld [vmem:[%s3202 + $0x60] sm:$0xf]
        %v3220 = vld [vmem:[%s3202 + $0x64] sm:$0xf]
        %v3221 = vld [vmem:[%s3202 + $0x6c] sm:$0xf]
        %v3222 = vld [vmem:[%s3202 + $0x70] sm:$0xf]
        %v3223 = vld [vmem:[%s3202 + $0x78] sm:$0xf]
        %v3224 = vld [vmem:[%s3202 + $0x7c] sm:$0xf]
        %v3225 = vld [vmem:[%s3202 + $0x84] sm:$0xf]
        %v3226 = vld [vmem:[%s3202 + $0x88] sm:$0xf]
        %v3227 = vld [vmem:[%s3202 + $0x90] sm:$0xf]
        %v3228 = vld [vmem:[%s3202 + $0x94] sm:$0xf]
        %v3229 = vld [vmem:[%s3202 + $0x9c] sm:$0xf]
        %v3230 = vld [vmem:[%s3202 + $0xa0] sm:$0xf]
        %v3231 = vld [vmem:[%s3202 + $0xa8] sm:$0xf]
        %v3232 = vld [vmem:[%s3202 + $0xac] sm:$0xf]
        %v3233 = vld [vmem:[%s3202 + $0xb4] sm:$0xf]
        %v3234 = vld [vmem:[%s3202 + $0xb8] sm:$0xf]
        %s3235 = scalar_lea.vmem %s1, 12
        %v3236 = vld [vmem:[%s3235] sm:$0x3]
        %v3269 = vunpack.c.l.b16 %v3203
        %v3270 = vunpack.c.l.b16 %v3204
        %v3271 = vunpack.c.l.b16 %v3205
        %v3272 = vunpack.c.l.b16 %v3206
        %v3273 = vunpack.c.l.b16 %v3207
        %v3274 = vunpack.c.l.b16 %v3208
        %v3275 = vunpack.c.l.b16 %v3209
        %v3276 = vunpack.c.l.b16 %v3210
        %v3277 = vunpack.c.l.b16 %v3211
        %v3278 = vunpack.c.l.b16 %v3212
        %v3279 = vunpack.c.l.b16 %v3213
        %v3280 = vunpack.c.l.b16 %v3214
        %v3281 = vunpack.c.l.b16 %v3215
        %v3282 = vunpack.c.l.b16 %v3216
        %v3283 = vunpack.c.l.b16 %v3217
        %v3284 = vunpack.c.l.b16 %v3218
        %v3285 = vunpack.c.l.b16 %v3219
        %v3286 = vunpack.c.l.b16 %v3220
        %v3287 = vunpack.c.l.b16 %v3221
        %v3288 = vunpack.c.l.b16 %v3222
        %v3289 = vunpack.c.l.b16 %v3223
        %v3290 = vunpack.c.l.b16 %v3224
        %v3291 = vunpack.c.l.b16 %v3225
        %v3292 = vunpack.c.l.b16 %v3226
        %v3293 = vunpack.c.l.b16 %v3227
        %v3294 = vunpack.c.l.b16 %v3228
        %v3295 = vunpack.c.l.b16 %v3229
        %v3296 = vunpack.c.l.b16 %v3230
        %v3297 = vunpack.c.l.b16 %v3231
        %v3298 = vunpack.c.l.b16 %v3232
        %v3299 = vunpack.c.l.b16 %v3233
        %v3300 = vunpack.c.l.b16 %v3234
        %v3301 = vpack.c.b16 %v3270, %v3269
        %v3302 = vpack.c.b16 %v3272, %v3271
        %v3303 = vpack.c.b16 %v3274, %v3273
        %v3304 = vpack.c.b16 %v3276, %v3275
        %v3305 = vpack.c.b16 %v3278, %v3277
        %v3306 = vpack.c.b16 %v3280, %v3279
        %v3307 = vpack.c.b16 %v3282, %v3281
        %v3308 = vpack.c.b16 %v3284, %v3283
        %v3309 = vpack.c.b16 %v3286, %v3285
        %v3310 = vpack.c.b16 %v3288, %v3287
        %v3311 = vpack.c.b16 %v3290, %v3289
        %v3312 = vpack.c.b16 %v3292, %v3291
        %v3313 = vpack.c.b16 %v3294, %v3293
        %v3314 = vpack.c.b16 %v3296, %v3295
        %v3315 = vpack.c.b16 %v3298, %v3297
        %v3316 = vpack.c.b16 %v3300, %v3299
        %v3318 = vsel %vm675, %v3301, 0
        %v3321 = vsel %vm675, %v3302, 0
        %v3324 = vsel %vm675, %v3303, 0
        %v3327 = vsel %vm675, %v3304, 0
        %v3330 = vsel %vm675, %v3305, 0
        %v3333 = vsel %vm675, %v3306, 0
        %v3336 = vsel %vm675, %v3307, 0
        %v3339 = vsel %vm675, %v3308, 0
        %v3342 = vsel %vm675, %v3309, 0
        %v3345 = vsel %vm675, %v3310, 0
        %v3348 = vsel %vm675, %v3311, 0
        %v3351 = vsel %vm675, %v3312, 0
        %v3354 = vsel %vm675, %v3313, 0
        %v3357 = vsel %vm675, %v3314, 0
        %v3360 = vsel %vm675, %v3315, 0
        %v3363 = vsel %vm675, %v3316, 0
        %v3366 = vand.u32 %v3236, %v727
        %3368 = vmatprep.subr.bf16.mxu0 0
        %3369 = vmatpush1.bf16.msra.mxu0 %v3366
        %3370 = vmatprep.subr.bf16.mxu0 0
        %3371 = vmatpush1.bf16.msra.mxu0 0
        %3372 = vmatprep.subr.bf16.mxu0 0
        %3373 = vmatpush1.bf16.msra.mxu0 0
        %3374 = vmatprep.subr.bf16.mxu0 0
        %3375 = vmatpush1.bf16.msra.mxu0 0
        %3376 = vmatprep.subr.bf16.mxu0 0
        %3377 = vmatpush1.bf16.msra.mxu0 0
        %3378 = vmatprep.subr.bf16.mxu0 0
        %3379 = vmatpush1.bf16.msra.mxu0 0
        %3380 = vmatprep.subr.bf16.mxu0 0
        %3381 = vmatpush1.bf16.msra.mxu0 0
        %3382 = vmatprep.subr.bf16.mxu0 0
        %3383 = vmatpush1.bf16.msra.mxu0 0
        %3384 = vmatprep.subr.bf16.mxu0 0
        %3385 = vmatpush1.bf16.msra.mxu0 0
        %3386 = vmatprep.subr.bf16.mxu0 0
        %3387 = vmatpush1.bf16.msra.mxu0 0
        %3388 = vmatprep.subr.bf16.mxu0 0
        %3389 = vmatpush1.bf16.msra.mxu0 0
        %3390 = vmatprep.subr.bf16.mxu0 0
        %3391 = vmatpush1.bf16.msra.mxu0 0
        %3392 = vmatprep.subr.bf16.mxu0 0
        %3393 = vmatpush1.bf16.msra.mxu0 0
        %3394 = vmatprep.subr.bf16.mxu0 0
        %3395 = vmatpush1.bf16.msra.mxu0 0
        %3396 = vmatprep.subr.bf16.mxu0 0
        %3397 = vmatpush1.bf16.msra.mxu0 0
        %3398 = vmatprep.subr.bf16.mxu0 0
        %3399 = vmatpush1.bf16.msra.mxu0 0
        %3400 = vmatprep.mubr.bf16.mxu0 0
        %3401 = vmatmul.mubr.bf16.gmra.mrb[0].mxu0 %v3318
        %v3402 = vpop.f32.mrb[0].mxu0
        %v3403 = vadd.f32 0.0, %v3402
        %v3404 = vpop.f32.mrb[0].mxu0
        %v3405 = vpop.f32.mrb[0].mxu0
        %v3406 = vadd.f32 0.0, %v3405
        %v3407 = vpop.f32.mrb[0].mxu0
        %3408 = vmatprep.mubr.bf16.mxu0 0
        %3409 = vmatmul.mubr.bf16.gmra.mrb[0].mxu0 %v3321
        %v3410 = vpop.f32.mrb[0].mxu0
        %v3411 = vadd.f32 0.0, %v3410
        %v3412 = vpop.f32.mrb[0].mxu0
        %v3413 = vpop.f32.mrb[0].mxu0
        %v3414 = vadd.f32 0.0, %v3413
        %v3415 = vpop.f32.mrb[0].mxu0
        %3416 = vmatprep.mubr.bf16.mxu0 0
        %3417 = vmatmul.mubr.bf16.gmra.mrb[0].mxu0 %v3324
        %v3418 = vpop.f32.mrb[0].mxu0
        %v3419 = vadd.f32 0.0, %v3418
        %v3420 = vpop.f32.mrb[0].mxu0
        %v3421 = vpop.f32.mrb[0].mxu0
        %v3422 = vadd.f32 0.0, %v3421
        %v3423 = vpop.f32.mrb[0].mxu0
        %3424 = vmatprep.mubr.bf16.mxu0 0
        %3425 = vmatmul.mubr.bf16.gmra.mrb[0].mxu0 %v3327
        %v3426 = vpop.f32.mrb[0].mxu0
        %v3427 = vadd.f32 0.0, %v3426
        %v3428 = vpop.f32.mrb[0].mxu0
        %v3429 = vpop.f32.mrb[0].mxu0
        %v3430 = vadd.f32 0.0, %v3429
        %v3431 = vpop.f32.mrb[0].mxu0
        %3432 = vmatprep.mubr.bf16.mxu0 0
        %3433 = vmatmul.mubr.bf16.gmra.mrb[0].mxu0 %v3330
        %v3434 = vpop.f32.mrb[0].mxu0
        %v3435 = vadd.f32 0.0, %v3434
        %v3436 = vpop.f32.mrb[0].mxu0
        %v3437 = vpop.f32.mrb[0].mxu0
        %v3438 = vadd.f32 0.0, %v3437
        %v3439 = vpop.f32.mrb[0].mxu0
        %3440 = vmatprep.mubr.bf16.mxu0 0
        %3441 = vmatmul.mubr.bf16.gmra.mrb[0].mxu0 %v3333
        %v3442 = vpop.f32.mrb[0].mxu0
        %v3443 = vadd.f32 0.0, %v3442
        %v3444 = vpop.f32.mrb[0].mxu0
        %v3445 = vpop.f32.mrb[0].mxu0
        %v3446 = vadd.f32 0.0, %v3445
        %v3447 = vpop.f32.mrb[0].mxu0
        %3448 = vmatprep.mubr.bf16.mxu0 0
        %3449 = vmatmul.mubr.bf16.gmra.mrb[0].mxu0 %v3336
        %v3450 = vpop.f32.mrb[0].mxu0
        %v3451 = vadd.f32 0.0, %v3450
        %v3452 = vpop.f32.mrb[0].mxu0
        %v3453 = vpop.f32.mrb[0].mxu0
        %v3454 = vadd.f32 0.0, %v3453
        %v3455 = vpop.f32.mrb[0].mxu0
        %3456 = vmatprep.mubr.bf16.mxu0 0
        %3457 = vmatmul.mubr.bf16.gmra.mrb[0].mxu0 %v3339
        %v3458 = vpop.f32.mrb[0].mxu0
        %v3459 = vadd.f32 0.0, %v3458
        %v3460 = vpop.f32.mrb[0].mxu0
        %v3461 = vpop.f32.mrb[0].mxu0
        %v3462 = vadd.f32 0.0, %v3461
        %v3463 = vpop.f32.mrb[0].mxu0
        %3464 = vmatprep.mubr.bf16.mxu0 0
        %3465 = vmatmul.mubr.bf16.gmra.mrb[0].mxu0 %v3342
        %v3466 = vpop.f32.mrb[0].mxu0
        %v3467 = vadd.f32 0.0, %v3466
        %v3468 = vpop.f32.mrb[0].mxu0
        %v3469 = vpop.f32.mrb[0].mxu0
        %v3470 = vadd.f32 0.0, %v3469
        %v3471 = vpop.f32.mrb[0].mxu0
        %3472 = vmatprep.mubr.bf16.mxu0 0
        %3473 = vmatmul.mubr.bf16.gmra.mrb[0].mxu0 %v3345
        %v3474 = vpop.f32.mrb[0].mxu0
        %v3475 = vadd.f32 0.0, %v3474
        %v3476 = vpop.f32.mrb[0].mxu0
        %v3477 = vpop.f32.mrb[0].mxu0
        %v3478 = vadd.f32 0.0, %v3477
        %v3479 = vpop.f32.mrb[0].mxu0
        %3480 = vmatprep.mubr.bf16.mxu0 0
        %3481 = vmatmul.mubr.bf16.gmra.mrb[0].mxu0 %v3348
        %v3482 = vpop.f32.mrb[0].mxu0
        %v3483 = vadd.f32 0.0, %v3482
        %v3484 = vpop.f32.mrb[0].mxu0
        %v3485 = vpop.f32.mrb[0].mxu0
        %v3486 = vadd.f32 0.0, %v3485
        %v3487 = vpop.f32.mrb[0].mxu0
        %3488 = vmatprep.mubr.bf16.mxu0 0
        %3489 = vmatmul.mubr.bf16.gmra.mrb[0].mxu0 %v3351
        %v3490 = vpop.f32.mrb[0].mxu0
        %v3491 = vadd.f32 0.0, %v3490
        %v3492 = vpop.f32.mrb[0].mxu0
        %v3493 = vpop.f32.mrb[0].mxu0
        %v3494 = vadd.f32 0.0, %v3493
        %v3495 = vpop.f32.mrb[0].mxu0
        %3496 = vmatprep.mubr.bf16.mxu0 0
        %3497 = vmatmul.mubr.bf16.gmra.mrb[0].mxu0 %v3354
        %v3498 = vpop.f32.mrb[0].mxu0
        %v3499 = vadd.f32 0.0, %v3498
        %v3500 = vpop.f32.mrb[0].mxu0
        %v3501 = vpop.f32.mrb[0].mxu0
        %v3502 = vadd.f32 0.0, %v3501
        %v3503 = vpop.f32.mrb[0].mxu0
        %3504 = vmatprep.mubr.bf16.mxu0 0
        %3505 = vmatmul.mubr.bf16.gmra.mrb[0].mxu0 %v3357
        %v3506 = vpop.f32.mrb[0].mxu0
        %v3507 = vadd.f32 0.0, %v3506
        %v3508 = vpop.f32.mrb[0].mxu0
        %v3509 = vpop.f32.mrb[0].mxu0
        %v3510 = vadd.f32 0.0, %v3509
        %v3511 = vpop.f32.mrb[0].mxu0
        %3512 = vmatprep.mubr.bf16.mxu0 0
        %3513 = vmatmul.mubr.bf16.gmra.mrb[0].mxu0 %v3360
        %v3514 = vpop.f32.mrb[0].mxu0
        %v3515 = vadd.f32 0.0, %v3514
        %v3516 = vpop.f32.mrb[0].mxu0
        %v3517 = vpop.f32.mrb[0].mxu0
        %v3518 = vadd.f32 0.0, %v3517
        %v3519 = vpop.f32.mrb[0].mxu0
        %3520 = vmatprep.mubr.bf16.mxu0 0
        %3521 = vmatmul.mubr.bf16.gmra.mrb[0].mxu0 %v3363
        %v3522 = vpop.f32.mrb[0].mxu0
        %v3523 = vadd.f32 0.0, %v3522
        %v3524 = vpop.f32.mrb[0].mxu0
        %v3525 = vpop.f32.mrb[0].mxu0
        %v3526 = vadd.f32 0.0, %v3525
        %v3527 = vpop.f32.mrb[0].mxu0
        %3528 = vdwg.mxu0
        %v3529 = vadd.f32 %v3167, %v3403
        %v3530 = vadd.f32 %v3168, %v3406
        %v3531 = vadd.f32 %v3169, %v3411
        %v3532 = vadd.f32 %v3170, %v3414
        %v3533 = vadd.f32 %v3171, %v3419
        %v3534 = vadd.f32 %v3172, %v3422
        %v3535 = vadd.f32 %v3173, %v3427
        %v3536 = vadd.f32 %v3174, %v3430
        %v3537 = vadd.f32 %v3175, %v3435
        %v3538 = vadd.f32 %v3176, %v3438
        %v3539 = vadd.f32 %v3177, %v3443
        %v3540 = vadd.f32 %v3178, %v3446
        %v3541 = vadd.f32 %v3179, %v3451
        %v3542 = vadd.f32 %v3180, %v3454
        %v3543 = vadd.f32 %v3181, %v3459
        %v3544 = vadd.f32 %v3182, %v3462
        %v3545 = vadd.f32 %v3183, %v3467
        %v3546 = vadd.f32 %v3184, %v3470
        %v3547 = vadd.f32 %v3185, %v3475
        %v3548 = vadd.f32 %v3186, %v3478
        %v3549 = vadd.f32 %v3187, %v3483
        %v3550 = vadd.f32 %v3188, %v3486
        %v3551 = vadd.f32 %v3189, %v3491
        %v3552 = vadd.f32 %v3190, %v3494
        %v3553 = vadd.f32 %v3191, %v3499
        %v3554 = vadd.f32 %v3192, %v3502
        %v3555 = vadd.f32 %v3193, %v3507
        %v3556 = vadd.f32 %v3194, %v3510
        %v3557 = vadd.f32 %v3195, %v3515
        %v3558 = vadd.f32 %v3196, %v3518
        %v3559 = vadd.f32 %v3197, %v3523
        %v3560 = vadd.f32 %v3198, %v3526
        %v3561 = vld [vmem:[%s3202] sm:$0xf]
        %v3562 = vld [vmem:[%s3202 + $0x4] sm:$0xf]
        %v3563 = vld [vmem:[%s3202 + $0x8] sm:$0x1]
        %v3564 = vld [vmem:[%s3202 + $0xc] sm:$0xf]
        %v3565 = vld [vmem:[%s3202 + $0x10] sm:$0xf]
        %v3566 = vld [vmem:[%s3202 + $0x14] sm:$0x1]
        %v3567 = vld [vmem:[%s3202 + $0x18] sm:$0xf]
        %v3568 = vld [vmem:[%s3202 + $0x1c] sm:$0xf]
        %v3569 = vld [vmem:[%s3202 + $0x20] sm:$0x1]
        %v3570 = vld [vmem:[%s3202 + $0x24] sm:$0xf]
        %v3571 = vld [vmem:[%s3202 + $0x28] sm:$0xf]
        %v3572 = vld [vmem:[%s3202 + $0x2c] sm:$0x1]
        %v3573 = vld [vmem:[%s3202 + $0x30] sm:$0xf]
        %v3574 = vld [vmem:[%s3202 + $0x34] sm:$0xf]
        %v3575 = vld [vmem:[%s3202 + $0x38] sm:$0x1]
        %v3576 = vld [vmem:[%s3202 + $0x3c] sm:$0xf]
        %v3577 = vld [vmem:[%s3202 + $0x40] sm:$0xf]
        %v3578 = vld [vmem:[%s3202 + $0x44] sm:$0x1]
        %v3579 = vld [vmem:[%s3202 + $0x48] sm:$0xf]
        %v3580 = vld [vmem:[%s3202 + $0x4c] sm:$0xf]
        %v3581 = vld [vmem:[%s3202 + $0x50] sm:$0x1]
        %v3582 = vld [vmem:[%s3202 + $0x54] sm:$0xf]
        %v3583 = vld [vmem:[%s3202 + $0x58] sm:$0xf]
        %v3584 = vld [vmem:[%s3202 + $0x5c] sm:$0x1]
        %v3585 = vld [vmem:[%s3202 + $0x60] sm:$0xf]
        %v3586 = vld [vmem:[%s3202 + $0x64] sm:$0xf]
        %v3587 = vld [vmem:[%s3202 + $0x68] sm:$0x1]
        %v3588 = vld [vmem:[%s3202 + $0x6c] sm:$0xf]
        %v3589 = vld [vmem:[%s3202 + $0x70] sm:$0xf]
        %v3590 = vld [vmem:[%s3202 + $0x74] sm:$0x1]
        %v3591 = vld [vmem:[%s3202 + $0x78] sm:$0xf]
        %v3592 = vld [vmem:[%s3202 + $0x7c] sm:$0xf]
        %v3593 = vld [vmem:[%s3202 + $0x80] sm:$0x1]
        %v3594 = vld [vmem:[%s3202 + $0x84] sm:$0xf]
        %v3595 = vld [vmem:[%s3202 + $0x88] sm:$0xf]
        %v3596 = vld [vmem:[%s3202 + $0x8c] sm:$0x1]
        %v3597 = vld [vmem:[%s3202 + $0x90] sm:$0xf]
        %v3598 = vld [vmem:[%s3202 + $0x94] sm:$0xf]
        %v3599 = vld [vmem:[%s3202 + $0x98] sm:$0x1]
        %v3600 = vld [vmem:[%s3202 + $0x9c] sm:$0xf]
        %v3601 = vld [vmem:[%s3202 + $0xa0] sm:$0xf]
        %v3602 = vld [vmem:[%s3202 + $0xa4] sm:$0x1]
        %v3603 = vld [vmem:[%s3202 + $0xa8] sm:$0xf]
        %v3604 = vld [vmem:[%s3202 + $0xac] sm:$0xf]
        %v3605 = vld [vmem:[%s3202 + $0xb0] sm:$0x1]
        %v3606 = vld [vmem:[%s3202 + $0xb4] sm:$0xf]
        %v3607 = vld [vmem:[%s3202 + $0xb8] sm:$0xf]
        %v3608 = vld [vmem:[%s3202 + $0xbc] sm:$0x1]
        %v3610 = vshrl.u32 %v3561, 16
        %v3612 = vrot.slane %v3610, 4
        %v3613 = vshll.u32 %v3561, 16
        %v3615 = vrot.slane %v3613, 5
        %v3616 = vor.u32 %v3612, %v3615
        %v3617 = vrot.slane %v3616, 4
        %v3619 = vshll.u32 %v3562, 16
        %v3621 = vrot.slane %v3619, 5
        %v3622 = vsel %vm240, %v3617, %v3621
        %v3623 = vshrl.u32 %v3562, 16
        %v3625 = vrot.slane %v3623, 4
        %v3626 = vor.u32 %v3625, %v3621
        %v3627 = vrot.slane %v3626, 4
        %v3629 = vshll.u32 %v3563, 16
        %v3631 = vrot.slane %v3629, 5
        %v3632 = vsel %vm240, %v3627, %v3631
        %v3634 = vshrl.u32 %v3564, 16
        %v3636 = vrot.slane %v3634, 4
        %v3637 = vshll.u32 %v3564, 16
        %v3639 = vrot.slane %v3637, 5
        %v3640 = vor.u32 %v3636, %v3639
        %v3641 = vrot.slane %v3640, 4
        %v3643 = vshll.u32 %v3565, 16
        %v3645 = vrot.slane %v3643, 5
        %v3646 = vsel %vm240, %v3641, %v3645
        %v3647 = vshrl.u32 %v3565, 16
        %v3649 = vrot.slane %v3647, 4
        %v3650 = vor.u32 %v3649, %v3645
        %v3651 = vrot.slane %v3650, 4
        %v3653 = vshll.u32 %v3566, 16
        %v3655 = vrot.slane %v3653, 5
        %v3656 = vsel %vm240, %v3651, %v3655
        %v3658 = vshrl.u32 %v3567, 16
        %v3660 = vrot.slane %v3658, 4
        %v3661 = vshll.u32 %v3567, 16
        %v3663 = vrot.slane %v3661, 5
        %v3664 = vor.u32 %v3660, %v3663
        %v3665 = vrot.slane %v3664, 4
        %v3667 = vshll.u32 %v3568, 16
        %v3669 = vrot.slane %v3667, 5
        %v3670 = vsel %vm240, %v3665, %v3669
        %v3671 = vshrl.u32 %v3568, 16
        %v3673 = vrot.slane %v3671, 4
        %v3674 = vor.u32 %v3673, %v3669
        %v3675 = vrot.slane %v3674, 4
        %v3677 = vshll.u32 %v3569, 16
        %v3679 = vrot.slane %v3677, 5
        %v3680 = vsel %vm240, %v3675, %v3679
        %v3682 = vshrl.u32 %v3570, 16
        %v3684 = vrot.slane %v3682, 4
        %v3685 = vshll.u32 %v3570, 16
        %v3687 = vrot.slane %v3685, 5
        %v3688 = vor.u32 %v3684, %v3687
        %v3689 = vrot.slane %v3688, 4
        %v3691 = vshll.u32 %v3571, 16
        %v3693 = vrot.slane %v3691, 5
        %v3694 = vsel %vm240, %v3689, %v3693
        %v3695 = vshrl.u32 %v3571, 16
        %v3697 = vrot.slane %v3695, 4
        %v3698 = vor.u32 %v3697, %v3693
        %v3699 = vrot.slane %v3698, 4
        %v3701 = vshll.u32 %v3572, 16
        %v3703 = vrot.slane %v3701, 5
        %v3704 = vsel %vm240, %v3699, %v3703
        %v3706 = vshrl.u32 %v3573, 16
        %v3708 = vrot.slane %v3706, 4
        %v3709 = vshll.u32 %v3573, 16
        %v3711 = vrot.slane %v3709, 5
        %v3712 = vor.u32 %v3708, %v3711
        %v3713 = vrot.slane %v3712, 4
        %v3715 = vshll.u32 %v3574, 16
        %v3717 = vrot.slane %v3715, 5
        %v3718 = vsel %vm240, %v3713, %v3717
        %v3719 = vshrl.u32 %v3574, 16
        %v3721 = vrot.slane %v3719, 4
        %v3722 = vor.u32 %v3721, %v3717
        %v3723 = vrot.slane %v3722, 4
        %v3725 = vshll.u32 %v3575, 16
        %v3727 = vrot.slane %v3725, 5
        %v3728 = vsel %vm240, %v3723, %v3727
        %v3730 = vshrl.u32 %v3576, 16
        %v3732 = vrot.slane %v3730, 4
        %v3733 = vshll.u32 %v3576, 16
        %v3735 = vrot.slane %v3733, 5
        %v3736 = vor.u32 %v3732, %v3735
        %v3737 = vrot.slane %v3736, 4
        %v3739 = vshll.u32 %v3577, 16
        %v3741 = vrot.slane %v3739, 5
        %v3742 = vsel %vm240, %v3737, %v3741
        %v3743 = vshrl.u32 %v3577, 16
        %v3745 = vrot.slane %v3743, 4
        %v3746 = vor.u32 %v3745, %v3741
        %v3747 = vrot.slane %v3746, 4
        %v3749 = vshll.u32 %v3578, 16
        %v3751 = vrot.slane %v3749, 5
        %v3752 = vsel %vm240, %v3747, %v3751
        %v3754 = vshrl.u32 %v3579, 16
        %v3756 = vrot.slane %v3754, 4
        %v3757 = vshll.u32 %v3579, 16
        %v3759 = vrot.slane %v3757, 5
        %v3760 = vor.u32 %v3756, %v3759
        %v3761 = vrot.slane %v3760, 4
        %v3763 = vshll.u32 %v3580, 16
        %v3765 = vrot.slane %v3763, 5
        %v3766 = vsel %vm240, %v3761, %v3765
        %v3767 = vshrl.u32 %v3580, 16
        %v3769 = vrot.slane %v3767, 4
        %v3770 = vor.u32 %v3769, %v3765
        %v3771 = vrot.slane %v3770, 4
        %v3773 = vshll.u32 %v3581, 16
        %v3775 = vrot.slane %v3773, 5
        %v3776 = vsel %vm240, %v3771, %v3775
        %v3778 = vshrl.u32 %v3582, 16
        %v3780 = vrot.slane %v3778, 4
        %v3781 = vshll.u32 %v3582, 16
        %v3783 = vrot.slane %v3781, 5
        %v3784 = vor.u32 %v3780, %v3783
        %v3785 = vrot.slane %v3784, 4
        %v3787 = vshll.u32 %v3583, 16
        %v3789 = vrot.slane %v3787, 5
        %v3790 = vsel %vm240, %v3785, %v3789
        %v3791 = vshrl.u32 %v3583, 16
        %v3793 = vrot.slane %v3791, 4
        %v3794 = vor.u32 %v3793, %v3789
        %v3795 = vrot.slane %v3794, 4
        %v3797 = vshll.u32 %v3584, 16
        %v3799 = vrot.slane %v3797, 5
        %v3800 = vsel %vm240, %v3795, %v3799
        %v3802 = vshrl.u32 %v3585, 16
        %v3804 = vrot.slane %v3802, 4
        %v3805 = vshll.u32 %v3585, 16
        %v3807 = vrot.slane %v3805, 5
        %v3808 = vor.u32 %v3804, %v3807
        %v3809 = vrot.slane %v3808, 4
        %v3811 = vshll.u32 %v3586, 16
        %v3813 = vrot.slane %v3811, 5
        %v3814 = vsel %vm240, %v3809, %v3813
        %v3815 = vshrl.u32 %v3586, 16
        %v3817 = vrot.slane %v3815, 4
        %v3818 = vor.u32 %v3817, %v3813
        %v3819 = vrot.slane %v3818, 4
        %v3821 = vshll.u32 %v3587, 16
        %v3823 = vrot.slane %v3821, 5
        %v3824 = vsel %vm240, %v3819, %v3823
        %v3826 = vshrl.u32 %v3588, 16
        %v3828 = vrot.slane %v3826, 4
        %v3829 = vshll.u32 %v3588, 16
        %v3831 = vrot.slane %v3829, 5
        %v3832 = vor.u32 %v3828, %v3831
        %v3833 = vrot.slane %v3832, 4
        %v3835 = vshll.u32 %v3589, 16
        %v3837 = vrot.slane %v3835, 5
        %v3838 = vsel %vm240, %v3833, %v3837
        %v3839 = vshrl.u32 %v3589, 16
        %v3841 = vrot.slane %v3839, 4
        %v3842 = vor.u32 %v3841, %v3837
        %v3843 = vrot.slane %v3842, 4
        %v3845 = vshll.u32 %v3590, 16
        %v3847 = vrot.slane %v3845, 5
        %v3848 = vsel %vm240, %v3843, %v3847
        %v3850 = vshrl.u32 %v3591, 16
        %v3852 = vrot.slane %v3850, 4
        %v3853 = vshll.u32 %v3591, 16
        %v3855 = vrot.slane %v3853, 5
        %v3856 = vor.u32 %v3852, %v3855
        %v3857 = vrot.slane %v3856, 4
        %v3859 = vshll.u32 %v3592, 16
        %v3861 = vrot.slane %v3859, 5
        %v3862 = vsel %vm240, %v3857, %v3861
        %v3863 = vshrl.u32 %v3592, 16
        %v3865 = vrot.slane %v3863, 4
        %v3866 = vor.u32 %v3865, %v3861
        %v3867 = vrot.slane %v3866, 4
        %v3869 = vshll.u32 %v3593, 16
        %v3871 = vrot.slane %v3869, 5
        %v3872 = vsel %vm240, %v3867, %v3871
        %v3874 = vshrl.u32 %v3594, 16
        %v3876 = vrot.slane %v3874, 4
        %v3877 = vshll.u32 %v3594, 16
        %v3879 = vrot.slane %v3877, 5
        %v3880 = vor.u32 %v3876, %v3879
        %v3881 = vrot.slane %v3880, 4
        %v3883 = vshll.u32 %v3595, 16
        %v3885 = vrot.slane %v3883, 5
        %v3886 = vsel %vm240, %v3881, %v3885
        %v3887 = vshrl.u32 %v3595, 16
        %v3889 = vrot.slane %v3887, 4
        %v3890 = vor.u32 %v3889, %v3885
        %v3891 = vrot.slane %v3890, 4
        %v3893 = vshll.u32 %v3596, 16
        %v3895 = vrot.slane %v3893, 5
        %v3896 = vsel %vm240, %v3891, %v3895
        %v3898 = vshrl.u32 %v3597, 16
        %v3900 = vrot.slane %v3898, 4
        %v3901 = vshll.u32 %v3597, 16
        %v3903 = vrot.slane %v3901, 5
        %v3904 = vor.u32 %v3900, %v3903
        %v3905 = vrot.slane %v3904, 4
        %v3907 = vshll.u32 %v3598, 16
        %v3909 = vrot.slane %v3907, 5
        %v3910 = vsel %vm240, %v3905, %v3909
        %v3911 = vshrl.u32 %v3598, 16
        %v3913 = vrot.slane %v3911, 4
        %v3914 = vor.u32 %v3913, %v3909
        %v3915 = vrot.slane %v3914, 4
        %v3917 = vshll.u32 %v3599, 16
        %v3919 = vrot.slane %v3917, 5
        %v3920 = vsel %vm240, %v3915, %v3919
        %v3922 = vshrl.u32 %v3600, 16
        %v3924 = vrot.slane %v3922, 4
        %v3925 = vshll.u32 %v3600, 16
        %v3927 = vrot.slane %v3925, 5
        %v3928 = vor.u32 %v3924, %v3927
        %v3929 = vrot.slane %v3928, 4
        %v3931 = vshll.u32 %v3601, 16
        %v3933 = vrot.slane %v3931, 5
        %v3934 = vsel %vm240, %v3929, %v3933
        %v3935 = vshrl.u32 %v3601, 16
        %v3937 = vrot.slane %v3935, 4
        %v3938 = vor.u32 %v3937, %v3933
        %v3939 = vrot.slane %v3938, 4
        %v3941 = vshll.u32 %v3602, 16
        %v3943 = vrot.slane %v3941, 5
        %v3944 = vsel %vm240, %v3939, %v3943
        %v3946 = vshrl.u32 %v3603, 16
        %v3948 = vrot.slane %v3946, 4
        %v3949 = vshll.u32 %v3603, 16
        %v3951 = vrot.slane %v3949, 5
        %v3952 = vor.u32 %v3948, %v3951
        %v3953 = vrot.slane %v3952, 4
        %v3955 = vshll.u32 %v3604, 16
        %v3957 = vrot.slane %v3955, 5
        %v3958 = vsel %vm240, %v3953, %v3957
        %v3959 = vshrl.u32 %v3604, 16
        %v3961 = vrot.slane %v3959, 4
        %v3962 = vor.u32 %v3961, %v3957
        %v3963 = vrot.slane %v3962, 4
        %v3965 = vshll.u32 %v3605, 16
        %v3967 = vrot.slane %v3965, 5
        %v3968 = vsel %vm240, %v3963, %v3967
        %v3970 = vshrl.u32 %v3606, 16
        %v3972 = vrot.slane %v3970, 4
        %v3973 = vshll.u32 %v3606, 16
        %v3975 = vrot.slane %v3973, 5
        %v3976 = vor.u32 %v3972, %v3975
        %v3977 = vrot.slane %v3976, 4
        %v3979 = vshll.u32 %v3607, 16
        %v3981 = vrot.slane %v3979, 5
        %v3982 = vsel %vm240, %v3977, %v3981
        %v3983 = vshrl.u32 %v3607, 16
        %v3985 = vrot.slane %v3983, 4
        %v3986 = vor.u32 %v3985, %v3981
        %v3987 = vrot.slane %v3986, 4
        %v3989 = vshll.u32 %v3608, 16
        %v3991 = vrot.slane %v3989, 5
        %v3992 = vsel %vm240, %v3987, %v3991
        %s3993 = scalar_lea.vmem %s1, 14
        %v3994 = vld [vmem:[%s3993] sm:$0x3]
        %v3995 = vunpack.c.l.b16 %v3622
        %v3996 = vunpack.c.l.b16 %v3632
        %v3997 = vunpack.c.l.b16 %v3646
        %v3998 = vunpack.c.l.b16 %v3656
        %v3999 = vunpack.c.l.b16 %v3670
        %v4000 = vunpack.c.l.b16 %v3680
        %v4001 = vunpack.c.l.b16 %v3694
        %v4002 = vunpack.c.l.b16 %v3704
        %v4003 = vunpack.c.l.b16 %v3718
        %v4004 = vunpack.c.l.b16 %v3728
        %v4005 = vunpack.c.l.b16 %v3742
        %v4006 = vunpack.c.l.b16 %v3752
        %v4007 = vunpack.c.l.b16 %v3766
        %v4008 = vunpack.c.l.b16 %v3776
        %v4009 = vunpack.c.l.b16 %v3790
        %v4010 = vunpack.c.l.b16 %v3800
        %v4011 = vunpack.c.l.b16 %v3814
        %v4012 = vunpack.c.l.b16 %v3824
        %v4013 = vunpack.c.l.b16 %v3838
        %v4014 = vunpack.c.l.b16 %v3848
        %v4015 = vunpack.c.l.b16 %v3862
        %v4016 = vunpack.c.l.b16 %v3872
        %v4017 = vunpack.c.l.b16 %v3886
        %v4018 = vunpack.c.l.b16 %v3896
        %v4019 = vunpack.c.l.b16 %v3910
        %v4020 = vunpack.c.l.b16 %v3920
        %v4021 = vunpack.c.l.b16 %v3934
        %v4022 = vunpack.c.l.b16 %v3944
        %v4023 = vunpack.c.l.b16 %v3958
        %v4024 = vunpack.c.l.b16 %v3968
        %v4025 = vunpack.c.l.b16 %v3982
        %v4026 = vunpack.c.l.b16 %v3992
        %v4027 = vpack.c.b16 %v3996, %v3995
        %v4028 = vpack.c.b16 %v3998, %v3997
        %v4029 = vpack.c.b16 %v4000, %v3999
        %v4030 = vpack.c.b16 %v4002, %v4001
        %v4031 = vpack.c.b16 %v4004, %v4003
        %v4032 = vpack.c.b16 %v4006, %v4005
        %v4033 = vpack.c.b16 %v4008, %v4007
        %v4034 = vpack.c.b16 %v4010, %v4009
        %v4035 = vpack.c.b16 %v4012, %v4011
        %v4036 = vpack.c.b16 %v4014, %v4013
        %v4037 = vpack.c.b16 %v4016, %v4015
        %v4038 = vpack.c.b16 %v4018, %v4017
        %v4039 = vpack.c.b16 %v4020, %v4019
        %v4040 = vpack.c.b16 %v4022, %v4021
        %v4041 = vpack.c.b16 %v4024, %v4023
        %v4042 = vpack.c.b16 %v4026, %v4025
        %v4044 = vsel %vm675, %v4027, 0
        %v4047 = vsel %vm675, %v4028, 0
        %v4050 = vsel %vm675, %v4029, 0
        %v4053 = vsel %vm675, %v4030, 0
        %v4056 = vsel %vm675, %v4031, 0
        %v4059 = vsel %vm675, %v4032, 0
        %v4062 = vsel %vm675, %v4033, 0
        %v4065 = vsel %vm675, %v4034, 0
        %v4068 = vsel %vm675, %v4035, 0
        %v4071 = vsel %vm675, %v4036, 0
        %v4074 = vsel %vm675, %v4037, 0
        %v4077 = vsel %vm675, %v4038, 0
        %v4080 = vsel %vm675, %v4039, 0
        %v4083 = vsel %vm675, %v4040, 0
        %v4086 = vsel %vm675, %v4041, 0
        %v4089 = vsel %vm675, %v4042, 0
        %v4092 = vand.u32 %v3994, %v727
        %4094 = vmatprep.subr.bf16.mxu0 0
        %4095 = vmatpush1.bf16.msra.mxu0 %v4092
        %4096 = vmatprep.subr.bf16.mxu0 0
        %4097 = vmatpush1.bf16.msra.mxu0 0
        %4098 = vmatprep.subr.bf16.mxu0 0
        %4099 = vmatpush1.bf16.msra.mxu0 0
        %4100 = vmatprep.subr.bf16.mxu0 0
        %4101 = vmatpush1.bf16.msra.mxu0 0
        %4102 = vmatprep.subr.bf16.mxu0 0
        %4103 = vmatpush1.bf16.msra.mxu0 0
        %4104 = vmatprep.subr.bf16.mxu0 0
        %4105 = vmatpush1.bf16.msra.mxu0 0
        %4106 = vmatprep.subr.bf16.mxu0 0
        %4107 = vmatpush1.bf16.msra.mxu0 0
        %4108 = vmatprep.subr.bf16.mxu0 0
        %4109 = vmatpush1.bf16.msra.mxu0 0
        %4110 = vmatprep.subr.bf16.mxu0 0
        %4111 = vmatpush1.bf16.msra.mxu0 0
        %4112 = vmatprep.subr.bf16.mxu0 0
        %4113 = vmatpush1.bf16.msra.mxu0 0
        %4114 = vmatprep.subr.bf16.mxu0 0
        %4115 = vmatpush1.bf16.msra.mxu0 0
        %4116 = vmatprep.subr.bf16.mxu0 0
        %4117 = vmatpush1.bf16.msra.mxu0 0
        %4118 = vmatprep.subr.bf16.mxu0 0
        %4119 = vmatpush1.bf16.msra.mxu0 0
        %4120 = vmatprep.subr.bf16.mxu0 0
        %4121 = vmatpush1.bf16.msra.mxu0 0
        %4122 = vmatprep.subr.bf16.mxu0 0
        %4123 = vmatpush1.bf16.msra.mxu0 0
        %4124 = vmatprep.subr.bf16.mxu0 0
        %4125 = vmatpush1.bf16.msra.mxu0 0
        %4126 = vmatprep.mubr.bf16.mxu0 0
        %4127 = vmatmul.mubr.bf16.gmra.mrb[0].mxu0 %v4044
        %v4128 = vpop.f32.mrb[0].mxu0
        %v4129 = vadd.f32 0.0, %v4128
        %v4130 = vpop.f32.mrb[0].mxu0
        %v4131 = vpop.f32.mrb[0].mxu0
        %v4132 = vadd.f32 0.0, %v4131
        %v4133 = vpop.f32.mrb[0].mxu0
        %4134 = vmatprep.mubr.bf16.mxu0 0
        %4135 = vmatmul.mubr.bf16.gmra.mrb[0].mxu0 %v4047
        %v4136 = vpop.f32.mrb[0].mxu0
        %v4137 = vadd.f32 0.0, %v4136
        %v4138 = vpop.f32.mrb[0].mxu0
        %v4139 = vpop.f32.mrb[0].mxu0
        %v4140 = vadd.f32 0.0, %v4139
        %v4141 = vpop.f32.mrb[0].mxu0
        %4142 = vmatprep.mubr.bf16.mxu0 0
        %4143 = vmatmul.mubr.bf16.gmra.mrb[0].mxu0 %v4050
        %v4144 = vpop.f32.mrb[0].mxu0
        %v4145 = vadd.f32 0.0, %v4144
        %v4146 = vpop.f32.mrb[0].mxu0
        %v4147 = vpop.f32.mrb[0].mxu0
        %v4148 = vadd.f32 0.0, %v4147
        %v4149 = vpop.f32.mrb[0].mxu0
        %4150 = vmatprep.mubr.bf16.mxu0 0
        %4151 = vmatmul.mubr.bf16.gmra.mrb[0].mxu0 %v4053
        %v4152 = vpop.f32.mrb[0].mxu0
        %v4153 = vadd.f32 0.0, %v4152
        %v4154 = vpop.f32.mrb[0].mxu0
        %v4155 = vpop.f32.mrb[0].mxu0
        %v4156 = vadd.f32 0.0, %v4155
        %v4157 = vpop.f32.mrb[0].mxu0
        %4158 = vmatprep.mubr.bf16.mxu0 0
        %4159 = vmatmul.mubr.bf16.gmra.mrb[0].mxu0 %v4056
        %v4160 = vpop.f32.mrb[0].mxu0
        %v4161 = vadd.f32 0.0, %v4160
        %v4162 = vpop.f32.mrb[0].mxu0
        %v4163 = vpop.f32.mrb[0].mxu0
        %v4164 = vadd.f32 0.0, %v4163
        %v4165 = vpop.f32.mrb[0].mxu0
        %4166 = vmatprep.mubr.bf16.mxu0 0
        %4167 = vmatmul.mubr.bf16.gmra.mrb[0].mxu0 %v4059
        %v4168 = vpop.f32.mrb[0].mxu0
        %v4169 = vadd.f32 0.0, %v4168
        %v4170 = vpop.f32.mrb[0].mxu0
        %v4171 = vpop.f32.mrb[0].mxu0
        %v4172 = vadd.f32 0.0, %v4171
        %v4173 = vpop.f32.mrb[0].mxu0
        %4174 = vmatprep.mubr.bf16.mxu0 0
        %4175 = vmatmul.mubr.bf16.gmra.mrb[0].mxu0 %v4062
        %v4176 = vpop.f32.mrb[0].mxu0
        %v4177 = vadd.f32 0.0, %v4176
        %v4178 = vpop.f32.mrb[0].mxu0
        %v4179 = vpop.f32.mrb[0].mxu0
        %v4180 = vadd.f32 0.0, %v4179
        %v4181 = vpop.f32.mrb[0].mxu0
        %4182 = vmatprep.mubr.bf16.mxu0 0
        %4183 = vmatmul.mubr.bf16.gmra.mrb[0].mxu0 %v4065
        %v4184 = vpop.f32.mrb[0].mxu0
        %v4185 = vadd.f32 0.0, %v4184
        %v4186 = vpop.f32.mrb[0].mxu0
        %v4187 = vpop.f32.mrb[0].mxu0
        %v4188 = vadd.f32 0.0, %v4187
        %v4189 = vpop.f32.mrb[0].mxu0
        %4190 = vmatprep.mubr.bf16.mxu0 0
        %4191 = vmatmul.mubr.bf16.gmra.mrb[0].mxu0 %v4068
        %v4192 = vpop.f32.mrb[0].mxu0
        %v4193 = vadd.f32 0.0, %v4192
        %v4194 = vpop.f32.mrb[0].mxu0
        %v4195 = vpop.f32.mrb[0].mxu0
        %v4196 = vadd.f32 0.0, %v4195
        %v4197 = vpop.f32.mrb[0].mxu0
        %4198 = vmatprep.mubr.bf16.mxu0 0
        %4199 = vmatmul.mubr.bf16.gmra.mrb[0].mxu0 %v4071
        %v4200 = vpop.f32.mrb[0].mxu0
        %v4201 = vadd.f32 0.0, %v4200
        %v4202 = vpop.f32.mrb[0].mxu0
        %v4203 = vpop.f32.mrb[0].mxu0
        %v4204 = vadd.f32 0.0, %v4203
        %v4205 = vpop.f32.mrb[0].mxu0
        %4206 = vmatprep.mubr.bf16.mxu0 0
        %4207 = vmatmul.mubr.bf16.gmra.mrb[0].mxu0 %v4074
        %v4208 = vpop.f32.mrb[0].mxu0
        %v4209 = vadd.f32 0.0, %v4208
        %v4210 = vpop.f32.mrb[0].mxu0
        %v4211 = vpop.f32.mrb[0].mxu0
        %v4212 = vadd.f32 0.0, %v4211
        %v4213 = vpop.f32.mrb[0].mxu0
        %4214 = vmatprep.mubr.bf16.mxu0 0
        %4215 = vmatmul.mubr.bf16.gmra.mrb[0].mxu0 %v4077
        %v4216 = vpop.f32.mrb[0].mxu0
        %v4217 = vadd.f32 0.0, %v4216
        %v4218 = vpop.f32.mrb[0].mxu0
        %v4219 = vpop.f32.mrb[0].mxu0
        %v4220 = vadd.f32 0.0, %v4219
        %v4221 = vpop.f32.mrb[0].mxu0
        %4222 = vmatprep.mubr.bf16.mxu0 0
        %4223 = vmatmul.mubr.bf16.gmra.mrb[0].mxu0 %v4080
        %v4224 = vpop.f32.mrb[0].mxu0
        %v4225 = vadd.f32 0.0, %v4224
        %v4226 = vpop.f32.mrb[0].mxu0
        %v4227 = vpop.f32.mrb[0].mxu0
        %v4228 = vadd.f32 0.0, %v4227
        %v4229 = vpop.f32.mrb[0].mxu0
        %4230 = vmatprep.mubr.bf16.mxu0 0
        %4231 = vmatmul.mubr.bf16.gmra.mrb[0].mxu0 %v4083
        %v4232 = vpop.f32.mrb[0].mxu0
        %v4233 = vadd.f32 0.0, %v4232
        %v4234 = vpop.f32.mrb[0].mxu0
        %v4235 = vpop.f32.mrb[0].mxu0
        %v4236 = vadd.f32 0.0, %v4235
        %v4237 = vpop.f32.mrb[0].mxu0
        %4238 = vmatprep.mubr.bf16.mxu0 0
        %4239 = vmatmul.mubr.bf16.gmra.mrb[0].mxu0 %v4086
        %v4240 = vpop.f32.mrb[0].mxu0
        %v4241 = vadd.f32 0.0, %v4240
        %v4242 = vpop.f32.mrb[0].mxu0
        %v4243 = vpop.f32.mrb[0].mxu0
        %v4244 = vadd.f32 0.0, %v4243
        %v4245 = vpop.f32.mrb[0].mxu0
        %4246 = vmatprep.mubr.bf16.mxu0 0
        %4247 = vmatmul.mubr.bf16.gmra.mrb[0].mxu0 %v4089
        %v4248 = vpop.f32.mrb[0].mxu0
        %v4249 = vadd.f32 0.0, %v4248
        %v4250 = vpop.f32.mrb[0].mxu0
        %v4251 = vpop.f32.mrb[0].mxu0
        %v4252 = vadd.f32 0.0, %v4251
        %v4253 = vpop.f32.mrb[0].mxu0
        %4254 = vdwg.mxu0
        %v4255 = vadd.f32 %v3529, %v4129
        %v4256 = vadd.f32 %v3530, %v4132
        %v4257 = vadd.f32 %v3531, %v4137
        %v4258 = vadd.f32 %v3532, %v4140
        %v4259 = vadd.f32 %v3533, %v4145
        %v4260 = vadd.f32 %v3534, %v4148
        %v4261 = vadd.f32 %v3535, %v4153
        %v4262 = vadd.f32 %v3536, %v4156
        %v4263 = vadd.f32 %v3537, %v4161
        %v4264 = vadd.f32 %v3538, %v4164
        %v4265 = vadd.f32 %v3539, %v4169
        %v4266 = vadd.f32 %v3540, %v4172
        %v4267 = vadd.f32 %v3541, %v4177
        %v4268 = vadd.f32 %v3542, %v4180
        %v4269 = vadd.f32 %v3543, %v4185
        %v4270 = vadd.f32 %v3544, %v4188
        %v4271 = vadd.f32 %v3545, %v4193
        %v4272 = vadd.f32 %v3546, %v4196
        %v4273 = vadd.f32 %v3547, %v4201
        %v4274 = vadd.f32 %v3548, %v4204
        %v4275 = vadd.f32 %v3549, %v4209
        %v4276 = vadd.f32 %v3550, %v4212
        %v4277 = vadd.f32 %v3551, %v4217
        %v4278 = vadd.f32 %v3552, %v4220
        %v4279 = vadd.f32 %v3553, %v4225
        %v4280 = vadd.f32 %v3554, %v4228
        %v4281 = vadd.f32 %v3555, %v4233
        %v4282 = vadd.f32 %v3556, %v4236
        %v4283 = vadd.f32 %v3557, %v4241
        %v4284 = vadd.f32 %v3558, %v4244
        %v4285 = vadd.f32 %v3559, %v4249
        %v4286 = vadd.f32 %v3560, %v4252
        %v4287 = vld [vmem:[%s3202] sm:$0xe]
        %v4288 = vld [vmem:[%s3202 + $0xc] sm:$0xe]
        %v4289 = vld [vmem:[%s3202 + $0x18] sm:$0xe]
        %v4290 = vld [vmem:[%s3202 + $0x24] sm:$0xe]
        %v4291 = vld [vmem:[%s3202 + $0x30] sm:$0xe]
        %v4292 = vld [vmem:[%s3202 + $0x3c] sm:$0xe]
        %v4293 = vld [vmem:[%s3202 + $0x48] sm:$0xe]
        %v4294 = vld [vmem:[%s3202 + $0x54] sm:$0xe]
        %v4295 = vld [vmem:[%s3202 + $0x60] sm:$0xe]
        %v4296 = vld [vmem:[%s3202 + $0x6c] sm:$0xe]
        %v4297 = vld [vmem:[%s3202 + $0x78] sm:$0xe]
        %v4298 = vld [vmem:[%s3202 + $0x84] sm:$0xe]
        %v4299 = vld [vmem:[%s3202 + $0x90] sm:$0xe]
        %v4300 = vld [vmem:[%s3202 + $0x9c] sm:$0xe]
        %v4301 = vld [vmem:[%s3202 + $0xa8] sm:$0xe]
        %v4302 = vld [vmem:[%s3202 + $0xb4] sm:$0xe]
        %v4351 = vrot.slane %v4287, 5
        %v4352 = vrot.slane %v4351, 4
        %v4353 = vrot.slane %v3562, 5
        %v4354 = vsel %vm1234, %v4352, %v4353
        %v4355 = vrot.slane %v4353, 4
        %v4356 = vrot.slane %v3563, 5
        %v4357 = vsel %vm1234, %v4355, %v4356
        %v4358 = vrot.slane %v4288, 5
        %v4359 = vrot.slane %v4358, 4
        %v4360 = vrot.slane %v3565, 5
        %v4361 = vsel %vm1234, %v4359, %v4360
        %v4362 = vrot.slane %v4360, 4
        %v4363 = vrot.slane %v3566, 5
        %v4364 = vsel %vm1234, %v4362, %v4363
        %v4365 = vrot.slane %v4289, 5
        %v4366 = vrot.slane %v4365, 4
        %v4367 = vrot.slane %v3568, 5
        %v4368 = vsel %vm1234, %v4366, %v4367
        %v4369 = vrot.slane %v4367, 4
        %v4370 = vrot.slane %v3569, 5
        %v4371 = vsel %vm1234, %v4369, %v4370
        %v4372 = vrot.slane %v4290, 5
        %v4373 = vrot.slane %v4372, 4
        %v4374 = vrot.slane %v3571, 5
        %v4375 = vsel %vm1234, %v4373, %v4374
        %v4376 = vrot.slane %v4374, 4
        %v4377 = vrot.slane %v3572, 5
        %v4378 = vsel %vm1234, %v4376, %v4377
        %v4379 = vrot.slane %v4291, 5
        %v4380 = vrot.slane %v4379, 4
        %v4381 = vrot.slane %v3574, 5
        %v4382 = vsel %vm1234, %v4380, %v4381
        %v4383 = vrot.slane %v4381, 4
        %v4384 = vrot.slane %v3575, 5
        %v4385 = vsel %vm1234, %v4383, %v4384
        %v4386 = vrot.slane %v4292, 5
        %v4387 = vrot.slane %v4386, 4
        %v4388 = vrot.slane %v3577, 5
        %v4389 = vsel %vm1234, %v4387, %v4388
        %v4390 = vrot.slane %v4388, 4
        %v4391 = vrot.slane %v3578, 5
        %v4392 = vsel %vm1234, %v4390, %v4391
        %v4393 = vrot.slane %v4293, 5
        %v4394 = vrot.slane %v4393, 4
        %v4395 = vrot.slane %v3580, 5
        %v4396 = vsel %vm1234, %v4394, %v4395
        %v4397 = vrot.slane %v4395, 4
        %v4398 = vrot.slane %v3581, 5
        %v4399 = vsel %vm1234, %v4397, %v4398
        %v4400 = vrot.slane %v4294, 5
        %v4401 = vrot.slane %v4400, 4
        %v4402 = vrot.slane %v3583, 5
        %v4403 = vsel %vm1234, %v4401, %v4402
        %v4404 = vrot.slane %v4402, 4
        %v4405 = vrot.slane %v3584, 5
        %v4406 = vsel %vm1234, %v4404, %v4405
        %v4407 = vrot.slane %v4295, 5
        %v4408 = vrot.slane %v4407, 4
        %v4409 = vrot.slane %v3586, 5
        %v4410 = vsel %vm1234, %v4408, %v4409
        %v4411 = vrot.slane %v4409, 4
        %v4412 = vrot.slane %v3587, 5
        %v4413 = vsel %vm1234, %v4411, %v4412
        %v4414 = vrot.slane %v4296, 5
        %v4415 = vrot.slane %v4414, 4
        %v4416 = vrot.slane %v3589, 5
        %v4417 = vsel %vm1234, %v4415, %v4416
        %v4418 = vrot.slane %v4416, 4
        %v4419 = vrot.slane %v3590, 5
        %v4420 = vsel %vm1234, %v4418, %v4419
        %v4421 = vrot.slane %v4297, 5
        %v4422 = vrot.slane %v4421, 4
        %v4423 = vrot.slane %v3592, 5
        %v4424 = vsel %vm1234, %v4422, %v4423
        %v4425 = vrot.slane %v4423, 4
        %v4426 = vrot.slane %v3593, 5
        %v4427 = vsel %vm1234, %v4425, %v4426
        %v4428 = vrot.slane %v4298, 5
        %v4429 = vrot.slane %v4428, 4
        %v4430 = vrot.slane %v3595, 5
        %v4431 = vsel %vm1234, %v4429, %v4430
        %v4432 = vrot.slane %v4430, 4
        %v4433 = vrot.slane %v3596, 5
        %v4434 = vsel %vm1234, %v4432, %v4433
        %v4435 = vrot.slane %v4299, 5
        %v4436 = vrot.slane %v4435, 4
        %v4437 = vrot.slane %v3598, 5
        %v4438 = vsel %vm1234, %v4436, %v4437
        %v4439 = vrot.slane %v4437, 4
        %v4440 = vrot.slane %v3599, 5
        %v4441 = vsel %vm1234, %v4439, %v4440
        %v4442 = vrot.slane %v4300, 5
        %v4443 = vrot.slane %v4442, 4
        %v4444 = vrot.slane %v3601, 5
        %v4445 = vsel %vm1234, %v4443, %v4444
        %v4446 = vrot.slane %v4444, 4
        %v4447 = vrot.slane %v3602, 5
        %v4448 = vsel %vm1234, %v4446, %v4447
        %v4449 = vrot.slane %v4301, 5
        %v4450 = vrot.slane %v4449, 4
        %v4451 = vrot.slane %v3604, 5
        %v4452 = vsel %vm1234, %v4450, %v4451
        %v4453 = vrot.slane %v4451, 4
        %v4454 = vrot.slane %v3605, 5
        %v4455 = vsel %vm1234, %v4453, %v4454
        %v4456 = vrot.slane %v4302, 5
        %v4457 = vrot.slane %v4456, 4
        %v4458 = vrot.slane %v3607, 5
        %v4459 = vsel %vm1234, %v4457, %v4458
        %v4460 = vrot.slane %v4458, 4
        %v4461 = vrot.slane %v3608, 5
        %v4462 = vsel %vm1234, %v4460, %v4461
        %s4463 = scalar_lea.vmem %s1, 16
        %v4464 = vld [vmem:[%s4463] sm:$0x3]
        %v4465 = vunpack.c.l.b16 %v4354
        %v4466 = vunpack.c.l.b16 %v4357
        %v4467 = vunpack.c.l.b16 %v4361
        %v4468 = vunpack.c.l.b16 %v4364
        %v4469 = vunpack.c.l.b16 %v4368
        %v4470 = vunpack.c.l.b16 %v4371
        %v4471 = vunpack.c.l.b16 %v4375
        %v4472 = vunpack.c.l.b16 %v4378
        %v4473 = vunpack.c.l.b16 %v4382
        %v4474 = vunpack.c.l.b16 %v4385
        %v4475 = vunpack.c.l.b16 %v4389
        %v4476 = vunpack.c.l.b16 %v4392
        %v4477 = vunpack.c.l.b16 %v4396
        %v4478 = vunpack.c.l.b16 %v4399
        %v4479 = vunpack.c.l.b16 %v4403
        %v4480 = vunpack.c.l.b16 %v4406
        %v4481 = vunpack.c.l.b16 %v4410
        %v4482 = vunpack.c.l.b16 %v4413
        %v4483 = vunpack.c.l.b16 %v4417
        %v4484 = vunpack.c.l.b16 %v4420
        %v4485 = vunpack.c.l.b16 %v4424
        %v4486 = vunpack.c.l.b16 %v4427
        %v4487 = vunpack.c.l.b16 %v4431
        %v4488 = vunpack.c.l.b16 %v4434
        %v4489 = vunpack.c.l.b16 %v4438
        %v4490 = vunpack.c.l.b16 %v4441
        %v4491 = vunpack.c.l.b16 %v4445
        %v4492 = vunpack.c.l.b16 %v4448
        %v4493 = vunpack.c.l.b16 %v4452
        %v4494 = vunpack.c.l.b16 %v4455
        %v4495 = vunpack.c.l.b16 %v4459
        %v4496 = vunpack.c.l.b16 %v4462
        %v4497 = vpack.c.b16 %v4466, %v4465
        %v4498 = vpack.c.b16 %v4468, %v4467
        %v4499 = vpack.c.b16 %v4470, %v4469
        %v4500 = vpack.c.b16 %v4472, %v4471
        %v4501 = vpack.c.b16 %v4474, %v4473
        %v4502 = vpack.c.b16 %v4476, %v4475
        %v4503 = vpack.c.b16 %v4478, %v4477
        %v4504 = vpack.c.b16 %v4480, %v4479
        %v4505 = vpack.c.b16 %v4482, %v4481
        %v4506 = vpack.c.b16 %v4484, %v4483
        %v4507 = vpack.c.b16 %v4486, %v4485
        %v4508 = vpack.c.b16 %v4488, %v4487
        %v4509 = vpack.c.b16 %v4490, %v4489
        %v4510 = vpack.c.b16 %v4492, %v4491
        %v4511 = vpack.c.b16 %v4494, %v4493
        %v4512 = vpack.c.b16 %v4496, %v4495
        %v4514 = vsel %vm675, %v4497, 0
        %v4517 = vsel %vm675, %v4498, 0
        %v4520 = vsel %vm675, %v4499, 0
        %v4523 = vsel %vm675, %v4500, 0
        %v4526 = vsel %vm675, %v4501, 0
        %v4529 = vsel %vm675, %v4502, 0
        %v4532 = vsel %vm675, %v4503, 0
        %v4535 = vsel %vm675, %v4504, 0
        %v4538 = vsel %vm675, %v4505, 0
        %v4541 = vsel %vm675, %v4506, 0
        %v4544 = vsel %vm675, %v4507, 0
        %v4547 = vsel %vm675, %v4508, 0
        %v4550 = vsel %vm675, %v4509, 0
        %v4553 = vsel %vm675, %v4510, 0
        %v4556 = vsel %vm675, %v4511, 0
        %v4559 = vsel %vm675, %v4512, 0
        %v4562 = vand.u32 %v4464, %v727
        %4564 = vmatprep.subr.bf16.mxu0 0
        %4565 = vmatpush1.bf16.msra.mxu0 %v4562
        %4566 = vmatprep.subr.bf16.mxu0 0
        %4567 = vmatpush1.bf16.msra.mxu0 0
        %4568 = vmatprep.subr.bf16.mxu0 0
        %4569 = vmatpush1.bf16.msra.mxu0 0
        %4570 = vmatprep.subr.bf16.mxu0 0
        %4571 = vmatpush1.bf16.msra.mxu0 0
        %4572 = vmatprep.subr.bf16.mxu0 0
        %4573 = vmatpush1.bf16.msra.mxu0 0
        %4574 = vmatprep.subr.bf16.mxu0 0
        %4575 = vmatpush1.bf16.msra.mxu0 0
        %4576 = vmatprep.subr.bf16.mxu0 0
        %4577 = vmatpush1.bf16.msra.mxu0 0
        %4578 = vmatprep.subr.bf16.mxu0 0
        %4579 = vmatpush1.bf16.msra.mxu0 0
        %4580 = vmatprep.subr.bf16.mxu0 0
        %4581 = vmatpush1.bf16.msra.mxu0 0
        %4582 = vmatprep.subr.bf16.mxu0 0
        %4583 = vmatpush1.bf16.msra.mxu0 0
        %4584 = vmatprep.subr.bf16.mxu0 0
        %4585 = vmatpush1.bf16.msra.mxu0 0
        %4586 = vmatprep.subr.bf16.mxu0 0
        %4587 = vmatpush1.bf16.msra.mxu0 0
        %4588 = vmatprep.subr.bf16.mxu0 0
        %4589 = vmatpush1.bf16.msra.mxu0 0
        %4590 = vmatprep.subr.bf16.mxu0 0
        %4591 = vmatpush1.bf16.msra.mxu0 0
        %4592 = vmatprep.subr.bf16.mxu0 0
        %4593 = vmatpush1.bf16.msra.mxu0 0
        %4594 = vmatprep.subr.bf16.mxu0 0
        %4595 = vmatpush1.bf16.msra.mxu0 0
        %4596 = vmatprep.mubr.bf16.mxu0 0
        %4597 = vmatmul.mubr.bf16.gmra.mrb[0].mxu0 %v4514
        %v4598 = vpop.f32.mrb[0].mxu0
        %v4599 = vadd.f32 0.0, %v4598
        %v4600 = vpop.f32.mrb[0].mxu0
        %v4601 = vpop.f32.mrb[0].mxu0
        %v4602 = vadd.f32 0.0, %v4601
        %v4603 = vpop.f32.mrb[0].mxu0
        %4604 = vmatprep.mubr.bf16.mxu0 0
        %4605 = vmatmul.mubr.bf16.gmra.mrb[0].mxu0 %v4517
        %v4606 = vpop.f32.mrb[0].mxu0
        %v4607 = vadd.f32 0.0, %v4606
        %v4608 = vpop.f32.mrb[0].mxu0
        %v4609 = vpop.f32.mrb[0].mxu0
        %v4610 = vadd.f32 0.0, %v4609
        %v4611 = vpop.f32.mrb[0].mxu0
        %4612 = vmatprep.mubr.bf16.mxu0 0
        %4613 = vmatmul.mubr.bf16.gmra.mrb[0].mxu0 %v4520
        %v4614 = vpop.f32.mrb[0].mxu0
        %v4615 = vadd.f32 0.0, %v4614
        %v4616 = vpop.f32.mrb[0].mxu0
        %v4617 = vpop.f32.mrb[0].mxu0
        %v4618 = vadd.f32 0.0, %v4617
        %v4619 = vpop.f32.mrb[0].mxu0
        %4620 = vmatprep.mubr.bf16.mxu0 0
        %4621 = vmatmul.mubr.bf16.gmra.mrb[0].mxu0 %v4523
        %v4622 = vpop.f32.mrb[0].mxu0
        %v4623 = vadd.f32 0.0, %v4622
        %v4624 = vpop.f32.mrb[0].mxu0
        %v4625 = vpop.f32.mrb[0].mxu0
        %v4626 = vadd.f32 0.0, %v4625
        %v4627 = vpop.f32.mrb[0].mxu0
        %4628 = vmatprep.mubr.bf16.mxu0 0
        %4629 = vmatmul.mubr.bf16.gmra.mrb[0].mxu0 %v4526
        %v4630 = vpop.f32.mrb[0].mxu0
        %v4631 = vadd.f32 0.0, %v4630
        %v4632 = vpop.f32.mrb[0].mxu0
        %v4633 = vpop.f32.mrb[0].mxu0
        %v4634 = vadd.f32 0.0, %v4633
        %v4635 = vpop.f32.mrb[0].mxu0
        %4636 = vmatprep.mubr.bf16.mxu0 0
        %4637 = vmatmul.mubr.bf16.gmra.mrb[0].mxu0 %v4529
        %v4638 = vpop.f32.mrb[0].mxu0
        %v4639 = vadd.f32 0.0, %v4638
        %v4640 = vpop.f32.mrb[0].mxu0
        %v4641 = vpop.f32.mrb[0].mxu0
        %v4642 = vadd.f32 0.0, %v4641
        %v4643 = vpop.f32.mrb[0].mxu0
        %4644 = vmatprep.mubr.bf16.mxu0 0
        %4645 = vmatmul.mubr.bf16.gmra.mrb[0].mxu0 %v4532
        %v4646 = vpop.f32.mrb[0].mxu0
        %v4647 = vadd.f32 0.0, %v4646
        %v4648 = vpop.f32.mrb[0].mxu0
        %v4649 = vpop.f32.mrb[0].mxu0
        %v4650 = vadd.f32 0.0, %v4649
        %v4651 = vpop.f32.mrb[0].mxu0
        %4652 = vmatprep.mubr.bf16.mxu0 0
        %4653 = vmatmul.mubr.bf16.gmra.mrb[0].mxu0 %v4535
        %v4654 = vpop.f32.mrb[0].mxu0
        %v4655 = vadd.f32 0.0, %v4654
        %v4656 = vpop.f32.mrb[0].mxu0
        %v4657 = vpop.f32.mrb[0].mxu0
        %v4658 = vadd.f32 0.0, %v4657
        %v4659 = vpop.f32.mrb[0].mxu0
        %4660 = vmatprep.mubr.bf16.mxu0 0
        %4661 = vmatmul.mubr.bf16.gmra.mrb[0].mxu0 %v4538
        %v4662 = vpop.f32.mrb[0].mxu0
        %v4663 = vadd.f32 0.0, %v4662
        %v4664 = vpop.f32.mrb[0].mxu0
        %v4665 = vpop.f32.mrb[0].mxu0
        %v4666 = vadd.f32 0.0, %v4665
        %v4667 = vpop.f32.mrb[0].mxu0
        %4668 = vmatprep.mubr.bf16.mxu0 0
        %4669 = vmatmul.mubr.bf16.gmra.mrb[0].mxu0 %v4541
        %v4670 = vpop.f32.mrb[0].mxu0
        %v4671 = vadd.f32 0.0, %v4670
        %v4672 = vpop.f32.mrb[0].mxu0
        %v4673 = vpop.f32.mrb[0].mxu0
        %v4674 = vadd.f32 0.0, %v4673
        %v4675 = vpop.f32.mrb[0].mxu0
        %4676 = vmatprep.mubr.bf16.mxu0 0
        %4677 = vmatmul.mubr.bf16.gmra.mrb[0].mxu0 %v4544
        %v4678 = vpop.f32.mrb[0].mxu0
        %v4679 = vadd.f32 0.0, %v4678
        %v4680 = vpop.f32.mrb[0].mxu0
        %v4681 = vpop.f32.mrb[0].mxu0
        %v4682 = vadd.f32 0.0, %v4681
        %v4683 = vpop.f32.mrb[0].mxu0
        %4684 = vmatprep.mubr.bf16.mxu0 0
        %4685 = vmatmul.mubr.bf16.gmra.mrb[0].mxu0 %v4547
        %v4686 = vpop.f32.mrb[0].mxu0
        %v4687 = vadd.f32 0.0, %v4686
        %v4688 = vpop.f32.mrb[0].mxu0
        %v4689 = vpop.f32.mrb[0].mxu0
        %v4690 = vadd.f32 0.0, %v4689
        %v4691 = vpop.f32.mrb[0].mxu0
        %4692 = vmatprep.mubr.bf16.mxu0 0
        %4693 = vmatmul.mubr.bf16.gmra.mrb[0].mxu0 %v4550
        %v4694 = vpop.f32.mrb[0].mxu0
        %v4695 = vadd.f32 0.0, %v4694
        %v4696 = vpop.f32.mrb[0].mxu0
        %v4697 = vpop.f32.mrb[0].mxu0
        %v4698 = vadd.f32 0.0, %v4697
        %v4699 = vpop.f32.mrb[0].mxu0
        %4700 = vmatprep.mubr.bf16.mxu0 0
        %4701 = vmatmul.mubr.bf16.gmra.mrb[0].mxu0 %v4553
        %v4702 = vpop.f32.mrb[0].mxu0
        %v4703 = vadd.f32 0.0, %v4702
        %v4704 = vpop.f32.mrb[0].mxu0
        %v4705 = vpop.f32.mrb[0].mxu0
        %v4706 = vadd.f32 0.0, %v4705
        %v4707 = vpop.f32.mrb[0].mxu0
        %4708 = vmatprep.mubr.bf16.mxu0 0
        %4709 = vmatmul.mubr.bf16.gmra.mrb[0].mxu0 %v4556
        %v4710 = vpop.f32.mrb[0].mxu0
        %v4711 = vadd.f32 0.0, %v4710
        %v4712 = vpop.f32.mrb[0].mxu0
        %v4713 = vpop.f32.mrb[0].mxu0
        %v4714 = vadd.f32 0.0, %v4713
        %v4715 = vpop.f32.mrb[0].mxu0
        %4716 = vmatprep.mubr.bf16.mxu0 0
        %4717 = vmatmul.mubr.bf16.gmra.mrb[0].mxu0 %v4559
        %v4718 = vpop.f32.mrb[0].mxu0
        %v4719 = vadd.f32 0.0, %v4718
        %v4720 = vpop.f32.mrb[0].mxu0
        %v4721 = vpop.f32.mrb[0].mxu0
        %v4722 = vadd.f32 0.0, %v4721
        %v4723 = vpop.f32.mrb[0].mxu0
        %4724 = vdwg.mxu0
        %v4725 = vadd.f32 %v4255, %v4599
        %v4726 = vadd.f32 %v4256, %v4602
        %v4727 = vadd.f32 %v4257, %v4607
        %v4728 = vadd.f32 %v4258, %v4610
        %v4729 = vadd.f32 %v4259, %v4615
        %v4730 = vadd.f32 %v4260, %v4618
        %v4731 = vadd.f32 %v4261, %v4623
        %v4732 = vadd.f32 %v4262, %v4626
        %v4733 = vadd.f32 %v4263, %v4631
        %v4734 = vadd.f32 %v4264, %v4634
        %v4735 = vadd.f32 %v4265, %v4639
        %v4736 = vadd.f32 %v4266, %v4642
        %v4737 = vadd.f32 %v4267, %v4647
        %v4738 = vadd.f32 %v4268, %v4650
        %v4739 = vadd.f32 %v4269, %v4655
        %v4740 = vadd.f32 %v4270, %v4658
        %v4741 = vadd.f32 %v4271, %v4663
        %v4742 = vadd.f32 %v4272, %v4666
        %v4743 = vadd.f32 %v4273, %v4671
        %v4744 = vadd.f32 %v4274, %v4674
        %v4745 = vadd.f32 %v4275, %v4679
        %v4746 = vadd.f32 %v4276, %v4682
        %v4747 = vadd.f32 %v4277, %v4687
        %v4748 = vadd.f32 %v4278, %v4690
        %v4749 = vadd.f32 %v4279, %v4695
        %v4750 = vadd.f32 %v4280, %v4698
        %v4751 = vadd.f32 %v4281, %v4703
        %v4752 = vadd.f32 %v4282, %v4706
        %v4753 = vadd.f32 %v4283, %v4711
        %v4754 = vadd.f32 %v4284, %v4714
        %v4755 = vadd.f32 %v4285, %v4719
        %v4756 = vadd.f32 %v4286, %v4722
        %v4757 = vld [vmem:[%s2] sm:$0x1]
        %v4759 = vlaneseq
        %v4760 = vshrl.u32 %v4759, 7
        %v4761 = vsub.s32 0, %v4760
        %v4762 = vrot.slane %v4757, %v4761
        %v4764 = vadd.f32 %v4725, %v4762
        %v4765 = vadd.f32 %v4726, %v4762
        %v4766 = vadd.f32 %v4727, %v4762
        %v4767 = vadd.f32 %v4728, %v4762
        %v4768 = vadd.f32 %v4729, %v4762
        %v4769 = vadd.f32 %v4730, %v4762
        %v4770 = vadd.f32 %v4731, %v4762
        %v4771 = vadd.f32 %v4732, %v4762
        %v4772 = vadd.f32 %v4733, %v4762
        %v4773 = vadd.f32 %v4734, %v4762
        %v4774 = vadd.f32 %v4735, %v4762
        %v4775 = vadd.f32 %v4736, %v4762
        %v4776 = vadd.f32 %v4737, %v4762
        %v4777 = vadd.f32 %v4738, %v4762
        %v4778 = vadd.f32 %v4739, %v4762
        %v4779 = vadd.f32 %v4740, %v4762
        %v4780 = vadd.f32 %v4741, %v4762
        %v4781 = vadd.f32 %v4742, %v4762
        %v4782 = vadd.f32 %v4743, %v4762
        %v4783 = vadd.f32 %v4744, %v4762
        %v4784 = vadd.f32 %v4745, %v4762
        %v4785 = vadd.f32 %v4746, %v4762
        %v4786 = vadd.f32 %v4747, %v4762
        %v4787 = vadd.f32 %v4748, %v4762
        %v4788 = vadd.f32 %v4749, %v4762
        %v4789 = vadd.f32 %v4750, %v4762
        %v4790 = vadd.f32 %v4751, %v4762
        %v4791 = vadd.f32 %v4752, %v4762
        %v4792 = vadd.f32 %v4753, %v4762
        %v4793 = vadd.f32 %v4754, %v4762
        %v4794 = vadd.f32 %v4755, %v4762
        %v4795 = vadd.f32 %v4756, %v4762
        %v4796 = vpack.c.bf16 %v4765, %v4764
        %v4797 = vpack.c.bf16 %v4767, %v4766
        %v4798 = vpack.c.bf16 %v4769, %v4768
        %v4799 = vpack.c.bf16 %v4771, %v4770
        %v4800 = vpack.c.bf16 %v4773, %v4772
        %v4801 = vpack.c.bf16 %v4775, %v4774
        %v4802 = vpack.c.bf16 %v4777, %v4776
        %v4803 = vpack.c.bf16 %v4779, %v4778
        %v4804 = vpack.c.bf16 %v4781, %v4780
        %v4805 = vpack.c.bf16 %v4783, %v4782
        %v4806 = vpack.c.bf16 %v4785, %v4784
        %v4807 = vpack.c.bf16 %v4787, %v4786
        %v4808 = vpack.c.bf16 %v4789, %v4788
        %v4809 = vpack.c.bf16 %v4791, %v4790
        %v4810 = vpack.c.bf16 %v4793, %v4792
        %v4811 = vpack.c.bf16 %v4795, %v4794
        %v4828 = vunpack.c.l.b16 %v4796
        %v4829 = vunpack.c.h.b16 %v4796
        %v4830 = vunpack.c.l.b16 %v4797
        %v4831 = vunpack.c.h.b16 %v4797
        %v4832 = vunpack.c.l.b16 %v4798
        %v4833 = vunpack.c.h.b16 %v4798
        %v4834 = vunpack.c.l.b16 %v4799
        %v4835 = vunpack.c.h.b16 %v4799
        %v4836 = vunpack.c.l.b16 %v4800
        %v4837 = vunpack.c.h.b16 %v4800
        %v4838 = vunpack.c.l.b16 %v4801
        %v4839 = vunpack.c.h.b16 %v4801
        %v4840 = vunpack.c.l.b16 %v4802
        %v4841 = vunpack.c.h.b16 %v4802
        %v4842 = vunpack.c.l.b16 %v4803
        %v4843 = vunpack.c.h.b16 %v4803
        %v4844 = vunpack.c.l.b16 %v4804
        %v4845 = vunpack.c.h.b16 %v4804
        %v4846 = vunpack.c.l.b16 %v4805
        %v4847 = vunpack.c.h.b16 %v4805
        %v4848 = vunpack.c.l.b16 %v4806
        %v4849 = vunpack.c.h.b16 %v4806
        %v4850 = vunpack.c.l.b16 %v4807
        %v4851 = vunpack.c.h.b16 %v4807
        %v4852 = vunpack.c.l.b16 %v4808
        %v4853 = vunpack.c.h.b16 %v4808
        %v4854 = vunpack.c.l.b16 %v4809
        %v4855 = vunpack.c.h.b16 %v4809
        %v4856 = vunpack.c.l.b16 %v4810
        %v4857 = vunpack.c.h.b16 %v4810
        %v4858 = vunpack.c.l.b16 %v4811
        %v4859 = vunpack.c.h.b16 %v4811
        %v4860 = vpack.c.b16 %v4828, %v4828
        %v4861 = vpack.c.b16 %v4829, %v4829
        %v4862 = vpack.c.b16 %v4830, %v4830
        %v4863 = vpack.c.b16 %v4831, %v4831
        %v4864 = vpack.c.b16 %v4832, %v4832
        %v4865 = vpack.c.b16 %v4833, %v4833
        %v4866 = vpack.c.b16 %v4834, %v4834
        %v4867 = vpack.c.b16 %v4835, %v4835
        %v4868 = vpack.c.b16 %v4836, %v4836
        %v4869 = vpack.c.b16 %v4837, %v4837
        %v4870 = vpack.c.b16 %v4838, %v4838
        %v4871 = vpack.c.b16 %v4839, %v4839
        %v4872 = vpack.c.b16 %v4840, %v4840
        %v4873 = vpack.c.b16 %v4841, %v4841
        %v4874 = vpack.c.b16 %v4842, %v4842
        %v4875 = vpack.c.b16 %v4843, %v4843
        %v4876 = vpack.c.b16 %v4844, %v4844
        %v4877 = vpack.c.b16 %v4845, %v4845
        %v4878 = vpack.c.b16 %v4846, %v4846
        %v4879 = vpack.c.b16 %v4847, %v4847
        %v4880 = vpack.c.b16 %v4848, %v4848
        %v4881 = vpack.c.b16 %v4849, %v4849
        %v4882 = vpack.c.b16 %v4850, %v4850
        %v4883 = vpack.c.b16 %v4851, %v4851
        %v4884 = vpack.c.b16 %v4852, %v4852
        %v4885 = vpack.c.b16 %v4853, %v4853
        %v4886 = vpack.c.b16 %v4854, %v4854
        %v4887 = vpack.c.b16 %v4855, %v4855
        %v4888 = vpack.c.b16 %v4856, %v4856
        %v4889 = vpack.c.b16 %v4857, %v4857
        %v4890 = vpack.c.b16 %v4858, %v4858
        %v4891 = vpack.c.b16 %v4859, %v4859
        %vm4924 = vcmask 257024
        %4925 = vst.msk [vmem:[%s177] sm:$0xf] %vm4924, %v4860
        %4926 = vst.msk [vmem:[%s177 + $0x4] sm:$0xf] %vm4924, %v4861
        %4927 = vst.msk [vmem:[%s177 + $0x8] sm:$0xf] %vm4924, %v4862
        %4928 = vst.msk [vmem:[%s177 + $0xc] sm:$0xf] %vm4924, %v4863
        %4929 = vst.msk [vmem:[%s177 + $0x10] sm:$0xf] %vm4924, %v4864
        %4930 = vst.msk [vmem:[%s177 + $0x14] sm:$0xf] %vm4924, %v4865
        %4931 = vst.msk [vmem:[%s177 + $0x18] sm:$0xf] %vm4924, %v4866
        %4932 = vst.msk [vmem:[%s177 + $0x1c] sm:$0xf] %vm4924, %v4867
        %4933 = vst.msk [vmem:[%s177 + $0x20] sm:$0xf] %vm4924, %v4868
        %4934 = vst.msk [vmem:[%s177 + $0x24] sm:$0xf] %vm4924, %v4869
        %4935 = vst.msk [vmem:[%s177 + $0x28] sm:$0xf] %vm4924, %v4870
        %4936 = vst.msk [vmem:[%s177 + $0x2c] sm:$0xf] %vm4924, %v4871
        %4937 = vst.msk [vmem:[%s177 + $0x30] sm:$0xf] %vm4924, %v4872
        %4938 = vst.msk [vmem:[%s177 + $0x34] sm:$0xf] %vm4924, %v4873
        %4939 = vst.msk [vmem:[%s177 + $0x38] sm:$0xf] %vm4924, %v4874
        %4940 = vst.msk [vmem:[%s177 + $0x3c] sm:$0xf] %vm4924, %v4875
        %4941 = vst.msk [vmem:[%s177 + $0x40] sm:$0xf] %vm4924, %v4876
        %4942 = vst.msk [vmem:[%s177 + $0x44] sm:$0xf] %vm4924, %v4877
        %4943 = vst.msk [vmem:[%s177 + $0x48] sm:$0xf] %vm4924, %v4878
        %4944 = vst.msk [vmem:[%s177 + $0x4c] sm:$0xf] %vm4924, %v4879
        %4945 = vst.msk [vmem:[%s177 + $0x50] sm:$0xf] %vm4924, %v4880
        %4946 = vst.msk [vmem:[%s177 + $0x54] sm:$0xf] %vm4924, %v4881
        %4947 = vst.msk [vmem:[%s177 + $0x58] sm:$0xf] %vm4924, %v4882
        %4948 = vst.msk [vmem:[%s177 + $0x5c] sm:$0xf] %vm4924, %v4883
        %4949 = vst.msk [vmem:[%s177 + $0x60] sm:$0xf] %vm4924, %v4884
        %4950 = vst.msk [vmem:[%s177 + $0x64] sm:$0xf] %vm4924, %v4885
        %4951 = vst.msk [vmem:[%s177 + $0x68] sm:$0xf] %vm4924, %v4886
        %4952 = vst.msk [vmem:[%s177 + $0x6c] sm:$0xf] %vm4924, %v4887
        %4953 = vst.msk [vmem:[%s177 + $0x70] sm:$0xf] %vm4924, %v4888
        %4954 = vst.msk [vmem:[%s177 + $0x74] sm:$0xf] %vm4924, %v4889
        %4955 = vst.msk [vmem:[%s177 + $0x78] sm:$0xf] %vm4924, %v4890
        %4956 = vst.msk [vmem:[%s177 + $0x7c] sm:$0xf] %vm4924, %v4891
        %s4957 = sand.u32 %s107, 1
        %s4958 = scalar_lea.sflag [#allocation3], %s4957
        %s4959 = sand.u32 %s107, 1
        %s4960 = smul.addr %s4959, 128
        %s4961 = scalar_lea.vmem [#allocation2], %s4960
        // Predicated region
        $region33: #{_conv_call.1} parent=31 // pred_check
          %p4962 = pneg %p117
        $region34: #{_conv_call.1} parent=31 // pred_check_branch
          %4964 = sbr.rel (%p4962) target = $region36
        $region35: #{_conv_call.1} parent=31 // pred_region
          %s4965 = smul.u32 16, %s22
          %s4967 = ssub.s32 2048, 2048
          %4968 = vsyncadd %s4958, %s4967
          %s4969 = smul.addr %s4965, 2
          %s4970 = smul.addr %s21, 32
          %s4971 = sadd.s32 %s4969, %s4970
          %s4972 = smul.addr %s4971, 64
          %s4973 = scalar_lea.hbm %s3, %s4972
          %s4974 = sshll.u32 %s4961, 4
          %s4975 = int_to_ptr.vmem [resolvable:$true] %s4974
          %4980 = dma.vmem_to_hbm [thread:$0]  %s4975, 2048, %s4973, %s4958, 64, 64, 4
        $region36: #{_conv_call.1} parent=31 // pred_fallthru
          _
      $region32: #{_conv_call.1} parent=5 // pred_fallthru
        _
      %p4981 = scmp.le.s32.totalorder 2, %s12
      // Predicated region
      $region37: #{_conv_call.1} parent=5 // pred_check
        %p4982 = pneg %p4981
      $region38: #{_conv_call.1} parent=5 // pred_check_branch
        %4984 = sbr.rel (%p4982) target = $region40
      $region39: #{_conv_call.1} parent=5 // pred_region
        %s4985 = ssub.s32 %s12, 2
        // Predicated region
        $region41: #{_conv_call.1} parent=39 // pred_check
          %p4986 = pneg %p123
        $region42: #{_conv_call.1} parent=39 // pred_check_branch
          %4988 = sbr.rel (%p4986) target = $region44
        $region43: #{_conv_call.1} parent=39 // pred_region
          %s4989 = sand.u32 %s108, 1
          %s4990 = scalar_lea.sflag [#allocation3], %s4989
          %s4991 = sand.u32 %s108, 1
          %s4992 = smul.addr %s4991, 128
          %s4993 = scalar_lea.vmem [#allocation2], %s4992
          %4994 = dma.done %s4990, 2048
        $region44: #{_conv_call.1} parent=39 // pred_fallthru
          _
      $region40: #{_conv_call.1} parent=5 // pred_fallthru
        _
    $region6: #{_conv_call.1} parent=1 // loop_footer
      %s16 = sadd.s32 1, %s12
    $region7: #{_conv_call.1} parent=1 // loop_footer_branch
      %11 = sbr.rel target = $region3
    $region8: #{_conv_call.1} parent=1 // loop_exit
      _
    %4995 = vsyncpa [#allocation3], 1
    %s4996 = scalar_lea.sflag [#allocation3], 1
    %4997 = vsyncpa %s4996, 1

</llo_original>
